<compile_context>
chip_gen: v7x
topology: tpu7x:2x2x1
jax: 0.10.0
libtpu: 0.0.40
codegen_flags: <defaults>
</compile_context>

<pallas_src>
import functools

import jax
import jax.numpy as jnp
from jax.experimental import pallas as pl
from jax.experimental.pallas import tpu as pltpu  # noqa: F401  (kept per template)


# ---------------------------------------------------------------------------
# Model configuration (small, shape-consistent with MeasureViT's forward)
# ---------------------------------------------------------------------------
CFG = dict(
    in_ch=6,            # 3 original + 3 additional channels
    img_h=16, img_w=12,
    patch=4,            # -> feature grid 4 x 3 (stands in for 16 x 12 at full scale)
    embed_dim=32,       # stands in for 768
    depth=2,
    num_heads=4,
    mlp_ratio=2,
    num_m=1,
    num_outputs=15,
    head_hidden1=512,
    head_hidden2=256,
    ln_eps=1e-6,        # TODO(synk): confirm reference MeasureViT LN eps (PyTorch default 1e-5, timm ViT 1e-6)
)
CFG["hp"] = CFG["img_h"] // CFG["patch"]
CFG["wp"] = CFG["img_w"] // CFG["patch"]
CFG["tokens"] = CFG["hp"] * CFG["wp"]
CFG["head_in"] = CFG["embed_dim"] * CFG["tokens"] + CFG["num_m"]


# ---------------------------------------------------------------------------
# In-kernel helpers (all operate on VMEM-resident f32 values)
# ---------------------------------------------------------------------------
def _ln(v, g_ref, b_ref, eps):
    mu = jnp.mean(v, axis=-1, keepdims=True)
    var = jnp.mean(jnp.square(v - mu), axis=-1, keepdims=True)
    y = (v - mu) * jax.lax.rsqrt(var + eps)
    return y * g_ref[...].astype(jnp.float32) + b_ref[...].astype(jnp.float32)


def _mm(a_f32, w_ref, b_ref):
    # bf16 MXU operands (weights already stored bf16), f32 accumulate, f32 bias add.
    return jnp.dot(a_f32.astype(jnp.bfloat16), w_ref[...],
                   preferred_element_type=jnp.float32) + b_ref[...].astype(jnp.float32)


# ---------------------------------------------------------------------------
# Fused backbone kernel: patch-embed + all transformer blocks + final LN
# ---------------------------------------------------------------------------
def _backbone_kernel(*refs, batch, tokens, num_heads, head_dim, depth, eps):
    """Whole ViT backbone in ONE pallas_call.

    refs layout:
      [0] xp        (B*T, C*p*p)
      [1] patch_w   (C*p*p, D)   bf16
      [2] patch_b   (1, D)       f32
      [3] pos_embed (T, D)       f32
      [4 .. 4+12*depth)  per-block params (12 refs each):
           ln1_g, ln1_b, qkv_w, qkv_b, proj_w, proj_b,
           ln2_g, ln2_b, fc1_w, fc1_b, fc2_w, fc2_b
      [-3], [-2]   final LN gamma / beta
      [-1]         output (B*T, D)
    """
    o_ref = refs[-1]
    xp_ref, pw_ref, pb_ref, pos_ref = refs[:4]
    blk_refs = refs[4:4 + 12 * depth]
    lnfg, lnfb = refs[4 + 12 * depth], refs[5 + 12 * depth]

    d = num_heads * head_dim
    scale = 1.0 / (head_dim ** 0.5)

    # ---- patch embedding + positional embedding ----
    x = _mm(xp_ref[...].astype(jnp.float32), pw_ref, pb_ref)         # (B*T, D)
    pos = pos_ref[...].astype(jnp.float32)                           # (T, D)
    x = x + jnp.concatenate([pos] * batch, axis=0)                   # broadcast over batch

    # ---- transformer blocks (static unroll over depth; activations stay in VMEM) ----
    for blk_i in range(depth):
        (ln1g, ln1b, qkvw, qkvb, projw, projb,
         ln2g, ln2b, fc1w, fc1b, fc2w, fc2b) = blk_refs[12 * blk_i: 12 * (blk_i + 1)]

        # -- attention --
        y = _ln(x, ln1g, ln1b, eps)
        qkv = _mm(y, qkvw, qkvb)                                      # (B*T, 3D)
        batch_rows = []
        for b in range(batch):                                        # static unroll (tiny B)
            r0 = b * tokens
            head_cols = []
            for hh in range(num_heads):                               # static unroll
                c0 = hh * head_dim
                q = qkv[r0:r0 + tokens, c0:c0 + head_dim]
                k = qkv[r0:r0 + tokens, d + c0:d + c0 + head_dim]
                v = qkv[r0:r0 + tokens, 2 * d + c0:2 * d + c0 + head_dim]
                # contract head_dim directly (q k^T without materializing k.T)
                s = jax.lax.dot_general(
                    q.astype(jnp.bfloat16), k.astype(jnp.bfloat16),
                    (((1,), (1,)), ((), ())),
                    preferred_element_type=jnp.float32) * scale       # (T, T)
                s = s - jnp.max(s, axis=-1, keepdims=True)
                p = jnp.exp(s)                                        # f32 softmax (v5e-safe)
                p = p * pl.reciprocal(jnp.sum(p, axis=-1, keepdims=True), approx=True)
                head_cols.append(
                    jnp.dot(p.astype(jnp.bfloat16), v.astype(jnp.bfloat16),
                            preferred_element_type=jnp.float32))       # (T, dh)
            batch_rows.append(jnp.concatenate(head_cols, axis=-1))     # (T, D) lane-dense
        attn = jnp.concatenate(batch_rows, axis=0)                     # (B*T, D)
        x = x + _mm(attn, projw, projb)

        # -- MLP --
        y = _ln(x, ln2g, ln2b, eps)
        # TODO(synk): PyTorch nn.GELU defaults to erf; tanh approximation used here.
        y = jax.nn.gelu(_mm(y, fc1w, fc1b), approximate=True)
        x = x + _mm(y, fc2w, fc2b)

    # ---- final LayerNorm (fused) ----
    x = _ln(x, lnfg, lnfb, eps)
    o_ref[...] = x.astype(o_ref.dtype)


def backbone(xp, params, *, batch):
    n = xp.shape[0]
    d = CFG["embed_dim"]
    depth = len(params["blocks"])
    args = [xp, params["patch_w"], params["patch_b"].reshape(1, d), params["pos_embed"]]
    for blk in params["blocks"]:
        args += [blk["ln1_g"].reshape(1, d), blk["ln1_b"].reshape(1, d),
                 blk["qkv_w"], blk["qkv_b"].reshape(1, 3 * d),
                 blk["proj_w"], blk["proj_b"].reshape(1, d),
                 blk["ln2_g"].reshape(1, d), blk["ln2_b"].reshape(1, d),
                 blk["fc1_w"], blk["fc1_b"].reshape(1, -1),
                 blk["fc2_w"], blk["fc2_b"].reshape(1, d)]
    args += [params["ln_f_g"].reshape(1, d), params["ln_f_b"].reshape(1, d)]

    kernel = functools.partial(
        _backbone_kernel, batch=batch, tokens=CFG["tokens"],
        num_heads=CFG["num_heads"], head_dim=d // CFG["num_heads"],
        depth=depth, eps=CFG["ln_eps"])
    return pl.pallas_call(
        kernel, out_shape=jax.ShapeDtypeStruct((n, d), jnp.float32),
    )(*args)


# ---------------------------------------------------------------------------
# Fused MLP head kernel
# ---------------------------------------------------------------------------
def _head_kernel(x_ref, m_ref, w1, b1, w2, b2, w3, b3, o_ref):
    """concat(m) -> Linear+ReLU -> Linear+ReLU -> Linear, fully fused."""
    flat = jnp.concatenate(
        [x_ref[...].astype(jnp.float32), m_ref[...].astype(jnp.float32)], axis=1)
    z = jnp.maximum(_mm(flat, w1, b1), 0.0)
    z = jnp.maximum(_mm(z, w2, b2), 0.0)
    o_ref[...] = _mm(z, w3, b3).astype(o_ref.dtype)


def mlp_head(flat, m, params):
    b = flat.shape[0]
    # TODO(synk): at real ViTPose scale (head_in ~147k, ~150MB bf16 weight) h1 must be
    # K-tiled with a grid + f32 VMEM accumulator (tile sized for v7x's 64 MiB VMEM)
    # instead of a single un-tiled VMEM operand.
    return pl.pallas_call(
        _head_kernel,
        out_shape=jax.ShapeDtypeStruct((b, CFG["num_outputs"]), jnp.float32),
    )(flat, m,
      params["h1_w"], params["h1_b"].reshape(1, -1),
      params["h2_w"], params["h2_b"].reshape(1, -1),
      params["h3_w"], params["h3_b"].reshape(1, -1))


# ---------------------------------------------------------------------------
# Parameters (matmul weights stored bf16; biases / LN / pos-embed in f32)
# ---------------------------------------------------------------------------
def init_params(key):
    D = CFG["embed_dim"]
    hidden = D * CFG["mlp_ratio"]
    patch_in = CFG["in_ch"] * CFG["patch"] * CFG["patch"]

    def w_init(k, shape):
        return (0.02 * jax.random.normal(k, shape, jnp.float32)).astype(jnp.bfloat16)

    keys = iter(jax.random.split(key, 8 + 4 * CFG["depth"]))
    params = {
        "patch_w": w_init(next(keys), (patch_in, D)),
        "patch_b": jnp.zeros((D,), jnp.float32),
        "pos_embed": 0.02 * jax.random.normal(next(keys), (CFG["tokens"], D), jnp.float32),
        "ln_f_g": jnp.ones((D,), jnp.float32),
        "ln_f_b": jnp.zeros((D,), jnp.float32),
        "blocks": [],
        # MLP head: Linear(head_in, 512) -> ReLU -> Linear(512, 256) -> ReLU -> Linear(256, 15)
        "h1_w": w_init(next(keys), (CFG["head_in"], CFG["head_hidden1"])),
        "h1_b": jnp.zeros((CFG["head_hidden1"],), jnp.float32),
        "h2_w": w_init(next(keys), (CFG["head_hidden1"], CFG["head_hidden2"])),
        "h2_b": jnp.zeros((CFG["head_hidden2"],), jnp.float32),
        "h3_w": w_init(next(keys), (CFG["head_hidden2"], CFG["num_outputs"])),
        "h3_b": jnp.zeros((CFG["num_outputs"],), jnp.float32),
    }
    for _ in range(CFG["depth"]):
        params["blocks"].append({
            "ln1_g": jnp.ones((D,), jnp.float32),
            "ln1_b": jnp.zeros((D,), jnp.float32),
            "qkv_w": w_init(next(keys), (D, 3 * D)),
            "qkv_b": jnp.zeros((3 * D,), jnp.float32),
            "proj_w": w_init(next(keys), (D, D)),
            "proj_b": jnp.zeros((D,), jnp.float32),
            "ln2_g": jnp.ones((D,), jnp.float32),
            "ln2_b": jnp.zeros((D,), jnp.float32),
            "fc1_w": w_init(next(keys), (D, hidden)),
            "fc1_b": jnp.zeros((hidden,), jnp.float32),
            "fc2_w": w_init(next(keys), (hidden, D)),
            "fc2_b": jnp.zeros((D,), jnp.float32),
        })
    return params


# ---------------------------------------------------------------------------
# Forward pass (matches MeasureViT.forward semantics)
# ---------------------------------------------------------------------------
def measure_vit_forward(params, x, m):
    B, C, H, W = x.shape
    p = CFG["patch"]
    Hp, Wp, T, D = CFG["hp"], CFG["wp"], CFG["tokens"], CFG["embed_dim"]

    # --- patchify (tiny JAX glue) ---
    # TODO(synk): when loading real ViTPose weights the Conv2d(k=s=patch) kernel must
    # be permuted/flattened to this (C, p, p) order.
    xp = x.reshape(B, C, Hp, p, Wp, p).transpose(0, 2, 4, 1, 3, 5).reshape(B * T, C * p * p)

    # --- entire backbone (patch-embed + all blocks + final LN) in ONE kernel ---
    tok = backbone(xp, params, batch=B)                               # (B*T, D)

    # --- ViTPose-style NCHW feature map -> x.view(B, -1)  (tiny transpose in glue) ---
    feat = tok.reshape(B, Hp, Wp, D).transpose(0, 3, 1, 2).reshape(B, -1)

    # --- concat measurement m, fused MLP head ---
    if m is None:
        m = jnp.zeros((B, CFG["num_m"]), jnp.float32)
    return mlp_head(feat, m.astype(jnp.float32), params)             # (B, num_outputs)


if __name__ == "__main__":
    key = jax.random.PRNGKey(0)
    kx, km, kp = jax.random.split(key, 3)
    B = 2
    x = jax.random.normal(kx, (B, CFG["in_ch"], CFG["img_h"], CFG["img_w"]), jnp.float32)
    m = jax.random.normal(km, (B, CFG["num_m"]), jnp.float32)
    params = init_params(kp)

    fwd = jax.jit(measure_vit_forward)
    out = fwd(params, x, m)
    jax.block_until_ready(out)
    assert out.shape == (B, CFG["num_outputs"]), out.shape
    assert bool(jnp.all(jnp.isfinite(out)))
    print("KERNEL_OK")
</pallas_src>

<mosaic_0001>
module attributes {stable_mosaic.version = 11 : i64} {
  func.func @_backbone_kernel(%arg0: memref<24x96xf32, #tpu.memory_space<vmem>>, %arg1: memref<96x32xbf16, #tpu.memory_space<vmem>>, %arg2: memref<1x32xf32, #tpu.memory_space<vmem>>, %arg3: memref<12x32xf32, #tpu.memory_space<vmem>>, %arg4: memref<1x32xf32, #tpu.memory_space<vmem>>, %arg5: memref<1x32xf32, #tpu.memory_space<vmem>>, %arg6: memref<32x96xbf16, #tpu.memory_space<vmem>>, %arg7: memref<1x96xf32, #tpu.memory_space<vmem>>, %arg8: memref<32x32xbf16, #tpu.memory_space<vmem>>, %arg9: memref<1x32xf32, #tpu.memory_space<vmem>>, %arg10: memref<1x32xf32, #tpu.memory_space<vmem>>, %arg11: memref<1x32xf32, #tpu.memory_space<vmem>>, %arg12: memref<32x64xbf16, #tpu.memory_space<vmem>>, %arg13: memref<1x64xf32, #tpu.memory_space<vmem>>, %arg14: memref<64x32xbf16, #tpu.memory_space<vmem>>, %arg15: memref<1x32xf32, #tpu.memory_space<vmem>>, %arg16: memref<1x32xf32, #tpu.memory_space<vmem>>, %arg17: memref<1x32xf32, #tpu.memory_space<vmem>>, %arg18: memref<32x96xbf16, #tpu.memory_space<vmem>>, %arg19: memref<1x96xf32, #tpu.memory_space<vmem>>, %arg20: memref<32x32xbf16, #tpu.memory_space<vmem>>, %arg21: memref<1x32xf32, #tpu.memory_space<vmem>>, %arg22: memref<1x32xf32, #tpu.memory_space<vmem>>, %arg23: memref<1x32xf32, #tpu.memory_space<vmem>>, %arg24: memref<32x64xbf16, #tpu.memory_space<vmem>>, %arg25: memref<1x64xf32, #tpu.memory_space<vmem>>, %arg26: memref<64x32xbf16, #tpu.memory_space<vmem>>, %arg27: memref<1x32xf32, #tpu.memory_space<vmem>>, %arg28: memref<1x32xf32, #tpu.memory_space<vmem>>, %arg29: memref<1x32xf32, #tpu.memory_space<vmem>>, %arg30: memref<24x32xf32, #tpu.memory_space<vmem>>) attributes {dimension_semantics = [], scalar_prefetch = 0 : i64, scratch_operands = 0 : i64, tpu.core_type = #tpu.core_type<tc>} {
    %c0 = arith.constant 0 : index
    %c0_0 = arith.constant 0 : index
    %0 = vector.load %arg0[%c0, %c0_0] : memref<24x96xf32, #tpu.memory_space<vmem>>, vector<24x96xf32>
    %1 = arith.truncf %0 : vector<24x96xf32> to vector<24x96xbf16>
    %c0_1 = arith.constant 0 : index
    %c0_2 = arith.constant 0 : index
    %2 = vector.load %arg1[%c0_1, %c0_2] : memref<96x32xbf16, #tpu.memory_space<vmem>>, vector<96x32xbf16>
    %cst = arith.constant dense<0.000000e+00> : vector<24x32xf32>
    %3 = tpu.matmul %1, %2, %cst {dimension_numbers = #tpu.dot_dimension_numbers<[1], [0], [0], [1], [0, 0, 1, 1], [], []>} : vector<24x96xbf16>, vector<96x32xbf16>, vector<24x32xf32> -> vector<24x32xf32>
    %c0_3 = arith.constant 0 : index
    %c0_4 = arith.constant 0 : index
    %4 = vector.load %arg2[%c0_3, %c0_4] : memref<1x32xf32, #tpu.memory_space<vmem>>, vector<1x32xf32>
    %5 = vector.broadcast %4 : vector<1x32xf32> to vector<24x32xf32>
    %6 = arith.addf %3, %5 : vector<24x32xf32>
    %c0_5 = arith.constant 0 : index
    %c0_6 = arith.constant 0 : index
    %7 = vector.load %arg3[%c0_5, %c0_6] : memref<12x32xf32, #tpu.memory_space<vmem>>, vector<12x32xf32>
    %8 = tpu.concatenate %7, %7 in 0 : vector<12x32xf32>, vector<12x32xf32> -> vector<24x32xf32>
    %9 = arith.addf %6, %8 : vector<24x32xf32>
    %cst_7 = arith.constant dense<0.000000e+00> : vector<24xf32>
    %10 = vector.multi_reduction <add>, %9, %cst_7 [1] : vector<24x32xf32> to vector<24xf32>
    %11 = vector.shape_cast %10 : vector<24xf32> to vector<24x1xf32>
    %cst_8 = arith.constant 3.200000e+01 : f32
    %12 = vector.broadcast %cst_8 : f32 to vector<24x1xf32>
    %13 = arith.divf %11, %12 : vector<24x1xf32>
    %14 = vector.broadcast %13 : vector<24x1xf32> to vector<24x32xf32>
    %15 = arith.subf %9, %14 : vector<24x32xf32>
    %16 = arith.mulf %15, %15 : vector<24x32xf32>
    %cst_9 = arith.constant dense<0.000000e+00> : vector<24xf32>
    %17 = vector.multi_reduction <add>, %16, %cst_9 [1] : vector<24x32xf32> to vector<24xf32>
    %18 = vector.shape_cast %17 : vector<24xf32> to vector<24x1xf32>
    %cst_10 = arith.constant 3.200000e+01 : f32
    %19 = vector.broadcast %cst_10 : f32 to vector<24x1xf32>
    %20 = arith.divf %18, %19 : vector<24x1xf32>
    %21 = vector.broadcast %13 : vector<24x1xf32> to vector<24x32xf32>
    %22 = arith.subf %9, %21 : vector<24x32xf32>
    %cst_11 = arith.constant 9.99999997E-7 : f32
    %23 = vector.broadcast %cst_11 : f32 to vector<24x1xf32>
    %24 = arith.addf %20, %23 : vector<24x1xf32>
    %25 = math.rsqrt %24 : vector<24x1xf32>
    %26 = vector.broadcast %25 : vector<24x1xf32> to vector<24x32xf32>
    %27 = arith.mulf %22, %26 : vector<24x32xf32>
    %c0_12 = arith.constant 0 : index
    %c0_13 = arith.constant 0 : index
    %28 = vector.load %arg4[%c0_12, %c0_13] : memref<1x32xf32, #tpu.memory_space<vmem>>, vector<1x32xf32>
    %29 = vector.broadcast %28 : vector<1x32xf32> to vector<24x32xf32>
    %30 = arith.mulf %27, %29 : vector<24x32xf32>
    %c0_14 = arith.constant 0 : index
    %c0_15 = arith.constant 0 : index
    %31 = vector.load %arg5[%c0_14, %c0_15] : memref<1x32xf32, #tpu.memory_space<vmem>>, vector<1x32xf32>
    %32 = vector.broadcast %31 : vector<1x32xf32> to vector<24x32xf32>
    %33 = arith.addf %30, %32 : vector<24x32xf32>
    %34 = arith.truncf %33 : vector<24x32xf32> to vector<24x32xbf16>
    %c0_16 = arith.constant 0 : index
    %c0_17 = arith.constant 0 : index
    %35 = vector.load %arg6[%c0_16, %c0_17] : memref<32x96xbf16, #tpu.memory_space<vmem>>, vector<32x96xbf16>
    %cst_18 = arith.constant dense<0.000000e+00> : vector<24x96xf32>
    %36 = tpu.matmul %34, %35, %cst_18 {dimension_numbers = #tpu.dot_dimension_numbers<[1], [0], [0], [1], [0, 0, 1, 1], [], []>} : vector<24x32xbf16>, vector<32x96xbf16>, vector<24x96xf32> -> vector<24x96xf32>
    %c0_19 = arith.constant 0 : index
    %c0_20 = arith.constant 0 : index
    %37 = vector.load %arg7[%c0_19, %c0_20] : memref<1x96xf32, #tpu.memory_space<vmem>>, vector<1x96xf32>
    %38 = vector.broadcast %37 : vector<1x96xf32> to vector<24x96xf32>
    %39 = arith.addf %36, %38 : vector<24x96xf32>
    %40 = vector.extract_strided_slice %39 {offsets = [0, 0], sizes = [12, 8], strides = [1, 1]} : vector<24x96xf32> to vector<12x8xf32>
    %41 = vector.extract_strided_slice %39 {offsets = [0, 32], sizes = [12, 8], strides = [1, 1]} : vector<24x96xf32> to vector<12x8xf32>
    %42 = vector.extract_strided_slice %39 {offsets = [0, 64], sizes = [12, 8], strides = [1, 1]} : vector<24x96xf32> to vector<12x8xf32>
    %43 = arith.truncf %40 : vector<12x8xf32> to vector<12x8xbf16>
    %44 = arith.truncf %41 : vector<12x8xf32> to vector<12x8xbf16>
    %cst_21 = arith.constant dense<0.000000e+00> : vector<12x12xf32>
    %45 = tpu.matmul %43, %44, %cst_21 {dimension_numbers = #tpu.dot_dimension_numbers<[1], [1], [0], [0], [0, 0, 1, 0], [], []>} : vector<12x8xbf16>, vector<12x8xbf16>, vector<12x12xf32> -> vector<12x12xf32>
    %cst_22 = arith.constant 0.353553385 : f32
    %46 = vector.broadcast %cst_22 : f32 to vector<12x12xf32>
    %47 = arith.mulf %45, %46 : vector<12x12xf32>
    %cst_23 = arith.constant dense<0xFF800000> : vector<12xf32>
    %48 = vector.multi_reduction <maximumf>, %47, %cst_23 [1] : vector<12x12xf32> to vector<12xf32>
    %49 = vector.shape_cast %48 : vector<12xf32> to vector<12x1xf32>
    %50 = vector.broadcast %49 : vector<12x1xf32> to vector<12x12xf32>
    %51 = arith.subf %47, %50 : vector<12x12xf32>
    %52 = math.exp %51 : vector<12x12xf32>
    %cst_24 = arith.constant dense<0.000000e+00> : vector<12xf32>
    %53 = vector.multi_reduction <add>, %52, %cst_24 [1] : vector<12x12xf32> to vector<12xf32>
    %54 = vector.shape_cast %53 : vector<12xf32> to vector<12x1xf32>
    %55 = tpu.reciprocal %54 {approx = true} : vector<12x1xf32> -> vector<12x1xf32>
    %56 = vector.broadcast %55 : vector<12x1xf32> to vector<12x12xf32>
    %57 = arith.mulf %52, %56 : vector<12x12xf32>
    %58 = arith.truncf %57 : vector<12x12xf32> to vector<12x12xbf16>
    %59 = arith.truncf %42 : vector<12x8xf32> to vector<12x8xbf16>
    %cst_25 = arith.constant dense<0.000000e+00> : vector<12x8xf32>
    %60 = tpu.matmul %58, %59, %cst_25 {dimension_numbers = #tpu.dot_dimension_numbers<[1], [0], [0], [1], [0, 0, 1, 1], [], []>} : vector<12x12xbf16>, vector<12x8xbf16>, vector<12x8xf32> -> vector<12x8xf32>
    %61 = vector.extract_strided_slice %39 {offsets = [0, 8], sizes = [12, 8], strides = [1, 1]} : vector<24x96xf32> to vector<12x8xf32>
    %62 = vector.extract_strided_slice %39 {offsets = [0, 40], sizes = [12, 8], strides = [1, 1]} : vector<24x96xf32> to vector<12x8xf32>
    %63 = vector.extract_strided_slice %39 {offsets = [0, 72], sizes = [12, 8], strides = [1, 1]} : vector<24x96xf32> to vector<12x8xf32>
    %64 = arith.truncf %61 : vector<12x8xf32> to vector<12x8xbf16>
    %65 = arith.truncf %62 : vector<12x8xf32> to vector<12x8xbf16>
    %cst_26 = arith.constant dense<0.000000e+00> : vector<12x12xf32>
    %66 = tpu.matmul %64, %65, %cst_26 {dimension_numbers = #tpu.dot_dimension_numbers<[1], [1], [0], [0], [0, 0, 1, 0], [], []>} : vector<12x8xbf16>, vector<12x8xbf16>, vector<12x12xf32> -> vector<12x12xf32>
    %cst_27 = arith.constant 0.353553385 : f32
    %67 = vector.broadcast %cst_27 : f32 to vector<12x12xf32>
    %68 = arith.mulf %66, %67 : vector<12x12xf32>
    %cst_28 = arith.constant dense<0xFF800000> : vector<12xf32>
    %69 = vector.multi_reduction <maximumf>, %68, %cst_28 [1] : vector<12x12xf32> to vector<12xf32>
    %70 = vector.shape_cast %69 : vector<12xf32> to vector<12x1xf32>
    %71 = vector.broadcast %70 : vector<12x1xf32> to vector<12x12xf32>
    %72 = arith.subf %68, %71 : vector<12x12xf32>
    %73 = math.exp %72 : vector<12x12xf32>
    %cst_29 = arith.constant dense<0.000000e+00> : vector<12xf32>
    %74 = vector.multi_reduction <add>, %73, %cst_29 [1] : vector<12x12xf32> to vector<12xf32>
    %75 = vector.shape_cast %74 : vector<12xf32> to vector<12x1xf32>
    %76 = tpu.reciprocal %75 {approx = true} : vector<12x1xf32> -> vector<12x1xf32>
    %77 = vector.broadcast %76 : vector<12x1xf32> to vector<12x12xf32>
    %78 = arith.mulf %73, %77 : vector<12x12xf32>
    %79 = arith.truncf %78 : vector<12x12xf32> to vector<12x12xbf16>
    %80 = arith.truncf %63 : vector<12x8xf32> to vector<12x8xbf16>
    %cst_30 = arith.constant dense<0.000000e+00> : vector<12x8xf32>
    %81 = tpu.matmul %79, %80, %cst_30 {dimension_numbers = #tpu.dot_dimension_numbers<[1], [0], [0], [1], [0, 0, 1, 1], [], []>} : vector<12x12xbf16>, vector<12x8xbf16>, vector<12x8xf32> -> vector<12x8xf32>
    %82 = vector.extract_strided_slice %39 {offsets = [0, 16], sizes = [12, 8], strides = [1, 1]} : vector<24x96xf32> to vector<12x8xf32>
    %83 = vector.extract_strided_slice %39 {offsets = [0, 48], sizes = [12, 8], strides = [1, 1]} : vector<24x96xf32> to vector<12x8xf32>
    %84 = vector.extract_strided_slice %39 {offsets = [0, 80], sizes = [12, 8], strides = [1, 1]} : vector<24x96xf32> to vector<12x8xf32>
    %85 = arith.truncf %82 : vector<12x8xf32> to vector<12x8xbf16>
    %86 = arith.truncf %83 : vector<12x8xf32> to vector<12x8xbf16>
    %cst_31 = arith.constant dense<0.000000e+00> : vector<12x12xf32>
    %87 = tpu.matmul %85, %86, %cst_31 {dimension_numbers = #tpu.dot_dimension_numbers<[1], [1], [0], [0], [0, 0, 1, 0], [], []>} : vector<12x8xbf16>, vector<12x8xbf16>, vector<12x12xf32> -> vector<12x12xf32>
    %cst_32 = arith.constant 0.353553385 : f32
    %88 = vector.broadcast %cst_32 : f32 to vector<12x12xf32>
    %89 = arith.mulf %87, %88 : vector<12x12xf32>
    %cst_33 = arith.constant dense<0xFF800000> : vector<12xf32>
    %90 = vector.multi_reduction <maximumf>, %89, %cst_33 [1] : vector<12x12xf32> to vector<12xf32>
    %91 = vector.shape_cast %90 : vector<12xf32> to vector<12x1xf32>
    %92 = vector.broadcast %91 : vector<12x1xf32> to vector<12x12xf32>
    %93 = arith.subf %89, %92 : vector<12x12xf32>
    %94 = math.exp %93 : vector<12x12xf32>
    %cst_34 = arith.constant dense<0.000000e+00> : vector<12xf32>
    %95 = vector.multi_reduction <add>, %94, %cst_34 [1] : vector<12x12xf32> to vector<12xf32>
    %96 = vector.shape_cast %95 : vector<12xf32> to vector<12x1xf32>
    %97 = tpu.reciprocal %96 {approx = true} : vector<12x1xf32> -> vector<12x1xf32>
    %98 = vector.broadcast %97 : vector<12x1xf32> to vector<12x12xf32>
    %99 = arith.mulf %94, %98 : vector<12x12xf32>
    %100 = arith.truncf %99 : vector<12x12xf32> to vector<12x12xbf16>
    %101 = arith.truncf %84 : vector<12x8xf32> to vector<12x8xbf16>
    %cst_35 = arith.constant dense<0.000000e+00> : vector<12x8xf32>
    %102 = tpu.matmul %100, %101, %cst_35 {dimension_numbers = #tpu.dot_dimension_numbers<[1], [0], [0], [1], [0, 0, 1, 1], [], []>} : vector<12x12xbf16>, vector<12x8xbf16>, vector<12x8xf32> -> vector<12x8xf32>
    %103 = vector.extract_strided_slice %39 {offsets = [0, 24], sizes = [12, 8], strides = [1, 1]} : vector<24x96xf32> to vector<12x8xf32>
    %104 = vector.extract_strided_slice %39 {offsets = [0, 56], sizes = [12, 8], strides = [1, 1]} : vector<24x96xf32> to vector<12x8xf32>
    %105 = vector.extract_strided_slice %39 {offsets = [0, 88], sizes = [12, 8], strides = [1, 1]} : vector<24x96xf32> to vector<12x8xf32>
    %106 = arith.truncf %103 : vector<12x8xf32> to vector<12x8xbf16>
    %107 = arith.truncf %104 : vector<12x8xf32> to vector<12x8xbf16>
    %cst_36 = arith.constant dense<0.000000e+00> : vector<12x12xf32>
    %108 = tpu.matmul %106, %107, %cst_36 {dimension_numbers = #tpu.dot_dimension_numbers<[1], [1], [0], [0], [0, 0, 1, 0], [], []>} : vector<12x8xbf16>, vector<12x8xbf16>, vector<12x12xf32> -> vector<12x12xf32>
    %cst_37 = arith.constant 0.353553385 : f32
    %109 = vector.broadcast %cst_37 : f32 to vector<12x12xf32>
    %110 = arith.mulf %108, %109 : vector<12x12xf32>
    %cst_38 = arith.constant dense<0xFF800000> : vector<12xf32>
    %111 = vector.multi_reduction <maximumf>, %110, %cst_38 [1] : vector<12x12xf32> to vector<12xf32>
    %112 = vector.shape_cast %111 : vector<12xf32> to vector<12x1xf32>
    %113 = vector.broadcast %112 : vector<12x1xf32> to vector<12x12xf32>
    %114 = arith.subf %110, %113 : vector<12x12xf32>
    %115 = math.exp %114 : vector<12x12xf32>
    %cst_39 = arith.constant dense<0.000000e+00> : vector<12xf32>
    %116 = vector.multi_reduction <add>, %115, %cst_39 [1] : vector<12x12xf32> to vector<12xf32>
    %117 = vector.shape_cast %116 : vector<12xf32> to vector<12x1xf32>
    %118 = tpu.reciprocal %117 {approx = true} : vector<12x1xf32> -> vector<12x1xf32>
    %119 = vector.broadcast %118 : vector<12x1xf32> to vector<12x12xf32>
    %120 = arith.mulf %115, %119 : vector<12x12xf32>
    %121 = arith.truncf %120 : vector<12x12xf32> to vector<12x12xbf16>
    %122 = arith.truncf %105 : vector<12x8xf32> to vector<12x8xbf16>
    %cst_40 = arith.constant dense<0.000000e+00> : vector<12x8xf32>
    %123 = tpu.matmul %121, %122, %cst_40 {dimension_numbers = #tpu.dot_dimension_numbers<[1], [0], [0], [1], [0, 0, 1, 1], [], []>} : vector<12x12xbf16>, vector<12x8xbf16>, vector<12x8xf32> -> vector<12x8xf32>
    %124 = tpu.concatenate %60, %81, %102, %123 in 1 : vector<12x8xf32>, vector<12x8xf32>, vector<12x8xf32>, vector<12x8xf32> -> vector<12x32xf32>
    %125 = vector.extract_strided_slice %39 {offsets = [12, 0], sizes = [12, 8], strides = [1, 1]} : vector<24x96xf32> to vector<12x8xf32>
    %126 = vector.extract_strided_slice %39 {offsets = [12, 32], sizes = [12, 8], strides = [1, 1]} : vector<24x96xf32> to vector<12x8xf32>
    %127 = vector.extract_strided_slice %39 {offsets = [12, 64], sizes = [12, 8], strides = [1, 1]} : vector<24x96xf32> to vector<12x8xf32>
    %128 = arith.truncf %125 : vector<12x8xf32> to vector<12x8xbf16>
    %129 = arith.truncf %126 : vector<12x8xf32> to vector<12x8xbf16>
    %cst_41 = arith.constant dense<0.000000e+00> : vector<12x12xf32>
    %130 = tpu.matmul %128, %129, %cst_41 {dimension_numbers = #tpu.dot_dimension_numbers<[1], [1], [0], [0], [0, 0, 1, 0], [], []>} : vector<12x8xbf16>, vector<12x8xbf16>, vector<12x12xf32> -> vector<12x12xf32>
    %cst_42 = arith.constant 0.353553385 : f32
    %131 = vector.broadcast %cst_42 : f32 to vector<12x12xf32>
    %132 = arith.mulf %130, %131 : vector<12x12xf32>
    %cst_43 = arith.constant dense<0xFF800000> : vector<12xf32>
    %133 = vector.multi_reduction <maximumf>, %132, %cst_43 [1] : vector<12x12xf32> to vector<12xf32>
    %134 = vector.shape_cast %133 : vector<12xf32> to vector<12x1xf32>
    %135 = vector.broadcast %134 : vector<12x1xf32> to vector<12x12xf32>
    %136 = arith.subf %132, %135 : vector<12x12xf32>
    %137 = math.exp %136 : vector<12x12xf32>
    %cst_44 = arith.constant dense<0.000000e+00> : vector<12xf32>
    %138 = vector.multi_reduction <add>, %137, %cst_44 [1] : vector<12x12xf32> to vector<12xf32>
    %139 = vector.shape_cast %138 : vector<12xf32> to vector<12x1xf32>
    %140 = tpu.reciprocal %139 {approx = true} : vector<12x1xf32> -> vector<12x1xf32>
    %141 = vector.broadcast %140 : vector<12x1xf32> to vector<12x12xf32>
    %142 = arith.mulf %137, %141 : vector<12x12xf32>
    %143 = arith.truncf %142 : vector<12x12xf32> to vector<12x12xbf16>
    %144 = arith.truncf %127 : vector<12x8xf32> to vector<12x8xbf16>
    %cst_45 = arith.constant dense<0.000000e+00> : vector<12x8xf32>
    %145 = tpu.matmul %143, %144, %cst_45 {dimension_numbers = #tpu.dot_dimension_numbers<[1], [0], [0], [1], [0, 0, 1, 1], [], []>} : vector<12x12xbf16>, vector<12x8xbf16>, vector<12x8xf32> -> vector<12x8xf32>
    %146 = vector.extract_strided_slice %39 {offsets = [12, 8], sizes = [12, 8], strides = [1, 1]} : vector<24x96xf32> to vector<12x8xf32>
    %147 = vector.extract_strided_slice %39 {offsets = [12, 40], sizes = [12, 8], strides = [1, 1]} : vector<24x96xf32> to vector<12x8xf32>
    %148 = vector.extract_strided_slice %39 {offsets = [12, 72], sizes = [12, 8], strides = [1, 1]} : vector<24x96xf32> to vector<12x8xf32>
    %149 = arith.truncf %146 : vector<12x8xf32> to vector<12x8xbf16>
    %150 = arith.truncf %147 : vector<12x8xf32> to vector<12x8xbf16>
    %cst_46 = arith.constant dense<0.000000e+00> : vector<12x12xf32>
    %151 = tpu.matmul %149, %150, %cst_46 {dimension_numbers = #tpu.dot_dimension_numbers<[1], [1], [0], [0], [0, 0, 1, 0], [], []>} : vector<12x8xbf16>, vector<12x8xbf16>, vector<12x12xf32> -> vector<12x12xf32>
    %cst_47 = arith.constant 0.353553385 : f32
    %152 = vector.broadcast %cst_47 : f32 to vector<12x12xf32>
    %153 = arith.mulf %151, %152 : vector<12x12xf32>
    %cst_48 = arith.constant dense<0xFF800000> : vector<12xf32>
    %154 = vector.multi_reduction <maximumf>, %153, %cst_48 [1] : vector<12x12xf32> to vector<12xf32>
    %155 = vector.shape_cast %154 : vector<12xf32> to vector<12x1xf32>
    %156 = vector.broadcast %155 : vector<12x1xf32> to vector<12x12xf32>
    %157 = arith.subf %153, %156 : vector<12x12xf32>
    %158 = math.exp %157 : vector<12x12xf32>
    %cst_49 = arith.constant dense<0.000000e+00> : vector<12xf32>
    %159 = vector.multi_reduction <add>, %158, %cst_49 [1] : vector<12x12xf32> to vector<12xf32>
    %160 = vector.shape_cast %159 : vector<12xf32> to vector<12x1xf32>
    %161 = tpu.reciprocal %160 {approx = true} : vector<12x1xf32> -> vector<12x1xf32>
    %162 = vector.broadcast %161 : vector<12x1xf32> to vector<12x12xf32>
    %163 = arith.mulf %158, %162 : vector<12x12xf32>
    %164 = arith.truncf %163 : vector<12x12xf32> to vector<12x12xbf16>
    %165 = arith.truncf %148 : vector<12x8xf32> to vector<12x8xbf16>
    %cst_50 = arith.constant dense<0.000000e+00> : vector<12x8xf32>
    %166 = tpu.matmul %164, %165, %cst_50 {dimension_numbers = #tpu.dot_dimension_numbers<[1], [0], [0], [1], [0, 0, 1, 1], [], []>} : vector<12x12xbf16>, vector<12x8xbf16>, vector<12x8xf32> -> vector<12x8xf32>
    %167 = vector.extract_strided_slice %39 {offsets = [12, 16], sizes = [12, 8], strides = [1, 1]} : vector<24x96xf32> to vector<12x8xf32>
    %168 = vector.extract_strided_slice %39 {offsets = [12, 48], sizes = [12, 8], strides = [1, 1]} : vector<24x96xf32> to vector<12x8xf32>
    %169 = vector.extract_strided_slice %39 {offsets = [12, 80], sizes = [12, 8], strides = [1, 1]} : vector<24x96xf32> to vector<12x8xf32>
    %170 = arith.truncf %167 : vector<12x8xf32> to vector<12x8xbf16>
    %171 = arith.truncf %168 : vector<12x8xf32> to vector<12x8xbf16>
    %cst_51 = arith.constant dense<0.000000e+00> : vector<12x12xf32>
    %172 = tpu.matmul %170, %171, %cst_51 {dimension_numbers = #tpu.dot_dimension_numbers<[1], [1], [0], [0], [0, 0, 1, 0], [], []>} : vector<12x8xbf16>, vector<12x8xbf16>, vector<12x12xf32> -> vector<12x12xf32>
    %cst_52 = arith.constant 0.353553385 : f32
    %173 = vector.broadcast %cst_52 : f32 to vector<12x12xf32>
    %174 = arith.mulf %172, %173 : vector<12x12xf32>
    %cst_53 = arith.constant dense<0xFF800000> : vector<12xf32>
    %175 = vector.multi_reduction <maximumf>, %174, %cst_53 [1] : vector<12x12xf32> to vector<12xf32>
    %176 = vector.shape_cast %175 : vector<12xf32> to vector<12x1xf32>
    %177 = vector.broadcast %176 : vector<12x1xf32> to vector<12x12xf32>
    %178 = arith.subf %174, %177 : vector<12x12xf32>
    %179 = math.exp %178 : vector<12x12xf32>
    %cst_54 = arith.constant dense<0.000000e+00> : vector<12xf32>
    %180 = vector.multi_reduction <add>, %179, %cst_54 [1] : vector<12x12xf32> to vector<12xf32>
    %181 = vector.shape_cast %180 : vector<12xf32> to vector<12x1xf32>
    %182 = tpu.reciprocal %181 {approx = true} : vector<12x1xf32> -> vector<12x1xf32>
    %183 = vector.broadcast %182 : vector<12x1xf32> to vector<12x12xf32>
    %184 = arith.mulf %179, %183 : vector<12x12xf32>
    %185 = arith.truncf %184 : vector<12x12xf32> to vector<12x12xbf16>
    %186 = arith.truncf %169 : vector<12x8xf32> to vector<12x8xbf16>
    %cst_55 = arith.constant dense<0.000000e+00> : vector<12x8xf32>
    %187 = tpu.matmul %185, %186, %cst_55 {dimension_numbers = #tpu.dot_dimension_numbers<[1], [0], [0], [1], [0, 0, 1, 1], [], []>} : vector<12x12xbf16>, vector<12x8xbf16>, vector<12x8xf32> -> vector<12x8xf32>
    %188 = vector.extract_strided_slice %39 {offsets = [12, 24], sizes = [12, 8], strides = [1, 1]} : vector<24x96xf32> to vector<12x8xf32>
    %189 = vector.extract_strided_slice %39 {offsets = [12, 56], sizes = [12, 8], strides = [1, 1]} : vector<24x96xf32> to vector<12x8xf32>
    %190 = vector.extract_strided_slice %39 {offsets = [12, 88], sizes = [12, 8], strides = [1, 1]} : vector<24x96xf32> to vector<12x8xf32>
    %191 = arith.truncf %188 : vector<12x8xf32> to vector<12x8xbf16>
    %192 = arith.truncf %189 : vector<12x8xf32> to vector<12x8xbf16>
    %cst_56 = arith.constant dense<0.000000e+00> : vector<12x12xf32>
    %193 = tpu.matmul %191, %192, %cst_56 {dimension_numbers = #tpu.dot_dimension_numbers<[1], [1], [0], [0], [0, 0, 1, 0], [], []>} : vector<12x8xbf16>, vector<12x8xbf16>, vector<12x12xf32> -> vector<12x12xf32>
    %cst_57 = arith.constant 0.353553385 : f32
    %194 = vector.broadcast %cst_57 : f32 to vector<12x12xf32>
    %195 = arith.mulf %193, %194 : vector<12x12xf32>
    %cst_58 = arith.constant dense<0xFF800000> : vector<12xf32>
    %196 = vector.multi_reduction <maximumf>, %195, %cst_58 [1] : vector<12x12xf32> to vector<12xf32>
    %197 = vector.shape_cast %196 : vector<12xf32> to vector<12x1xf32>
    %198 = vector.broadcast %197 : vector<12x1xf32> to vector<12x12xf32>
    %199 = arith.subf %195, %198 : vector<12x12xf32>
    %200 = math.exp %199 : vector<12x12xf32>
    %cst_59 = arith.constant dense<0.000000e+00> : vector<12xf32>
    %201 = vector.multi_reduction <add>, %200, %cst_59 [1] : vector<12x12xf32> to vector<12xf32>
    %202 = vector.shape_cast %201 : vector<12xf32> to vector<12x1xf32>
    %203 = tpu.reciprocal %202 {approx = true} : vector<12x1xf32> -> vector<12x1xf32>
    %204 = vector.broadcast %203 : vector<12x1xf32> to vector<12x12xf32>
    %205 = arith.mulf %200, %204 : vector<12x12xf32>
    %206 = arith.truncf %205 : vector<12x12xf32> to vector<12x12xbf16>
    %207 = arith.truncf %190 : vector<12x8xf32> to vector<12x8xbf16>
    %cst_60 = arith.constant dense<0.000000e+00> : vector<12x8xf32>
    %208 = tpu.matmul %206, %207, %cst_60 {dimension_numbers = #tpu.dot_dimension_numbers<[1], [0], [0], [1], [0, 0, 1, 1], [], []>} : vector<12x12xbf16>, vector<12x8xbf16>, vector<12x8xf32> -> vector<12x8xf32>
    %209 = tpu.concatenate %145, %166, %187, %208 in 1 : vector<12x8xf32>, vector<12x8xf32>, vector<12x8xf32>, vector<12x8xf32> -> vector<12x32xf32>
    %210 = tpu.concatenate %124, %209 in 0 : vector<12x32xf32>, vector<12x32xf32> -> vector<24x32xf32>
    %211 = arith.truncf %210 : vector<24x32xf32> to vector<24x32xbf16>
    %c0_61 = arith.constant 0 : index
    %c0_62 = arith.constant 0 : index
    %212 = vector.load %arg8[%c0_61, %c0_62] : memref<32x32xbf16, #tpu.memory_space<vmem>>, vector<32x32xbf16>
    %cst_63 = arith.constant dense<0.000000e+00> : vector<24x32xf32>
    %213 = tpu.matmul %211, %212, %cst_63 {dimension_numbers = #tpu.dot_dimension_numbers<[1], [0], [0], [1], [0, 0, 1, 1], [], []>} : vector<24x32xbf16>, vector<32x32xbf16>, vector<24x32xf32> -> vector<24x32xf32>
    %c0_64 = arith.constant 0 : index
    %c0_65 = arith.constant 0 : index
    %214 = vector.load %arg9[%c0_64, %c0_65] : memref<1x32xf32, #tpu.memory_space<vmem>>, vector<1x32xf32>
    %215 = vector.broadcast %214 : vector<1x32xf32> to vector<24x32xf32>
    %216 = arith.addf %213, %215 : vector<24x32xf32>
    %217 = arith.addf %9, %216 : vector<24x32xf32>
    %cst_66 = arith.constant dense<0.000000e+00> : vector<24xf32>
    %218 = vector.multi_reduction <add>, %217, %cst_66 [1] : vector<24x32xf32> to vector<24xf32>
    %219 = vector.shape_cast %218 : vector<24xf32> to vector<24x1xf32>
    %cst_67 = arith.constant 3.200000e+01 : f32
    %220 = vector.broadcast %cst_67 : f32 to vector<24x1xf32>
    %221 = arith.divf %219, %220 : vector<24x1xf32>
    %222 = vector.broadcast %221 : vector<24x1xf32> to vector<24x32xf32>
    %223 = arith.subf %217, %222 : vector<24x32xf32>
    %224 = arith.mulf %223, %223 : vector<24x32xf32>
    %cst_68 = arith.constant dense<0.000000e+00> : vector<24xf32>
    %225 = vector.multi_reduction <add>, %224, %cst_68 [1] : vector<24x32xf32> to vector<24xf32>
    %226 = vector.shape_cast %225 : vector<24xf32> to vector<24x1xf32>
    %cst_69 = arith.constant 3.200000e+01 : f32
    %227 = vector.broadcast %cst_69 : f32 to vector<24x1xf32>
    %228 = arith.divf %226, %227 : vector<24x1xf32>
    %229 = vector.broadcast %221 : vector<24x1xf32> to vector<24x32xf32>
    %230 = arith.subf %217, %229 : vector<24x32xf32>
    %cst_70 = arith.constant 9.99999997E-7 : f32
    %231 = vector.broadcast %cst_70 : f32 to vector<24x1xf32>
    %232 = arith.addf %228, %231 : vector<24x1xf32>
    %233 = math.rsqrt %232 : vector<24x1xf32>
    %234 = vector.broadcast %233 : vector<24x1xf32> to vector<24x32xf32>
    %235 = arith.mulf %230, %234 : vector<24x32xf32>
    %c0_71 = arith.constant 0 : index
    %c0_72 = arith.constant 0 : index
    %236 = vector.load %arg10[%c0_71, %c0_72] : memref<1x32xf32, #tpu.memory_space<vmem>>, vector<1x32xf32>
    %237 = vector.broadcast %236 : vector<1x32xf32> to vector<24x32xf32>
    %238 = arith.mulf %235, %237 : vector<24x32xf32>
    %c0_73 = arith.constant 0 : index
    %c0_74 = arith.constant 0 : index
    %239 = vector.load %arg11[%c0_73, %c0_74] : memref<1x32xf32, #tpu.memory_space<vmem>>, vector<1x32xf32>
    %240 = vector.broadcast %239 : vector<1x32xf32> to vector<24x32xf32>
    %241 = arith.addf %238, %240 : vector<24x32xf32>
    %242 = arith.truncf %241 : vector<24x32xf32> to vector<24x32xbf16>
    %c0_75 = arith.constant 0 : index
    %c0_76 = arith.constant 0 : index
    %243 = vector.load %arg12[%c0_75, %c0_76] : memref<32x64xbf16, #tpu.memory_space<vmem>>, vector<32x64xbf16>
    %cst_77 = arith.constant dense<0.000000e+00> : vector<24x64xf32>
    %244 = tpu.matmul %242, %243, %cst_77 {dimension_numbers = #tpu.dot_dimension_numbers<[1], [0], [0], [1], [0, 0, 1, 1], [], []>} : vector<24x32xbf16>, vector<32x64xbf16>, vector<24x64xf32> -> vector<24x64xf32>
    %c0_78 = arith.constant 0 : index
    %c0_79 = arith.constant 0 : index
    %245 = vector.load %arg13[%c0_78, %c0_79] : memref<1x64xf32, #tpu.memory_space<vmem>>, vector<1x64xf32>
    %246 = vector.broadcast %245 : vector<1x64xf32> to vector<24x64xf32>
    %247 = arith.addf %244, %246 : vector<24x64xf32>
    %248 = arith.mulf %247, %247 : vector<24x64xf32>
    %249 = arith.mulf %247, %248 : vector<24x64xf32>
    %cst_80 = arith.constant 4.471500e-02 : f32
    %250 = vector.broadcast %cst_80 : f32 to vector<24x64xf32>
    %251 = arith.mulf %250, %249 : vector<24x64xf32>
    %252 = arith.addf %247, %251 : vector<24x64xf32>
    %cst_81 = arith.constant 0.797884583 : f32
    %253 = vector.broadcast %cst_81 : f32 to vector<24x64xf32>
    %254 = arith.mulf %253, %252 : vector<24x64xf32>
    %255 = math.tanh %254 : vector<24x64xf32>
    %cst_82 = arith.constant 1.000000e+00 : f32
    %256 = vector.broadcast %cst_82 : f32 to vector<24x64xf32>
    %257 = arith.addf %256, %255 : vector<24x64xf32>
    %cst_83 = arith.constant 5.000000e-01 : f32
    %258 = vector.broadcast %cst_83 : f32 to vector<24x64xf32>
    %259 = arith.mulf %258, %257 : vector<24x64xf32>
    %260 = arith.mulf %247, %259 : vector<24x64xf32>
    %261 = arith.truncf %260 : vector<24x64xf32> to vector<24x64xbf16>
    %c0_84 = arith.constant 0 : index
    %c0_85 = arith.constant 0 : index
    %262 = vector.load %arg14[%c0_84, %c0_85] : memref<64x32xbf16, #tpu.memory_space<vmem>>, vector<64x32xbf16>
    %cst_86 = arith.constant dense<0.000000e+00> : vector<24x32xf32>
    %263 = tpu.matmul %261, %262, %cst_86 {dimension_numbers = #tpu.dot_dimension_numbers<[1], [0], [0], [1], [0, 0, 1, 1], [], []>} : vector<24x64xbf16>, vector<64x32xbf16>, vector<24x32xf32> -> vector<24x32xf32>
    %c0_87 = arith.constant 0 : index
    %c0_88 = arith.constant 0 : index
    %264 = vector.load %arg15[%c0_87, %c0_88] : memref<1x32xf32, #tpu.memory_space<vmem>>, vector<1x32xf32>
    %265 = vector.broadcast %264 : vector<1x32xf32> to vector<24x32xf32>
    %266 = arith.addf %263, %265 : vector<24x32xf32>
    %267 = arith.addf %217, %266 : vector<24x32xf32>
    %cst_89 = arith.constant dense<0.000000e+00> : vector<24xf32>
    %268 = vector.multi_reduction <add>, %267, %cst_89 [1] : vector<24x32xf32> to vector<24xf32>
    %269 = vector.shape_cast %268 : vector<24xf32> to vector<24x1xf32>
    %cst_90 = arith.constant 3.200000e+01 : f32
    %270 = vector.broadcast %cst_90 : f32 to vector<24x1xf32>
    %271 = arith.divf %269, %270 : vector<24x1xf32>
    %272 = vector.broadcast %271 : vector<24x1xf32> to vector<24x32xf32>
    %273 = arith.subf %267, %272 : vector<24x32xf32>
    %274 = arith.mulf %273, %273 : vector<24x32xf32>
    %cst_91 = arith.constant dense<0.000000e+00> : vector<24xf32>
    %275 = vector.multi_reduction <add>, %274, %cst_91 [1] : vector<24x32xf32> to vector<24xf32>
    %276 = vector.shape_cast %275 : vector<24xf32> to vector<24x1xf32>
    %cst_92 = arith.constant 3.200000e+01 : f32
    %277 = vector.broadcast %cst_92 : f32 to vector<24x1xf32>
    %278 = arith.divf %276, %277 : vector<24x1xf32>
    %279 = vector.broadcast %271 : vector<24x1xf32> to vector<24x32xf32>
    %280 = arith.subf %267, %279 : vector<24x32xf32>
    %cst_93 = arith.constant 9.99999997E-7 : f32
    %281 = vector.broadcast %cst_93 : f32 to vector<24x1xf32>
    %282 = arith.addf %278, %281 : vector<24x1xf32>
    %283 = math.rsqrt %282 : vector<24x1xf32>
    %284 = vector.broadcast %283 : vector<24x1xf32> to vector<24x32xf32>
    %285 = arith.mulf %280, %284 : vector<24x32xf32>
    %c0_94 = arith.constant 0 : index
    %c0_95 = arith.constant 0 : index
    %286 = vector.load %arg16[%c0_94, %c0_95] : memref<1x32xf32, #tpu.memory_space<vmem>>, vector<1x32xf32>
    %287 = vector.broadcast %286 : vector<1x32xf32> to vector<24x32xf32>
    %288 = arith.mulf %285, %287 : vector<24x32xf32>
    %c0_96 = arith.constant 0 : index
    %c0_97 = arith.constant 0 : index
    %289 = vector.load %arg17[%c0_96, %c0_97] : memref<1x32xf32, #tpu.memory_space<vmem>>, vector<1x32xf32>
    %290 = vector.broadcast %289 : vector<1x32xf32> to vector<24x32xf32>
    %291 = arith.addf %288, %290 : vector<24x32xf32>
    %292 = arith.truncf %291 : vector<24x32xf32> to vector<24x32xbf16>
    %c0_98 = arith.constant 0 : index
    %c0_99 = arith.constant 0 : index
    %293 = vector.load %arg18[%c0_98, %c0_99] : memref<32x96xbf16, #tpu.memory_space<vmem>>, vector<32x96xbf16>
    %cst_100 = arith.constant dense<0.000000e+00> : vector<24x96xf32>
    %294 = tpu.matmul %292, %293, %cst_100 {dimension_numbers = #tpu.dot_dimension_numbers<[1], [0], [0], [1], [0, 0, 1, 1], [], []>} : vector<24x32xbf16>, vector<32x96xbf16>, vector<24x96xf32> -> vector<24x96xf32>
    %c0_101 = arith.constant 0 : index
    %c0_102 = arith.constant 0 : index
    %295 = vector.load %arg19[%c0_101, %c0_102] : memref<1x96xf32, #tpu.memory_space<vmem>>, vector<1x96xf32>
    %296 = vector.broadcast %295 : vector<1x96xf32> to vector<24x96xf32>
    %297 = arith.addf %294, %296 : vector<24x96xf32>
    %298 = vector.extract_strided_slice %297 {offsets = [0, 0], sizes = [12, 8], strides = [1, 1]} : vector<24x96xf32> to vector<12x8xf32>
    %299 = vector.extract_strided_slice %297 {offsets = [0, 32], sizes = [12, 8], strides = [1, 1]} : vector<24x96xf32> to vector<12x8xf32>
    %300 = vector.extract_strided_slice %297 {offsets = [0, 64], sizes = [12, 8], strides = [1, 1]} : vector<24x96xf32> to vector<12x8xf32>
    %301 = arith.truncf %298 : vector<12x8xf32> to vector<12x8xbf16>
    %302 = arith.truncf %299 : vector<12x8xf32> to vector<12x8xbf16>
    %cst_103 = arith.constant dense<0.000000e+00> : vector<12x12xf32>
    %303 = tpu.matmul %301, %302, %cst_103 {dimension_numbers = #tpu.dot_dimension_numbers<[1], [1], [0], [0], [0, 0, 1, 0], [], []>} : vector<12x8xbf16>, vector<12x8xbf16>, vector<12x12xf32> -> vector<12x12xf32>
    %cst_104 = arith.constant 0.353553385 : f32
    %304 = vector.broadcast %cst_104 : f32 to vector<12x12xf32>
    %305 = arith.mulf %303, %304 : vector<12x12xf32>
    %cst_105 = arith.constant dense<0xFF800000> : vector<12xf32>
    %306 = vector.multi_reduction <maximumf>, %305, %cst_105 [1] : vector<12x12xf32> to vector<12xf32>
    %307 = vector.shape_cast %306 : vector<12xf32> to vector<12x1xf32>
    %308 = vector.broadcast %307 : vector<12x1xf32> to vector<12x12xf32>
    %309 = arith.subf %305, %308 : vector<12x12xf32>
    %310 = math.exp %309 : vector<12x12xf32>
    %cst_106 = arith.constant dense<0.000000e+00> : vector<12xf32>
    %311 = vector.multi_reduction <add>, %310, %cst_106 [1] : vector<12x12xf32> to vector<12xf32>
    %312 = vector.shape_cast %311 : vector<12xf32> to vector<12x1xf32>
    %313 = tpu.reciprocal %312 {approx = true} : vector<12x1xf32> -> vector<12x1xf32>
    %314 = vector.broadcast %313 : vector<12x1xf32> to vector<12x12xf32>
    %315 = arith.mulf %310, %314 : vector<12x12xf32>
    %316 = arith.truncf %315 : vector<12x12xf32> to vector<12x12xbf16>
    %317 = arith.truncf %300 : vector<12x8xf32> to vector<12x8xbf16>
    %cst_107 = arith.constant dense<0.000000e+00> : vector<12x8xf32>
    %318 = tpu.matmul %316, %317, %cst_107 {dimension_numbers = #tpu.dot_dimension_numbers<[1], [0], [0], [1], [0, 0, 1, 1], [], []>} : vector<12x12xbf16>, vector<12x8xbf16>, vector<12x8xf32> -> vector<12x8xf32>
    %319 = vector.extract_strided_slice %297 {offsets = [0, 8], sizes = [12, 8], strides = [1, 1]} : vector<24x96xf32> to vector<12x8xf32>
    %320 = vector.extract_strided_slice %297 {offsets = [0, 40], sizes = [12, 8], strides = [1, 1]} : vector<24x96xf32> to vector<12x8xf32>
    %321 = vector.extract_strided_slice %297 {offsets = [0, 72], sizes = [12, 8], strides = [1, 1]} : vector<24x96xf32> to vector<12x8xf32>
    %322 = arith.truncf %319 : vector<12x8xf32> to vector<12x8xbf16>
    %323 = arith.truncf %320 : vector<12x8xf32> to vector<12x8xbf16>
    %cst_108 = arith.constant dense<0.000000e+00> : vector<12x12xf32>
    %324 = tpu.matmul %322, %323, %cst_108 {dimension_numbers = #tpu.dot_dimension_numbers<[1], [1], [0], [0], [0, 0, 1, 0], [], []>} : vector<12x8xbf16>, vector<12x8xbf16>, vector<12x12xf32> -> vector<12x12xf32>
    %cst_109 = arith.constant 0.353553385 : f32
    %325 = vector.broadcast %cst_109 : f32 to vector<12x12xf32>
    %326 = arith.mulf %324, %325 : vector<12x12xf32>
    %cst_110 = arith.constant dense<0xFF800000> : vector<12xf32>
    %327 = vector.multi_reduction <maximumf>, %326, %cst_110 [1] : vector<12x12xf32> to vector<12xf32>
    %328 = vector.shape_cast %327 : vector<12xf32> to vector<12x1xf32>
    %329 = vector.broadcast %328 : vector<12x1xf32> to vector<12x12xf32>
    %330 = arith.subf %326, %329 : vector<12x12xf32>
    %331 = math.exp %330 : vector<12x12xf32>
    %cst_111 = arith.constant dense<0.000000e+00> : vector<12xf32>
    %332 = vector.multi_reduction <add>, %331, %cst_111 [1] : vector<12x12xf32> to vector<12xf32>
    %333 = vector.shape_cast %332 : vector<12xf32> to vector<12x1xf32>
    %334 = tpu.reciprocal %333 {approx = true} : vector<12x1xf32> -> vector<12x1xf32>
    %335 = vector.broadcast %334 : vector<12x1xf32> to vector<12x12xf32>
    %336 = arith.mulf %331, %335 : vector<12x12xf32>
    %337 = arith.truncf %336 : vector<12x12xf32> to vector<12x12xbf16>
    %338 = arith.truncf %321 : vector<12x8xf32> to vector<12x8xbf16>
    %cst_112 = arith.constant dense<0.000000e+00> : vector<12x8xf32>
    %339 = tpu.matmul %337, %338, %cst_112 {dimension_numbers = #tpu.dot_dimension_numbers<[1], [0], [0], [1], [0, 0, 1, 1], [], []>} : vector<12x12xbf16>, vector<12x8xbf16>, vector<12x8xf32> -> vector<12x8xf32>
    %340 = vector.extract_strided_slice %297 {offsets = [0, 16], sizes = [12, 8], strides = [1, 1]} : vector<24x96xf32> to vector<12x8xf32>
    %341 = vector.extract_strided_slice %297 {offsets = [0, 48], sizes = [12, 8], strides = [1, 1]} : vector<24x96xf32> to vector<12x8xf32>
    %342 = vector.extract_strided_slice %297 {offsets = [0, 80], sizes = [12, 8], strides = [1, 1]} : vector<24x96xf32> to vector<12x8xf32>
    %343 = arith.truncf %340 : vector<12x8xf32> to vector<12x8xbf16>
    %344 = arith.truncf %341 : vector<12x8xf32> to vector<12x8xbf16>
    %cst_113 = arith.constant dense<0.000000e+00> : vector<12x12xf32>
    %345 = tpu.matmul %343, %344, %cst_113 {dimension_numbers = #tpu.dot_dimension_numbers<[1], [1], [0], [0], [0, 0, 1, 0], [], []>} : vector<12x8xbf16>, vector<12x8xbf16>, vector<12x12xf32> -> vector<12x12xf32>
    %cst_114 = arith.constant 0.353553385 : f32
    %346 = vector.broadcast %cst_114 : f32 to vector<12x12xf32>
    %347 = arith.mulf %345, %346 : vector<12x12xf32>
    %cst_115 = arith.constant dense<0xFF800000> : vector<12xf32>
    %348 = vector.multi_reduction <maximumf>, %347, %cst_115 [1] : vector<12x12xf32> to vector<12xf32>
    %349 = vector.shape_cast %348 : vector<12xf32> to vector<12x1xf32>
    %350 = vector.broadcast %349 : vector<12x1xf32> to vector<12x12xf32>
    %351 = arith.subf %347, %350 : vector<12x12xf32>
    %352 = math.exp %351 : vector<12x12xf32>
    %cst_116 = arith.constant dense<0.000000e+00> : vector<12xf32>
    %353 = vector.multi_reduction <add>, %352, %cst_116 [1] : vector<12x12xf32> to vector<12xf32>
    %354 = vector.shape_cast %353 : vector<12xf32> to vector<12x1xf32>
    %355 = tpu.reciprocal %354 {approx = true} : vector<12x1xf32> -> vector<12x1xf32>
    %356 = vector.broadcast %355 : vector<12x1xf32> to vector<12x12xf32>
    %357 = arith.mulf %352, %356 : vector<12x12xf32>
    %358 = arith.truncf %357 : vector<12x12xf32> to vector<12x12xbf16>
    %359 = arith.truncf %342 : vector<12x8xf32> to vector<12x8xbf16>
    %cst_117 = arith.constant dense<0.000000e+00> : vector<12x8xf32>
    %360 = tpu.matmul %358, %359, %cst_117 {dimension_numbers = #tpu.dot_dimension_numbers<[1], [0], [0], [1], [0, 0, 1, 1], [], []>} : vector<12x12xbf16>, vector<12x8xbf16>, vector<12x8xf32> -> vector<12x8xf32>
    %361 = vector.extract_strided_slice %297 {offsets = [0, 24], sizes = [12, 8], strides = [1, 1]} : vector<24x96xf32> to vector<12x8xf32>
    %362 = vector.extract_strided_slice %297 {offsets = [0, 56], sizes = [12, 8], strides = [1, 1]} : vector<24x96xf32> to vector<12x8xf32>
    %363 = vector.extract_strided_slice %297 {offsets = [0, 88], sizes = [12, 8], strides = [1, 1]} : vector<24x96xf32> to vector<12x8xf32>
    %364 = arith.truncf %361 : vector<12x8xf32> to vector<12x8xbf16>
    %365 = arith.truncf %362 : vector<12x8xf32> to vector<12x8xbf16>
    %cst_118 = arith.constant dense<0.000000e+00> : vector<12x12xf32>
    %366 = tpu.matmul %364, %365, %cst_118 {dimension_numbers = #tpu.dot_dimension_numbers<[1], [1], [0], [0], [0, 0, 1, 0], [], []>} : vector<12x8xbf16>, vector<12x8xbf16>, vector<12x12xf32> -> vector<12x12xf32>
    %cst_119 = arith.constant 0.353553385 : f32
    %367 = vector.broadcast %cst_119 : f32 to vector<12x12xf32>
    %368 = arith.mulf %366, %367 : vector<12x12xf32>
    %cst_120 = arith.constant dense<0xFF800000> : vector<12xf32>
    %369 = vector.multi_reduction <maximumf>, %368, %cst_120 [1] : vector<12x12xf32> to vector<12xf32>
    %370 = vector.shape_cast %369 : vector<12xf32> to vector<12x1xf32>
    %371 = vector.broadcast %370 : vector<12x1xf32> to vector<12x12xf32>
    %372 = arith.subf %368, %371 : vector<12x12xf32>
    %373 = math.exp %372 : vector<12x12xf32>
    %cst_121 = arith.constant dense<0.000000e+00> : vector<12xf32>
    %374 = vector.multi_reduction <add>, %373, %cst_121 [1] : vector<12x12xf32> to vector<12xf32>
    %375 = vector.shape_cast %374 : vector<12xf32> to vector<12x1xf32>
    %376 = tpu.reciprocal %375 {approx = true} : vector<12x1xf32> -> vector<12x1xf32>
    %377 = vector.broadcast %376 : vector<12x1xf32> to vector<12x12xf32>
    %378 = arith.mulf %373, %377 : vector<12x12xf32>
    %379 = arith.truncf %378 : vector<12x12xf32> to vector<12x12xbf16>
    %380 = arith.truncf %363 : vector<12x8xf32> to vector<12x8xbf16>
    %cst_122 = arith.constant dense<0.000000e+00> : vector<12x8xf32>
    %381 = tpu.matmul %379, %380, %cst_122 {dimension_numbers = #tpu.dot_dimension_numbers<[1], [0], [0], [1], [0, 0, 1, 1], [], []>} : vector<12x12xbf16>, vector<12x8xbf16>, vector<12x8xf32> -> vector<12x8xf32>
    %382 = tpu.concatenate %318, %339, %360, %381 in 1 : vector<12x8xf32>, vector<12x8xf32>, vector<12x8xf32>, vector<12x8xf32> -> vector<12x32xf32>
    %383 = vector.extract_strided_slice %297 {offsets = [12, 0], sizes = [12, 8], strides = [1, 1]} : vector<24x96xf32> to vector<12x8xf32>
    %384 = vector.extract_strided_slice %297 {offsets = [12, 32], sizes = [12, 8], strides = [1, 1]} : vector<24x96xf32> to vector<12x8xf32>
    %385 = vector.extract_strided_slice %297 {offsets = [12, 64], sizes = [12, 8], strides = [1, 1]} : vector<24x96xf32> to vector<12x8xf32>
    %386 = arith.truncf %383 : vector<12x8xf32> to vector<12x8xbf16>
    %387 = arith.truncf %384 : vector<12x8xf32> to vector<12x8xbf16>
    %cst_123 = arith.constant dense<0.000000e+00> : vector<12x12xf32>
    %388 = tpu.matmul %386, %387, %cst_123 {dimension_numbers = #tpu.dot_dimension_numbers<[1], [1], [0], [0], [0, 0, 1, 0], [], []>} : vector<12x8xbf16>, vector<12x8xbf16>, vector<12x12xf32> -> vector<12x12xf32>
    %cst_124 = arith.constant 0.353553385 : f32
    %389 = vector.broadcast %cst_124 : f32 to vector<12x12xf32>
    %390 = arith.mulf %388, %389 : vector<12x12xf32>
    %cst_125 = arith.constant dense<0xFF800000> : vector<12xf32>
    %391 = vector.multi_reduction <maximumf>, %390, %cst_125 [1] : vector<12x12xf32> to vector<12xf32>
    %392 = vector.shape_cast %391 : vector<12xf32> to vector<12x1xf32>
    %393 = vector.broadcast %392 : vector<12x1xf32> to vector<12x12xf32>
    %394 = arith.subf %390, %393 : vector<12x12xf32>
    %395 = math.exp %394 : vector<12x12xf32>
    %cst_126 = arith.constant dense<0.000000e+00> : vector<12xf32>
    %396 = vector.multi_reduction <add>, %395, %cst_126 [1] : vector<12x12xf32> to vector<12xf32>
    %397 = vector.shape_cast %396 : vector<12xf32> to vector<12x1xf32>
    %398 = tpu.reciprocal %397 {approx = true} : vector<12x1xf32> -> vector<12x1xf32>
    %399 = vector.broadcast %398 : vector<12x1xf32> to vector<12x12xf32>
    %400 = arith.mulf %395, %399 : vector<12x12xf32>
    %401 = arith.truncf %400 : vector<12x12xf32> to vector<12x12xbf16>
    %402 = arith.truncf %385 : vector<12x8xf32> to vector<12x8xbf16>
    %cst_127 = arith.constant dense<0.000000e+00> : vector<12x8xf32>
    %403 = tpu.matmul %401, %402, %cst_127 {dimension_numbers = #tpu.dot_dimension_numbers<[1], [0], [0], [1], [0, 0, 1, 1], [], []>} : vector<12x12xbf16>, vector<12x8xbf16>, vector<12x8xf32> -> vector<12x8xf32>
    %404 = vector.extract_strided_slice %297 {offsets = [12, 8], sizes = [12, 8], strides = [1, 1]} : vector<24x96xf32> to vector<12x8xf32>
    %405 = vector.extract_strided_slice %297 {offsets = [12, 40], sizes = [12, 8], strides = [1, 1]} : vector<24x96xf32> to vector<12x8xf32>
    %406 = vector.extract_strided_slice %297 {offsets = [12, 72], sizes = [12, 8], strides = [1, 1]} : vector<24x96xf32> to vector<12x8xf32>
    %407 = arith.truncf %404 : vector<12x8xf32> to vector<12x8xbf16>
    %408 = arith.truncf %405 : vector<12x8xf32> to vector<12x8xbf16>
    %cst_128 = arith.constant dense<0.000000e+00> : vector<12x12xf32>
    %409 = tpu.matmul %407, %408, %cst_128 {dimension_numbers = #tpu.dot_dimension_numbers<[1], [1], [0], [0], [0, 0, 1, 0], [], []>} : vector<12x8xbf16>, vector<12x8xbf16>, vector<12x12xf32> -> vector<12x12xf32>
    %cst_129 = arith.constant 0.353553385 : f32
    %410 = vector.broadcast %cst_129 : f32 to vector<12x12xf32>
    %411 = arith.mulf %409, %410 : vector<12x12xf32>
    %cst_130 = arith.constant dense<0xFF800000> : vector<12xf32>
    %412 = vector.multi_reduction <maximumf>, %411, %cst_130 [1] : vector<12x12xf32> to vector<12xf32>
    %413 = vector.shape_cast %412 : vector<12xf32> to vector<12x1xf32>
    %414 = vector.broadcast %413 : vector<12x1xf32> to vector<12x12xf32>
    %415 = arith.subf %411, %414 : vector<12x12xf32>
    %416 = math.exp %415 : vector<12x12xf32>
    %cst_131 = arith.constant dense<0.000000e+00> : vector<12xf32>
    %417 = vector.multi_reduction <add>, %416, %cst_131 [1] : vector<12x12xf32> to vector<12xf32>
    %418 = vector.shape_cast %417 : vector<12xf32> to vector<12x1xf32>
    %419 = tpu.reciprocal %418 {approx = true} : vector<12x1xf32> -> vector<12x1xf32>
    %420 = vector.broadcast %419 : vector<12x1xf32> to vector<12x12xf32>
    %421 = arith.mulf %416, %420 : vector<12x12xf32>
    %422 = arith.truncf %421 : vector<12x12xf32> to vector<12x12xbf16>
    %423 = arith.truncf %406 : vector<12x8xf32> to vector<12x8xbf16>
    %cst_132 = arith.constant dense<0.000000e+00> : vector<12x8xf32>
    %424 = tpu.matmul %422, %423, %cst_132 {dimension_numbers = #tpu.dot_dimension_numbers<[1], [0], [0], [1], [0, 0, 1, 1], [], []>} : vector<12x12xbf16>, vector<12x8xbf16>, vector<12x8xf32> -> vector<12x8xf32>
    %425 = vector.extract_strided_slice %297 {offsets = [12, 16], sizes = [12, 8], strides = [1, 1]} : vector<24x96xf32> to vector<12x8xf32>
    %426 = vector.extract_strided_slice %297 {offsets = [12, 48], sizes = [12, 8], strides = [1, 1]} : vector<24x96xf32> to vector<12x8xf32>
    %427 = vector.extract_strided_slice %297 {offsets = [12, 80], sizes = [12, 8], strides = [1, 1]} : vector<24x96xf32> to vector<12x8xf32>
    %428 = arith.truncf %425 : vector<12x8xf32> to vector<12x8xbf16>
    %429 = arith.truncf %426 : vector<12x8xf32> to vector<12x8xbf16>
    %cst_133 = arith.constant dense<0.000000e+00> : vector<12x12xf32>
    %430 = tpu.matmul %428, %429, %cst_133 {dimension_numbers = #tpu.dot_dimension_numbers<[1], [1], [0], [0], [0, 0, 1, 0], [], []>} : vector<12x8xbf16>, vector<12x8xbf16>, vector<12x12xf32> -> vector<12x12xf32>
    %cst_134 = arith.constant 0.353553385 : f32
    %431 = vector.broadcast %cst_134 : f32 to vector<12x12xf32>
    %432 = arith.mulf %430, %431 : vector<12x12xf32>
    %cst_135 = arith.constant dense<0xFF800000> : vector<12xf32>
    %433 = vector.multi_reduction <maximumf>, %432, %cst_135 [1] : vector<12x12xf32> to vector<12xf32>
    %434 = vector.shape_cast %433 : vector<12xf32> to vector<12x1xf32>
    %435 = vector.broadcast %434 : vector<12x1xf32> to vector<12x12xf32>
    %436 = arith.subf %432, %435 : vector<12x12xf32>
    %437 = math.exp %436 : vector<12x12xf32>
    %cst_136 = arith.constant dense<0.000000e+00> : vector<12xf32>
    %438 = vector.multi_reduction <add>, %437, %cst_136 [1] : vector<12x12xf32> to vector<12xf32>
    %439 = vector.shape_cast %438 : vector<12xf32> to vector<12x1xf32>
    %440 = tpu.reciprocal %439 {approx = true} : vector<12x1xf32> -> vector<12x1xf32>
    %441 = vector.broadcast %440 : vector<12x1xf32> to vector<12x12xf32>
    %442 = arith.mulf %437, %441 : vector<12x12xf32>
    %443 = arith.truncf %442 : vector<12x12xf32> to vector<12x12xbf16>
    %444 = arith.truncf %427 : vector<12x8xf32> to vector<12x8xbf16>
    %cst_137 = arith.constant dense<0.000000e+00> : vector<12x8xf32>
    %445 = tpu.matmul %443, %444, %cst_137 {dimension_numbers = #tpu.dot_dimension_numbers<[1], [0], [0], [1], [0, 0, 1, 1], [], []>} : vector<12x12xbf16>, vector<12x8xbf16>, vector<12x8xf32> -> vector<12x8xf32>
    %446 = vector.extract_strided_slice %297 {offsets = [12, 24], sizes = [12, 8], strides = [1, 1]} : vector<24x96xf32> to vector<12x8xf32>
    %447 = vector.extract_strided_slice %297 {offsets = [12, 56], sizes = [12, 8], strides = [1, 1]} : vector<24x96xf32> to vector<12x8xf32>
    %448 = vector.extract_strided_slice %297 {offsets = [12, 88], sizes = [12, 8], strides = [1, 1]} : vector<24x96xf32> to vector<12x8xf32>
    %449 = arith.truncf %446 : vector<12x8xf32> to vector<12x8xbf16>
    %450 = arith.truncf %447 : vector<12x8xf32> to vector<12x8xbf16>
    %cst_138 = arith.constant dense<0.000000e+00> : vector<12x12xf32>
    %451 = tpu.matmul %449, %450, %cst_138 {dimension_numbers = #tpu.dot_dimension_numbers<[1], [1], [0], [0], [0, 0, 1, 0], [], []>} : vector<12x8xbf16>, vector<12x8xbf16>, vector<12x12xf32> -> vector<12x12xf32>
    %cst_139 = arith.constant 0.353553385 : f32
    %452 = vector.broadcast %cst_139 : f32 to vector<12x12xf32>
    %453 = arith.mulf %451, %452 : vector<12x12xf32>
    %cst_140 = arith.constant dense<0xFF800000> : vector<12xf32>
    %454 = vector.multi_reduction <maximumf>, %453, %cst_140 [1] : vector<12x12xf32> to vector<12xf32>
    %455 = vector.shape_cast %454 : vector<12xf32> to vector<12x1xf32>
    %456 = vector.broadcast %455 : vector<12x1xf32> to vector<12x12xf32>
    %457 = arith.subf %453, %456 : vector<12x12xf32>
    %458 = math.exp %457 : vector<12x12xf32>
    %cst_141 = arith.constant dense<0.000000e+00> : vector<12xf32>
    %459 = vector.multi_reduction <add>, %458, %cst_141 [1] : vector<12x12xf32> to vector<12xf32>
    %460 = vector.shape_cast %459 : vector<12xf32> to vector<12x1xf32>
    %461 = tpu.reciprocal %460 {approx = true} : vector<12x1xf32> -> vector<12x1xf32>
    %462 = vector.broadcast %461 : vector<12x1xf32> to vector<12x12xf32>
    %463 = arith.mulf %458, %462 : vector<12x12xf32>
    %464 = arith.truncf %463 : vector<12x12xf32> to vector<12x12xbf16>
    %465 = arith.truncf %448 : vector<12x8xf32> to vector<12x8xbf16>
    %cst_142 = arith.constant dense<0.000000e+00> : vector<12x8xf32>
    %466 = tpu.matmul %464, %465, %cst_142 {dimension_numbers = #tpu.dot_dimension_numbers<[1], [0], [0], [1], [0, 0, 1, 1], [], []>} : vector<12x12xbf16>, vector<12x8xbf16>, vector<12x8xf32> -> vector<12x8xf32>
    %467 = tpu.concatenate %403, %424, %445, %466 in 1 : vector<12x8xf32>, vector<12x8xf32>, vector<12x8xf32>, vector<12x8xf32> -> vector<12x32xf32>
    %468 = tpu.concatenate %382, %467 in 0 : vector<12x32xf32>, vector<12x32xf32> -> vector<24x32xf32>
    %469 = arith.truncf %468 : vector<24x32xf32> to vector<24x32xbf16>
    %c0_143 = arith.constant 0 : index
    %c0_144 = arith.constant 0 : index
    %470 = vector.load %arg20[%c0_143, %c0_144] : memref<32x32xbf16, #tpu.memory_space<vmem>>, vector<32x32xbf16>
    %cst_145 = arith.constant dense<0.000000e+00> : vector<24x32xf32>
    %471 = tpu.matmul %469, %470, %cst_145 {dimension_numbers = #tpu.dot_dimension_numbers<[1], [0], [0], [1], [0, 0, 1, 1], [], []>} : vector<24x32xbf16>, vector<32x32xbf16>, vector<24x32xf32> -> vector<24x32xf32>
    %c0_146 = arith.constant 0 : index
    %c0_147 = arith.constant 0 : index
    %472 = vector.load %arg21[%c0_146, %c0_147] : memref<1x32xf32, #tpu.memory_space<vmem>>, vector<1x32xf32>
    %473 = vector.broadcast %472 : vector<1x32xf32> to vector<24x32xf32>
    %474 = arith.addf %471, %473 : vector<24x32xf32>
    %475 = arith.addf %267, %474 : vector<24x32xf32>
    %cst_148 = arith.constant dense<0.000000e+00> : vector<24xf32>
    %476 = vector.multi_reduction <add>, %475, %cst_148 [1] : vector<24x32xf32> to vector<24xf32>
    %477 = vector.shape_cast %476 : vector<24xf32> to vector<24x1xf32>
    %cst_149 = arith.constant 3.200000e+01 : f32
    %478 = vector.broadcast %cst_149 : f32 to vector<24x1xf32>
    %479 = arith.divf %477, %478 : vector<24x1xf32>
    %480 = vector.broadcast %479 : vector<24x1xf32> to vector<24x32xf32>
    %481 = arith.subf %475, %480 : vector<24x32xf32>
    %482 = arith.mulf %481, %481 : vector<24x32xf32>
    %cst_150 = arith.constant dense<0.000000e+00> : vector<24xf32>
    %483 = vector.multi_reduction <add>, %482, %cst_150 [1] : vector<24x32xf32> to vector<24xf32>
    %484 = vector.shape_cast %483 : vector<24xf32> to vector<24x1xf32>
    %cst_151 = arith.constant 3.200000e+01 : f32
    %485 = vector.broadcast %cst_151 : f32 to vector<24x1xf32>
    %486 = arith.divf %484, %485 : vector<24x1xf32>
    %487 = vector.broadcast %479 : vector<24x1xf32> to vector<24x32xf32>
    %488 = arith.subf %475, %487 : vector<24x32xf32>
    %cst_152 = arith.constant 9.99999997E-7 : f32
    %489 = vector.broadcast %cst_152 : f32 to vector<24x1xf32>
    %490 = arith.addf %486, %489 : vector<24x1xf32>
    %491 = math.rsqrt %490 : vector<24x1xf32>
    %492 = vector.broadcast %491 : vector<24x1xf32> to vector<24x32xf32>
    %493 = arith.mulf %488, %492 : vector<24x32xf32>
    %c0_153 = arith.constant 0 : index
    %c0_154 = arith.constant 0 : index
    %494 = vector.load %arg22[%c0_153, %c0_154] : memref<1x32xf32, #tpu.memory_space<vmem>>, vector<1x32xf32>
    %495 = vector.broadcast %494 : vector<1x32xf32> to vector<24x32xf32>
    %496 = arith.mulf %493, %495 : vector<24x32xf32>
    %c0_155 = arith.constant 0 : index
    %c0_156 = arith.constant 0 : index
    %497 = vector.load %arg23[%c0_155, %c0_156] : memref<1x32xf32, #tpu.memory_space<vmem>>, vector<1x32xf32>
    %498 = vector.broadcast %497 : vector<1x32xf32> to vector<24x32xf32>
    %499 = arith.addf %496, %498 : vector<24x32xf32>
    %500 = arith.truncf %499 : vector<24x32xf32> to vector<24x32xbf16>
    %c0_157 = arith.constant 0 : index
    %c0_158 = arith.constant 0 : index
    %501 = vector.load %arg24[%c0_157, %c0_158] : memref<32x64xbf16, #tpu.memory_space<vmem>>, vector<32x64xbf16>
    %cst_159 = arith.constant dense<0.000000e+00> : vector<24x64xf32>
    %502 = tpu.matmul %500, %501, %cst_159 {dimension_numbers = #tpu.dot_dimension_numbers<[1], [0], [0], [1], [0, 0, 1, 1], [], []>} : vector<24x32xbf16>, vector<32x64xbf16>, vector<24x64xf32> -> vector<24x64xf32>
    %c0_160 = arith.constant 0 : index
    %c0_161 = arith.constant 0 : index
    %503 = vector.load %arg25[%c0_160, %c0_161] : memref<1x64xf32, #tpu.memory_space<vmem>>, vector<1x64xf32>
    %504 = vector.broadcast %503 : vector<1x64xf32> to vector<24x64xf32>
    %505 = arith.addf %502, %504 : vector<24x64xf32>
    %506 = arith.mulf %505, %505 : vector<24x64xf32>
    %507 = arith.mulf %505, %506 : vector<24x64xf32>
    %cst_162 = arith.constant 4.471500e-02 : f32
    %508 = vector.broadcast %cst_162 : f32 to vector<24x64xf32>
    %509 = arith.mulf %508, %507 : vector<24x64xf32>
    %510 = arith.addf %505, %509 : vector<24x64xf32>
    %cst_163 = arith.constant 0.797884583 : f32
    %511 = vector.broadcast %cst_163 : f32 to vector<24x64xf32>
    %512 = arith.mulf %511, %510 : vector<24x64xf32>
    %513 = math.tanh %512 : vector<24x64xf32>
    %cst_164 = arith.constant 1.000000e+00 : f32
    %514 = vector.broadcast %cst_164 : f32 to vector<24x64xf32>
    %515 = arith.addf %514, %513 : vector<24x64xf32>
    %cst_165 = arith.constant 5.000000e-01 : f32
    %516 = vector.broadcast %cst_165 : f32 to vector<24x64xf32>
    %517 = arith.mulf %516, %515 : vector<24x64xf32>
    %518 = arith.mulf %505, %517 : vector<24x64xf32>
    %519 = arith.truncf %518 : vector<24x64xf32> to vector<24x64xbf16>
    %c0_166 = arith.constant 0 : index
    %c0_167 = arith.constant 0 : index
    %520 = vector.load %arg26[%c0_166, %c0_167] : memref<64x32xbf16, #tpu.memory_space<vmem>>, vector<64x32xbf16>
    %cst_168 = arith.constant dense<0.000000e+00> : vector<24x32xf32>
    %521 = tpu.matmul %519, %520, %cst_168 {dimension_numbers = #tpu.dot_dimension_numbers<[1], [0], [0], [1], [0, 0, 1, 1], [], []>} : vector<24x64xbf16>, vector<64x32xbf16>, vector<24x32xf32> -> vector<24x32xf32>
    %c0_169 = arith.constant 0 : index
    %c0_170 = arith.constant 0 : index
    %522 = vector.load %arg27[%c0_169, %c0_170] : memref<1x32xf32, #tpu.memory_space<vmem>>, vector<1x32xf32>
    %523 = vector.broadcast %522 : vector<1x32xf32> to vector<24x32xf32>
    %524 = arith.addf %521, %523 : vector<24x32xf32>
    %525 = arith.addf %475, %524 : vector<24x32xf32>
    %cst_171 = arith.constant dense<0.000000e+00> : vector<24xf32>
    %526 = vector.multi_reduction <add>, %525, %cst_171 [1] : vector<24x32xf32> to vector<24xf32>
    %527 = vector.shape_cast %526 : vector<24xf32> to vector<24x1xf32>
    %cst_172 = arith.constant 3.200000e+01 : f32
    %528 = vector.broadcast %cst_172 : f32 to vector<24x1xf32>
    %529 = arith.divf %527, %528 : vector<24x1xf32>
    %530 = vector.broadcast %529 : vector<24x1xf32> to vector<24x32xf32>
    %531 = arith.subf %525, %530 : vector<24x32xf32>
    %532 = arith.mulf %531, %531 : vector<24x32xf32>
    %cst_173 = arith.constant dense<0.000000e+00> : vector<24xf32>
    %533 = vector.multi_reduction <add>, %532, %cst_173 [1] : vector<24x32xf32> to vector<24xf32>
    %534 = vector.shape_cast %533 : vector<24xf32> to vector<24x1xf32>
    %cst_174 = arith.constant 3.200000e+01 : f32
    %535 = vector.broadcast %cst_174 : f32 to vector<24x1xf32>
    %536 = arith.divf %534, %535 : vector<24x1xf32>
    %537 = vector.broadcast %529 : vector<24x1xf32> to vector<24x32xf32>
    %538 = arith.subf %525, %537 : vector<24x32xf32>
    %cst_175 = arith.constant 9.99999997E-7 : f32
    %539 = vector.broadcast %cst_175 : f32 to vector<24x1xf32>
    %540 = arith.addf %536, %539 : vector<24x1xf32>
    %541 = math.rsqrt %540 : vector<24x1xf32>
    %542 = vector.broadcast %541 : vector<24x1xf32> to vector<24x32xf32>
    %543 = arith.mulf %538, %542 : vector<24x32xf32>
    %c0_176 = arith.constant 0 : index
    %c0_177 = arith.constant 0 : index
    %544 = vector.load %arg28[%c0_176, %c0_177] : memref<1x32xf32, #tpu.memory_space<vmem>>, vector<1x32xf32>
    %545 = vector.broadcast %544 : vector<1x32xf32> to vector<24x32xf32>
    %546 = arith.mulf %543, %545 : vector<24x32xf32>
    %c0_178 = arith.constant 0 : index
    %c0_179 = arith.constant 0 : index
    %547 = vector.load %arg29[%c0_178, %c0_179] : memref<1x32xf32, #tpu.memory_space<vmem>>, vector<1x32xf32>
    %548 = vector.broadcast %547 : vector<1x32xf32> to vector<24x32xf32>
    %549 = arith.addf %546, %548 : vector<24x32xf32>
    %c0_180 = arith.constant 0 : index
    %c0_181 = arith.constant 0 : index
    %550 = vector.load %arg30[%c0_180, %c0_181] : memref<24x32xf32, #tpu.memory_space<vmem>>, vector<24x32xf32>
    tpu.vector_store %arg30[%c0_180, %c0_181], %549 {strides = array<i32>} : memref<24x32xf32, #tpu.memory_space<vmem>>, vector<24x32xf32>,
    return
  }
}

module attributes {stable_mosaic.version = 11 : i64} {
  func.func @_head_kernel(%arg0: memref<2x384xf32, #tpu.memory_space<vmem>>, %arg1: memref<2x1xf32, #tpu.memory_space<vmem>>, %arg2: memref<385x512xbf16, #tpu.memory_space<vmem>>, %arg3: memref<1x512xf32, #tpu.memory_space<vmem>>, %arg4: memref<512x256xbf16, #tpu.memory_space<vmem>>, %arg5: memref<1x256xf32, #tpu.memory_space<vmem>>, %arg6: memref<256x15xbf16, #tpu.memory_space<vmem>>, %arg7: memref<1x15xf32, #tpu.memory_space<vmem>>, %arg8: memref<2x15xf32, #tpu.memory_space<vmem>>) attributes {dimension_semantics = [], scalar_prefetch = 0 : i64, scratch_operands = 0 : i64, tpu.core_type = #tpu.core_type<tc>} {
    %c0 = arith.constant 0 : index
    %c0_0 = arith.constant 0 : index
    %0 = vector.load %arg0[%c0, %c0_0] : memref<2x384xf32, #tpu.memory_space<vmem>>, vector<2x384xf32>
    %c0_1 = arith.constant 0 : index
    %c0_2 = arith.constant 0 : index
    %1 = vector.load %arg1[%c0_1, %c0_2] : memref<2x1xf32, #tpu.memory_space<vmem>>, vector<2x1xf32>
    %2 = tpu.concatenate %0, %1 in 1 : vector<2x384xf32>, vector<2x1xf32> -> vector<2x385xf32>
    %3 = arith.truncf %2 : vector<2x385xf32> to vector<2x385xbf16>
    %c0_3 = arith.constant 0 : index
    %c0_4 = arith.constant 0 : index
    %4 = vector.load %arg2[%c0_3, %c0_4] : memref<385x512xbf16, #tpu.memory_space<vmem>>, vector<385x512xbf16>
    %cst = arith.constant dense<0.000000e+00> : vector<2x512xf32>
    %5 = tpu.matmul %3, %4, %cst {dimension_numbers = #tpu.dot_dimension_numbers<[1], [0], [0], [1], [0, 0, 1, 1], [], []>} : vector<2x385xbf16>, vector<385x512xbf16>, vector<2x512xf32> -> vector<2x512xf32>
    %c0_5 = arith.constant 0 : index
    %c0_6 = arith.constant 0 : index
    %6 = vector.load %arg3[%c0_5, %c0_6] : memref<1x512xf32, #tpu.memory_space<vmem>>, vector<1x512xf32>
    %7 = vector.broadcast %6 : vector<1x512xf32> to vector<2x512xf32>
    %8 = arith.addf %5, %7 : vector<2x512xf32>
    %cst_7 = arith.constant 0.000000e+00 : f32
    %9 = vector.broadcast %cst_7 : f32 to vector<2x512xf32>
    %10 = arith.maximumf %8, %9 : vector<2x512xf32>
    %11 = arith.truncf %10 : vector<2x512xf32> to vector<2x512xbf16>
    %c0_8 = arith.constant 0 : index
    %c0_9 = arith.constant 0 : index
    %12 = vector.load %arg4[%c0_8, %c0_9] : memref<512x256xbf16, #tpu.memory_space<vmem>>, vector<512x256xbf16>
    %cst_10 = arith.constant dense<0.000000e+00> : vector<2x256xf32>
    %13 = tpu.matmul %11, %12, %cst_10 {dimension_numbers = #tpu.dot_dimension_numbers<[1], [0], [0], [1], [0, 0, 1, 1], [], []>} : vector<2x512xbf16>, vector<512x256xbf16>, vector<2x256xf32> -> vector<2x256xf32>
    %c0_11 = arith.constant 0 : index
    %c0_12 = arith.constant 0 : index
    %14 = vector.load %arg5[%c0_11, %c0_12] : memref<1x256xf32, #tpu.memory_space<vmem>>, vector<1x256xf32>
    %15 = vector.broadcast %14 : vector<1x256xf32> to vector<2x256xf32>
    %16 = arith.addf %13, %15 : vector<2x256xf32>
    %cst_13 = arith.constant 0.000000e+00 : f32
    %17 = vector.broadcast %cst_13 : f32 to vector<2x256xf32>
    %18 = arith.maximumf %16, %17 : vector<2x256xf32>
    %19 = arith.truncf %18 : vector<2x256xf32> to vector<2x256xbf16>
    %c0_14 = arith.constant 0 : index
    %c0_15 = arith.constant 0 : index
    %20 = vector.load %arg6[%c0_14, %c0_15] : memref<256x15xbf16, #tpu.memory_space<vmem>>, vector<256x15xbf16>
    %cst_16 = arith.constant dense<0.000000e+00> : vector<2x15xf32>
    %21 = tpu.matmul %19, %20, %cst_16 {dimension_numbers = #tpu.dot_dimension_numbers<[1], [0], [0], [1], [0, 0, 1, 1], [], []>} : vector<2x256xbf16>, vector<256x15xbf16>, vector<2x15xf32> -> vector<2x15xf32>
    %c0_17 = arith.constant 0 : index
    %c0_18 = arith.constant 0 : index
    %22 = vector.load %arg7[%c0_17, %c0_18] : memref<1x15xf32, #tpu.memory_space<vmem>>, vector<1x15xf32>
    %23 = vector.broadcast %22 : vector<1x15xf32> to vector<2x15xf32>
    %24 = arith.addf %21, %23 : vector<2x15xf32>
    %c0_19 = arith.constant 0 : index
    %c0_20 = arith.constant 0 : index
    %25 = vector.load %arg8[%c0_19, %c0_20] : memref<2x15xf32, #tpu.memory_space<vmem>>, vector<2x15xf32>
    tpu.vector_store %arg8[%c0_19, %c0_20], %24 {strides = array<i32>} : memref<2x15xf32, #tpu.memory_space<vmem>>, vector<2x15xf32>,
    return
  }
}

</mosaic_0001>

<llo_original>
// kernel: measure_vit_forward.3
$region0: #{measure_vit_forward.3}
  #allocation0 [shape = 'u32[]', space=smem, size = 0x4, offset = 0x4, fixed_abs, tag = 'smem constant byte address 0x4 - core index']
  #allocation1 [shape = 'u32[144,128]{1,0:T(1,128)}', space=vmem, size = 0x12000, scoped, tag = 'internal scratch']
  %s0 = inlined_call_operand.vmem [shape: f32[2,384], index: 0, kind: input, shape index: {}]
  %s1 = inlined_call_operand.vmem [shape: f32[2,1], index: 1, kind: input, shape index: {}]
  %s2 = inlined_call_operand.vmem [shape: bf16[385,512], index: 2, kind: input, shape index: {}]
  %s3 = inlined_call_operand.vmem [shape: f32[1,512], index: 3, kind: input, shape index: {}]
  %s4 = inlined_call_operand.vmem [shape: bf16[512,256], index: 4, kind: input, shape index: {}]
  %s5 = inlined_call_operand.vmem [shape: f32[1,256], index: 5, kind: input, shape index: {}]
  %s6 = inlined_call_operand.vmem [shape: bf16[256,15], index: 6, kind: input, shape index: {}]
  %s7 = inlined_call_operand.vmem [shape: f32[1,15], index: 7, kind: input, shape index: {}]
  %s8 = inlined_call_operand.hbm [shape: f32[2,15], index: 8, kind: output, shape index: {}]
  %s9 = sld [smem:[#allocation0]]
  $region42: #{measure_vit_forward.3} parent=0
    _
  %s11 = ssub.s32 1, %s9
  %s12 = scalar_select 0, %s11, %s9
  $region1: #{measure_vit_forward.3} parent=0
    #allocation2 [shape = 'u8[1024]{0}', space=vmem, size = 0x400, scoped, tag = 'output window, operand 0, single buffered']
    #allocation3 [shape = 's32[1]{0}', space=sflag, size = 0x4, scoped, tag = 'scoped memory for measure_vit_forward.3']
    %13 = vsyncpa [#allocation3], 0
    // Predicated region
    $region2: #{measure_vit_forward.3} parent=1 // pred_check
      _
    $region3: #{measure_vit_forward.3} parent=1 // pred_check_branch
      %15 = sbr.rel (0) target = $region5
    $region4: #{measure_vit_forward.3} parent=1 // pred_region
      _
    $region5: #{measure_vit_forward.3} parent=1 // pred_fallthru
      _
    // Predicated region
    $region6: #{measure_vit_forward.3} parent=1 // pred_check
      _
    $region7: #{measure_vit_forward.3} parent=1 // pred_check_branch
      %17 = sbr.rel (0) target = $region9
    $region8: #{measure_vit_forward.3} parent=1 // pred_region
      _
    $region9: #{measure_vit_forward.3} parent=1 // pred_fallthru
      _
    // Predicated region
    $region10: #{measure_vit_forward.3} parent=1 // pred_check
      _
    $region11: #{measure_vit_forward.3} parent=1 // pred_check_branch
      %19 = sbr.rel (0) target = $region13
    $region12: #{measure_vit_forward.3} parent=1 // pred_region
      _
    $region13: #{measure_vit_forward.3} parent=1 // pred_fallthru
      _
    // Predicated region
    $region14: #{measure_vit_forward.3} parent=1 // pred_check
      _
    $region15: #{measure_vit_forward.3} parent=1 // pred_check_branch
      %21 = sbr.rel (0) target = $region17
    $region16: #{measure_vit_forward.3} parent=1 // pred_region
      _
    $region17: #{measure_vit_forward.3} parent=1 // pred_fallthru
      _
    // Predicated region
    $region18: #{measure_vit_forward.3} parent=1 // pred_check
      _
    $region19: #{measure_vit_forward.3} parent=1 // pred_check_branch
      %23 = sbr.rel (0) target = $region21
    $region20: #{measure_vit_forward.3} parent=1 // pred_region
      _
    $region21: #{measure_vit_forward.3} parent=1 // pred_fallthru
      _
    // Predicated region
    $region22: #{measure_vit_forward.3} parent=1 // pred_check
      _
    $region23: #{measure_vit_forward.3} parent=1 // pred_check_branch
      %25 = sbr.rel (0) target = $region25
    $region24: #{measure_vit_forward.3} parent=1 // pred_region
      _
    $region25: #{measure_vit_forward.3} parent=1 // pred_fallthru
      _
    // Predicated region
    $region26: #{measure_vit_forward.3} parent=1 // pred_check
      _
    $region27: #{measure_vit_forward.3} parent=1 // pred_check_branch
      %27 = sbr.rel (0) target = $region29
    $region28: #{measure_vit_forward.3} parent=1 // pred_region
      _
    $region29: #{measure_vit_forward.3} parent=1 // pred_fallthru
      _
    // Predicated region
    $region30: #{measure_vit_forward.3} parent=1 // pred_check
      _
    $region31: #{measure_vit_forward.3} parent=1 // pred_check_branch
      %29 = sbr.rel (0) target = $region33
    $region32: #{measure_vit_forward.3} parent=1 // pred_region
      _
    $region33: #{measure_vit_forward.3} parent=1 // pred_fallthru
      _
    %v31 = vld [vmem:[%s0] sm:$0x3f]
    %v32 = vld [vmem:[%s1] sm:$0x3]
    %v34 = vcombine.high %v31, %v31
    %v36 = vunpack.c.l.s4 1983009808
    %v37 = vunpack.c.0.s8 %v36
    %v38 = vlaneseq
    %v39 = vshrl.u32 %v38, 7
    %v40 = vsub.s32 %v37, %v39
    %v41 = vrot.slane %v31, %v40
    %v43 = vunpack.c.l.s4 1983009808
    %v44 = vunpack.c.0.s8 %v43
    %v45 = vlaneseq
    %v46 = vshrl.u32 %v45, 7
    %v47 = vsub.s32 %v44, %v46
    %v48 = vrot.slane %v34, %v47
    %v49 = vcombine.high %v41, %v41
    %v53 = vpack.c.bf16 %v41, %v41
    %v54 = vpack.c.bf16 %v49, %v49
    %v55 = vpack.c.bf16 %v48, %v48
    %v56 = vpack.c.bf16 %v32, %v32
    %v57 = vld [vmem:[%s2] sm:$0xff]
    %v58 = vld [vmem:[%s2 + $0x8] sm:$0xff]
    %v59 = vld [vmem:[%s2 + $0x10] sm:$0xff]
    %v60 = vld [vmem:[%s2 + $0x18] sm:$0xff]
    %v61 = vld [vmem:[%s2 + $0x20] sm:$0xff]
    %v62 = vld [vmem:[%s2 + $0x28] sm:$0xff]
    %v63 = vld [vmem:[%s2 + $0x30] sm:$0xff]
    %v64 = vld [vmem:[%s2 + $0x38] sm:$0xff]
    %v65 = vld [vmem:[%s2 + $0x40] sm:$0xff]
    %v66 = vld [vmem:[%s2 + $0x48] sm:$0xff]
    %v67 = vld [vmem:[%s2 + $0x50] sm:$0xff]
    %v68 = vld [vmem:[%s2 + $0x58] sm:$0xff]
    %v69 = vld [vmem:[%s2 + $0x60] sm:$0xff]
    %v70 = vld [vmem:[%s2 + $0x68] sm:$0xff]
    %v71 = vld [vmem:[%s2 + $0x70] sm:$0xff]
    %v72 = vld [vmem:[%s2 + $0x78] sm:$0xff]
    %v73 = vld [vmem:[%s2 + $0x80] sm:$0xff]
    %v74 = vld [vmem:[%s2 + $0x88] sm:$0xff]
    %v75 = vld [vmem:[%s2 + $0x90] sm:$0xff]
    %v76 = vld [vmem:[%s2 + $0x98] sm:$0xff]
    %v77 = vld [vmem:[%s2 + $0xa0] sm:$0xff]
    %v78 = vld [vmem:[%s2 + $0xa8] sm:$0xff]
    %v79 = vld [vmem:[%s2 + $0xb0] sm:$0xff]
    %v80 = vld [vmem:[%s2 + $0xb8] sm:$0xff]
    %v81 = vld [vmem:[%s2 + $0xc0] sm:$0xff]
    %v82 = vld [vmem:[%s2 + $0xc8] sm:$0xff]
    %v83 = vld [vmem:[%s2 + $0xd0] sm:$0xff]
    %v84 = vld [vmem:[%s2 + $0xd8] sm:$0xff]
    %v85 = vld [vmem:[%s2 + $0xe0] sm:$0xff]
    %v86 = vld [vmem:[%s2 + $0xe8] sm:$0xff]
    %v87 = vld [vmem:[%s2 + $0xf0] sm:$0xff]
    %v88 = vld [vmem:[%s2 + $0xf8] sm:$0xff]
    %v89 = vld [vmem:[%s2 + $0x100] sm:$0xff]
    %v90 = vld [vmem:[%s2 + $0x108] sm:$0xff]
    %v91 = vld [vmem:[%s2 + $0x110] sm:$0xff]
    %v92 = vld [vmem:[%s2 + $0x118] sm:$0xff]
    %v93 = vld [vmem:[%s2 + $0x120] sm:$0xff]
    %v94 = vld [vmem:[%s2 + $0x128] sm:$0xff]
    %v95 = vld [vmem:[%s2 + $0x130] sm:$0xff]
    %v96 = vld [vmem:[%s2 + $0x138] sm:$0xff]
    %v97 = vld [vmem:[%s2 + $0x140] sm:$0xff]
    %v98 = vld [vmem:[%s2 + $0x148] sm:$0xff]
    %v99 = vld [vmem:[%s2 + $0x150] sm:$0xff]
    %v100 = vld [vmem:[%s2 + $0x158] sm:$0xff]
    %v101 = vld [vmem:[%s2 + $0x160] sm:$0xff]
    %v102 = vld [vmem:[%s2 + $0x168] sm:$0xff]
    %v103 = vld [vmem:[%s2 + $0x170] sm:$0xff]
    %v104 = vld [vmem:[%s2 + $0x178] sm:$0xff]
    %v105 = vld [vmem:[%s2 + $0x180] sm:$0xff]
    %v106 = vld [vmem:[%s2 + $0x188] sm:$0xff]
    %v107 = vld [vmem:[%s2 + $0x190] sm:$0xff]
    %v108 = vld [vmem:[%s2 + $0x198] sm:$0xff]
    %v109 = vld [vmem:[%s2 + $0x1a0] sm:$0xff]
    %v110 = vld [vmem:[%s2 + $0x1a8] sm:$0xff]
    %v111 = vld [vmem:[%s2 + $0x1b0] sm:$0xff]
    %v112 = vld [vmem:[%s2 + $0x1b8] sm:$0xff]
    %v113 = vld [vmem:[%s2 + $0x1c0] sm:$0xff]
    %v114 = vld [vmem:[%s2 + $0x1c8] sm:$0xff]
    %v115 = vld [vmem:[%s2 + $0x1d0] sm:$0xff]
    %v116 = vld [vmem:[%s2 + $0x1d8] sm:$0xff]
    %v117 = vld [vmem:[%s2 + $0x1e0] sm:$0xff]
    %v118 = vld [vmem:[%s2 + $0x1e8] sm:$0xff]
    %v119 = vld [vmem:[%s2 + $0x1f0] sm:$0xff]
    %v120 = vld [vmem:[%s2 + $0x1f8] sm:$0xff]
    %v121 = vld [vmem:[%s2 + $0x200] sm:$0xff]
    %v122 = vld [vmem:[%s2 + $0x208] sm:$0xff]
    %v123 = vld [vmem:[%s2 + $0x210] sm:$0xff]
    %v124 = vld [vmem:[%s2 + $0x218] sm:$0xff]
    %v125 = vld [vmem:[%s2 + $0x220] sm:$0xff]
    %v126 = vld [vmem:[%s2 + $0x228] sm:$0xff]
    %v127 = vld [vmem:[%s2 + $0x230] sm:$0xff]
    %v128 = vld [vmem:[%s2 + $0x238] sm:$0xff]
    %v129 = vld [vmem:[%s2 + $0x240] sm:$0xff]
    %v130 = vld [vmem:[%s2 + $0x248] sm:$0xff]
    %v131 = vld [vmem:[%s2 + $0x250] sm:$0xff]
    %v132 = vld [vmem:[%s2 + $0x258] sm:$0xff]
    %v133 = vld [vmem:[%s2 + $0x260] sm:$0xff]
    %v134 = vld [vmem:[%s2 + $0x268] sm:$0xff]
    %v135 = vld [vmem:[%s2 + $0x270] sm:$0xff]
    %v136 = vld [vmem:[%s2 + $0x278] sm:$0xff]
    %v137 = vld [vmem:[%s2 + $0x280] sm:$0xff]
    %v138 = vld [vmem:[%s2 + $0x288] sm:$0xff]
    %v139 = vld [vmem:[%s2 + $0x290] sm:$0xff]
    %v140 = vld [vmem:[%s2 + $0x298] sm:$0xff]
    %v141 = vld [vmem:[%s2 + $0x2a0] sm:$0xff]
    %v142 = vld [vmem:[%s2 + $0x2a8] sm:$0xff]
    %v143 = vld [vmem:[%s2 + $0x2b0] sm:$0xff]
    %v144 = vld [vmem:[%s2 + $0x2b8] sm:$0xff]
    %v145 = vld [vmem:[%s2 + $0x2c0] sm:$0xff]
    %v146 = vld [vmem:[%s2 + $0x2c8] sm:$0xff]
    %v147 = vld [vmem:[%s2 + $0x2d0] sm:$0xff]
    %v148 = vld [vmem:[%s2 + $0x2d8] sm:$0xff]
    %v149 = vld [vmem:[%s2 + $0x2e0] sm:$0xff]
    %v150 = vld [vmem:[%s2 + $0x2e8] sm:$0xff]
    %v151 = vld [vmem:[%s2 + $0x2f0] sm:$0xff]
    %v152 = vld [vmem:[%s2 + $0x2f8] sm:$0xff]
    %v153 = vld [vmem:[%s2 + $0x300] sm:$0x11]
    %v154 = vld [vmem:[%s2 + $0x308] sm:$0x11]
    %v155 = vld [vmem:[%s3] sm:$0xf]
    %v157 = vlaneseq
    %v158 = vshrl.u32 %v157, 7
    %v159 = vsub.s32 0, %v158
    %v160 = vrot.slane %v155, %v159
    %v161 = vlaneseq
    %v162 = vshrl.u32 %v161, 7
    %v163 = vsub.s32 1, %v162
    %v164 = vrot.slane %v155, %v163
    %v165 = vlaneseq
    %v166 = vshrl.u32 %v165, 7
    %v167 = vsub.s32 2, %v166
    %v168 = vrot.slane %v155, %v167
    %v169 = vlaneseq
    %v170 = vshrl.u32 %v169, 7
    %v171 = vsub.s32 3, %v170
    %v172 = vrot.slane %v155, %v171
    %v275 = vunpack.c.l.b16 %v57
    %v276 = vunpack.c.h.b16 %v57
    %v277 = vunpack.c.l.b16 %v58
    %v278 = vunpack.c.h.b16 %v58
    %v279 = vunpack.c.l.b16 %v59
    %v280 = vunpack.c.h.b16 %v59
    %v281 = vunpack.c.l.b16 %v60
    %v282 = vunpack.c.h.b16 %v60
    %v283 = vunpack.c.l.b16 %v61
    %v284 = vunpack.c.h.b16 %v61
    %v285 = vunpack.c.l.b16 %v62
    %v286 = vunpack.c.h.b16 %v62
    %v287 = vunpack.c.l.b16 %v63
    %v288 = vunpack.c.h.b16 %v63
    %v289 = vunpack.c.l.b16 %v64
    %v290 = vunpack.c.h.b16 %v64
    %v291 = vunpack.c.l.b16 %v65
    %v292 = vunpack.c.h.b16 %v65
    %v293 = vunpack.c.l.b16 %v66
    %v294 = vunpack.c.h.b16 %v66
    %v295 = vunpack.c.l.b16 %v67
    %v296 = vunpack.c.h.b16 %v67
    %v297 = vunpack.c.l.b16 %v68
    %v298 = vunpack.c.h.b16 %v68
    %v299 = vunpack.c.l.b16 %v69
    %v300 = vunpack.c.h.b16 %v69
    %v301 = vunpack.c.l.b16 %v70
    %v302 = vunpack.c.h.b16 %v70
    %v303 = vunpack.c.l.b16 %v71
    %v304 = vunpack.c.h.b16 %v71
    %v305 = vunpack.c.l.b16 %v72
    %v306 = vunpack.c.h.b16 %v72
    %v307 = vunpack.c.l.b16 %v73
    %v308 = vunpack.c.h.b16 %v73
    %v309 = vunpack.c.l.b16 %v74
    %v310 = vunpack.c.h.b16 %v74
    %v311 = vunpack.c.l.b16 %v75
    %v312 = vunpack.c.h.b16 %v75
    %v313 = vunpack.c.l.b16 %v76
    %v314 = vunpack.c.h.b16 %v76
    %v315 = vunpack.c.l.b16 %v77
    %v316 = vunpack.c.h.b16 %v77
    %v317 = vunpack.c.l.b16 %v78
    %v318 = vunpack.c.h.b16 %v78
    %v319 = vunpack.c.l.b16 %v79
    %v320 = vunpack.c.h.b16 %v79
    %v321 = vunpack.c.l.b16 %v80
    %v322 = vunpack.c.h.b16 %v80
    %v323 = vunpack.c.l.b16 %v81
    %v324 = vunpack.c.h.b16 %v81
    %v325 = vunpack.c.l.b16 %v82
    %v326 = vunpack.c.h.b16 %v82
    %v327 = vunpack.c.l.b16 %v83
    %v328 = vunpack.c.h.b16 %v83
    %v329 = vunpack.c.l.b16 %v84
    %v330 = vunpack.c.h.b16 %v84
    %v331 = vunpack.c.l.b16 %v85
    %v332 = vunpack.c.h.b16 %v85
    %v333 = vunpack.c.l.b16 %v86
    %v334 = vunpack.c.h.b16 %v86
    %v335 = vunpack.c.l.b16 %v87
    %v336 = vunpack.c.h.b16 %v87
    %v337 = vunpack.c.l.b16 %v88
    %v338 = vunpack.c.h.b16 %v88
    %v339 = vunpack.c.l.b16 %v89
    %v340 = vunpack.c.h.b16 %v89
    %v341 = vunpack.c.l.b16 %v90
    %v342 = vunpack.c.h.b16 %v90
    %v343 = vunpack.c.l.b16 %v91
    %v344 = vunpack.c.h.b16 %v91
    %v345 = vunpack.c.l.b16 %v92
    %v346 = vunpack.c.h.b16 %v92
    %v347 = vunpack.c.l.b16 %v93
    %v348 = vunpack.c.h.b16 %v93
    %v349 = vunpack.c.l.b16 %v94
    %v350 = vunpack.c.h.b16 %v94
    %v351 = vunpack.c.l.b16 %v95
    %v352 = vunpack.c.h.b16 %v95
    %v353 = vunpack.c.l.b16 %v96
    %v354 = vunpack.c.h.b16 %v96
    %v355 = vunpack.c.l.b16 %v97
    %v356 = vunpack.c.h.b16 %v97
    %v357 = vunpack.c.l.b16 %v98
    %v358 = vunpack.c.h.b16 %v98
    %v359 = vunpack.c.l.b16 %v99
    %v360 = vunpack.c.h.b16 %v99
    %v361 = vunpack.c.l.b16 %v100
    %v362 = vunpack.c.h.b16 %v100
    %v363 = vunpack.c.l.b16 %v101
    %v364 = vunpack.c.h.b16 %v101
    %v365 = vunpack.c.l.b16 %v102
    %v366 = vunpack.c.h.b16 %v102
    %v367 = vunpack.c.l.b16 %v103
    %v368 = vunpack.c.h.b16 %v103
    %v369 = vunpack.c.l.b16 %v104
    %v370 = vunpack.c.h.b16 %v104
    %v371 = vunpack.c.l.b16 %v105
    %v372 = vunpack.c.h.b16 %v105
    %v373 = vunpack.c.l.b16 %v106
    %v374 = vunpack.c.h.b16 %v106
    %v375 = vunpack.c.l.b16 %v107
    %v376 = vunpack.c.h.b16 %v107
    %v377 = vunpack.c.l.b16 %v108
    %v378 = vunpack.c.h.b16 %v108
    %v379 = vunpack.c.l.b16 %v109
    %v380 = vunpack.c.h.b16 %v109
    %v381 = vunpack.c.l.b16 %v110
    %v382 = vunpack.c.h.b16 %v110
    %v383 = vunpack.c.l.b16 %v111
    %v384 = vunpack.c.h.b16 %v111
    %v385 = vunpack.c.l.b16 %v112
    %v386 = vunpack.c.h.b16 %v112
    %v387 = vunpack.c.l.b16 %v113
    %v388 = vunpack.c.h.b16 %v113
    %v389 = vunpack.c.l.b16 %v114
    %v390 = vunpack.c.h.b16 %v114
    %v391 = vunpack.c.l.b16 %v115
    %v392 = vunpack.c.h.b16 %v115
    %v393 = vunpack.c.l.b16 %v116
    %v394 = vunpack.c.h.b16 %v116
    %v395 = vunpack.c.l.b16 %v117
    %v396 = vunpack.c.h.b16 %v117
    %v397 = vunpack.c.l.b16 %v118
    %v398 = vunpack.c.h.b16 %v118
    %v399 = vunpack.c.l.b16 %v119
    %v400 = vunpack.c.h.b16 %v119
    %v401 = vunpack.c.l.b16 %v120
    %v402 = vunpack.c.h.b16 %v120
    %v403 = vunpack.c.l.b16 %v121
    %v404 = vunpack.c.h.b16 %v121
    %v405 = vunpack.c.l.b16 %v122
    %v406 = vunpack.c.h.b16 %v122
    %v407 = vunpack.c.l.b16 %v123
    %v408 = vunpack.c.h.b16 %v123
    %v409 = vunpack.c.l.b16 %v124
    %v410 = vunpack.c.h.b16 %v124
    %v411 = vunpack.c.l.b16 %v125
    %v412 = vunpack.c.h.b16 %v125
    %v413 = vunpack.c.l.b16 %v126
    %v414 = vunpack.c.h.b16 %v126
    %v415 = vunpack.c.l.b16 %v127
    %v416 = vunpack.c.h.b16 %v127
    %v417 = vunpack.c.l.b16 %v128
    %v418 = vunpack.c.h.b16 %v128
    %v419 = vunpack.c.l.b16 %v129
    %v420 = vunpack.c.h.b16 %v129
    %v421 = vunpack.c.l.b16 %v130
    %v422 = vunpack.c.h.b16 %v130
    %v423 = vunpack.c.l.b16 %v131
    %v424 = vunpack.c.h.b16 %v131
    %v425 = vunpack.c.l.b16 %v132
    %v426 = vunpack.c.h.b16 %v132
    %v427 = vunpack.c.l.b16 %v133
    %v428 = vunpack.c.h.b16 %v133
    %v429 = vunpack.c.l.b16 %v134
    %v430 = vunpack.c.h.b16 %v134
    %v431 = vunpack.c.l.b16 %v135
    %v432 = vunpack.c.h.b16 %v135
    %v433 = vunpack.c.l.b16 %v136
    %v434 = vunpack.c.h.b16 %v136
    %v435 = vunpack.c.l.b16 %v137
    %v436 = vunpack.c.h.b16 %v137
    %v437 = vunpack.c.l.b16 %v138
    %v438 = vunpack.c.h.b16 %v138
    %v439 = vunpack.c.l.b16 %v139
    %v440 = vunpack.c.h.b16 %v139
    %v441 = vunpack.c.l.b16 %v140
    %v442 = vunpack.c.h.b16 %v140
    %v443 = vunpack.c.l.b16 %v141
    %v444 = vunpack.c.h.b16 %v141
    %v445 = vunpack.c.l.b16 %v142
    %v446 = vunpack.c.h.b16 %v142
    %v447 = vunpack.c.l.b16 %v143
    %v448 = vunpack.c.h.b16 %v143
    %v449 = vunpack.c.l.b16 %v144
    %v450 = vunpack.c.h.b16 %v144
    %v451 = vunpack.c.l.b16 %v145
    %v452 = vunpack.c.h.b16 %v145
    %v453 = vunpack.c.l.b16 %v146
    %v454 = vunpack.c.h.b16 %v146
    %v455 = vunpack.c.l.b16 %v147
    %v456 = vunpack.c.h.b16 %v147
    %v457 = vunpack.c.l.b16 %v148
    %v458 = vunpack.c.h.b16 %v148
    %v459 = vunpack.c.l.b16 %v149
    %v460 = vunpack.c.h.b16 %v149
    %v461 = vunpack.c.l.b16 %v150
    %v462 = vunpack.c.h.b16 %v150
    %v463 = vunpack.c.l.b16 %v151
    %v464 = vunpack.c.h.b16 %v151
    %v465 = vunpack.c.l.b16 %v152
    %v466 = vunpack.c.h.b16 %v152
    %v467 = vunpack.c.l.b16 %v153
    %v468 = vunpack.c.h.b16 %v153
    %v469 = vunpack.c.l.b16 %v154
    %v470 = vunpack.c.h.b16 %v154
    %v471 = vpack.c.b16 %v279, %v275
    %v472 = vpack.c.b16 %v280, %v276
    %v473 = vpack.c.b16 %v281, %v277
    %v474 = vpack.c.b16 %v282, %v278
    %v475 = vpack.c.b16 %v287, %v283
    %v476 = vpack.c.b16 %v288, %v284
    %v477 = vpack.c.b16 %v289, %v285
    %v478 = vpack.c.b16 %v290, %v286
    %v479 = vpack.c.b16 %v295, %v291
    %v480 = vpack.c.b16 %v296, %v292
    %v481 = vpack.c.b16 %v297, %v293
    %v482 = vpack.c.b16 %v298, %v294
    %v483 = vpack.c.b16 %v303, %v299
    %v484 = vpack.c.b16 %v304, %v300
    %v485 = vpack.c.b16 %v305, %v301
    %v486 = vpack.c.b16 %v306, %v302
    %v487 = vpack.c.b16 %v311, %v307
    %v488 = vpack.c.b16 %v312, %v308
    %v489 = vpack.c.b16 %v313, %v309
    %v490 = vpack.c.b16 %v314, %v310
    %v491 = vpack.c.b16 %v319, %v315
    %v492 = vpack.c.b16 %v320, %v316
    %v493 = vpack.c.b16 %v321, %v317
    %v494 = vpack.c.b16 %v322, %v318
    %v495 = vpack.c.b16 %v327, %v323
    %v496 = vpack.c.b16 %v328, %v324
    %v497 = vpack.c.b16 %v329, %v325
    %v498 = vpack.c.b16 %v330, %v326
    %v499 = vpack.c.b16 %v335, %v331
    %v500 = vpack.c.b16 %v336, %v332
    %v501 = vpack.c.b16 %v337, %v333
    %v502 = vpack.c.b16 %v338, %v334
    %v503 = vpack.c.b16 %v343, %v339
    %v504 = vpack.c.b16 %v344, %v340
    %v505 = vpack.c.b16 %v345, %v341
    %v506 = vpack.c.b16 %v346, %v342
    %v507 = vpack.c.b16 %v351, %v347
    %v508 = vpack.c.b16 %v352, %v348
    %v509 = vpack.c.b16 %v353, %v349
    %v510 = vpack.c.b16 %v354, %v350
    %v511 = vpack.c.b16 %v359, %v355
    %v512 = vpack.c.b16 %v360, %v356
    %v513 = vpack.c.b16 %v361, %v357
    %v514 = vpack.c.b16 %v362, %v358
    %v515 = vpack.c.b16 %v367, %v363
    %v516 = vpack.c.b16 %v368, %v364
    %v517 = vpack.c.b16 %v369, %v365
    %v518 = vpack.c.b16 %v370, %v366
    %v519 = vpack.c.b16 %v375, %v371
    %v520 = vpack.c.b16 %v376, %v372
    %v521 = vpack.c.b16 %v377, %v373
    %v522 = vpack.c.b16 %v378, %v374
    %v523 = vpack.c.b16 %v383, %v379
    %v524 = vpack.c.b16 %v384, %v380
    %v525 = vpack.c.b16 %v385, %v381
    %v526 = vpack.c.b16 %v386, %v382
    %v527 = vpack.c.b16 %v391, %v387
    %v528 = vpack.c.b16 %v392, %v388
    %v529 = vpack.c.b16 %v393, %v389
    %v530 = vpack.c.b16 %v394, %v390
    %v531 = vpack.c.b16 %v399, %v395
    %v532 = vpack.c.b16 %v400, %v396
    %v533 = vpack.c.b16 %v401, %v397
    %v534 = vpack.c.b16 %v402, %v398
    %v535 = vpack.c.b16 %v407, %v403
    %v536 = vpack.c.b16 %v408, %v404
    %v537 = vpack.c.b16 %v409, %v405
    %v538 = vpack.c.b16 %v410, %v406
    %v539 = vpack.c.b16 %v415, %v411
    %v540 = vpack.c.b16 %v416, %v412
    %v541 = vpack.c.b16 %v417, %v413
    %v542 = vpack.c.b16 %v418, %v414
    %v543 = vpack.c.b16 %v423, %v419
    %v544 = vpack.c.b16 %v424, %v420
    %v545 = vpack.c.b16 %v425, %v421
    %v546 = vpack.c.b16 %v426, %v422
    %v547 = vpack.c.b16 %v431, %v427
    %v548 = vpack.c.b16 %v432, %v428
    %v549 = vpack.c.b16 %v433, %v429
    %v550 = vpack.c.b16 %v434, %v430
    %v551 = vpack.c.b16 %v439, %v435
    %v552 = vpack.c.b16 %v440, %v436
    %v553 = vpack.c.b16 %v441, %v437
    %v554 = vpack.c.b16 %v442, %v438
    %v555 = vpack.c.b16 %v447, %v443
    %v556 = vpack.c.b16 %v448, %v444
    %v557 = vpack.c.b16 %v449, %v445
    %v558 = vpack.c.b16 %v450, %v446
    %v559 = vpack.c.b16 %v455, %v451
    %v560 = vpack.c.b16 %v456, %v452
    %v561 = vpack.c.b16 %v457, %v453
    %v562 = vpack.c.b16 %v458, %v454
    %v563 = vpack.c.b16 %v463, %v459
    %v564 = vpack.c.b16 %v464, %v460
    %v565 = vpack.c.b16 %v465, %v461
    %v566 = vpack.c.b16 %v466, %v462
    %v567 = vpack.c.b16 %v467, %v467
    %v568 = vpack.c.b16 %v468, %v468
    %v569 = vpack.c.b16 %v469, %v469
    %v570 = vpack.c.b16 %v470, %v470
    %vm667 = vcmask 7168
    %v669 = vsel %vm667, %v56, 0
    %vm671 = vcmask 1040384
    %v672 = vsel 0, 4294967295, 65535
    %v673 = vsel %vm671, %v672, 0
    %v675 = vand.u32 %v567, %v673
    %v678 = vand.u32 %v568, %v673
    %v681 = vand.u32 %v569, %v673
    %v684 = vand.u32 %v570, %v673
    %686 = vmatprep.subr.bf16.mxu0 %v472
    %687 = vmatpush1.bf16.msra.mxu0 %v471
    %688 = vmatprep.subr.bf16.mxu0 %v476
    %689 = vmatpush1.bf16.msra.mxu0 %v475
    %690 = vmatprep.subr.bf16.mxu0 %v480
    %691 = vmatpush1.bf16.msra.mxu0 %v479
    %692 = vmatprep.subr.bf16.mxu0 %v484
    %693 = vmatpush1.bf16.msra.mxu0 %v483
    %694 = vmatprep.subr.bf16.mxu0 %v488
    %695 = vmatpush1.bf16.msra.mxu0 %v487
    %696 = vmatprep.subr.bf16.mxu0 %v492
    %697 = vmatpush1.bf16.msra.mxu0 %v491
    %698 = vmatprep.subr.bf16.mxu0 %v496
    %699 = vmatpush1.bf16.msra.mxu0 %v495
    %700 = vmatprep.subr.bf16.mxu0 %v500
    %701 = vmatpush1.bf16.msra.mxu0 %v499
    %702 = vmatprep.subr.bf16.mxu0 %v504
    %703 = vmatpush1.bf16.msra.mxu0 %v503
    %704 = vmatprep.subr.bf16.mxu0 %v508
    %705 = vmatpush1.bf16.msra.mxu0 %v507
    %706 = vmatprep.subr.bf16.mxu0 %v512
    %707 = vmatpush1.bf16.msra.mxu0 %v511
    %708 = vmatprep.subr.bf16.mxu0 %v516
    %709 = vmatpush1.bf16.msra.mxu0 %v515
    %710 = vmatprep.subr.bf16.mxu0 %v520
    %711 = vmatpush1.bf16.msra.mxu0 %v519
    %712 = vmatprep.subr.bf16.mxu0 %v524
    %713 = vmatpush1.bf16.msra.mxu0 %v523
    %714 = vmatprep.subr.bf16.mxu0 %v528
    %715 = vmatpush1.bf16.msra.mxu0 %v527
    %716 = vmatprep.subr.bf16.mxu0 %v532
    %717 = vmatpush1.bf16.msra.mxu0 %v531
    %718 = vmatprep.mubr.bf16.mxu0 %v54
    %719 = vmatmul.mubr.bf16.gmra.mrb[0].mxu0 %v53
    %v720 = vpop.f32.mrb[0].mxu0
    %v721 = vadd.f32 %v160, %v720
    %v722 = vpop.f32.mrb[0].mxu0
    %v723 = vadd.f32 %v164, %v722
    %v724 = vpop.f32.mrb[0].mxu0
    %v725 = vpop.f32.mrb[0].mxu0
    %726 = vdwg.mxu0
    %727 = vmatprep.subr.bf16.mxu0 %v536
    %728 = vmatpush1.bf16.msra.mxu0 %v535
    %729 = vmatprep.subr.bf16.mxu0 %v540
    %730 = vmatpush1.bf16.msra.mxu0 %v539
    %731 = vmatprep.subr.bf16.mxu0 %v544
    %732 = vmatpush1.bf16.msra.mxu0 %v543
    %733 = vmatprep.subr.bf16.mxu0 %v548
    %734 = vmatpush1.bf16.msra.mxu0 %v547
    %735 = vmatprep.subr.bf16.mxu0 %v552
    %736 = vmatpush1.bf16.msra.mxu0 %v551
    %737 = vmatprep.subr.bf16.mxu0 %v556
    %738 = vmatpush1.bf16.msra.mxu0 %v555
    %739 = vmatprep.subr.bf16.mxu0 %v560
    %740 = vmatpush1.bf16.msra.mxu0 %v559
    %741 = vmatprep.subr.bf16.mxu0 %v564
    %742 = vmatpush1.bf16.msra.mxu0 %v563
    %743 = vmatprep.subr.bf16.mxu0 %v678
    %744 = vmatpush1.bf16.msra.mxu0 %v675
    %745 = vmatprep.subr.bf16.mxu0 0
    %746 = vmatpush1.bf16.msra.mxu0 0
    %747 = vmatprep.subr.bf16.mxu0 0
    %748 = vmatpush1.bf16.msra.mxu0 0
    %749 = vmatprep.subr.bf16.mxu0 0
    %750 = vmatpush1.bf16.msra.mxu0 0
    %751 = vmatprep.subr.bf16.mxu0 0
    %752 = vmatpush1.bf16.msra.mxu0 0
    %753 = vmatprep.subr.bf16.mxu0 0
    %754 = vmatpush1.bf16.msra.mxu0 0
    %755 = vmatprep.subr.bf16.mxu0 0
    %756 = vmatpush1.bf16.msra.mxu0 0
    %757 = vmatprep.subr.bf16.mxu0 0
    %758 = vmatpush1.bf16.msra.mxu0 0
    %759 = vmatprep.mubr.bf16.mxu0 %v669
    %760 = vmatmul.mubr.bf16.gmra.mrb[0].mxu0 %v55
    %v761 = vpop.f32.mrb[0].mxu0
    %v762 = vadd.f32 %v721, %v761
    %v763 = vpop.f32.mrb[0].mxu0
    %v764 = vadd.f32 %v723, %v763
    %v765 = vpop.f32.mrb[0].mxu0
    %v766 = vpop.f32.mrb[0].mxu0
    %767 = vdwg.mxu0
    %768 = vmatprep.subr.bf16.mxu0 %v474
    %769 = vmatpush1.bf16.msra.mxu0 %v473
    %770 = vmatprep.subr.bf16.mxu0 %v478
    %771 = vmatpush1.bf16.msra.mxu0 %v477
    %772 = vmatprep.subr.bf16.mxu0 %v482
    %773 = vmatpush1.bf16.msra.mxu0 %v481
    %774 = vmatprep.subr.bf16.mxu0 %v486
    %775 = vmatpush1.bf16.msra.mxu0 %v485
    %776 = vmatprep.subr.bf16.mxu0 %v490
    %777 = vmatpush1.bf16.msra.mxu0 %v489
    %778 = vmatprep.subr.bf16.mxu0 %v494
    %779 = vmatpush1.bf16.msra.mxu0 %v493
    %780 = vmatprep.subr.bf16.mxu0 %v498
    %781 = vmatpush1.bf16.msra.mxu0 %v497
    %782 = vmatprep.subr.bf16.mxu0 %v502
    %783 = vmatpush1.bf16.msra.mxu0 %v501
    %784 = vmatprep.subr.bf16.mxu0 %v506
    %785 = vmatpush1.bf16.msra.mxu0 %v505
    %786 = vmatprep.subr.bf16.mxu0 %v510
    %787 = vmatpush1.bf16.msra.mxu0 %v509
    %788 = vmatprep.subr.bf16.mxu0 %v514
    %789 = vmatpush1.bf16.msra.mxu0 %v513
    %790 = vmatprep.subr.bf16.mxu0 %v518
    %791 = vmatpush1.bf16.msra.mxu0 %v517
    %792 = vmatprep.subr.bf16.mxu0 %v522
    %793 = vmatpush1.bf16.msra.mxu0 %v521
    %794 = vmatprep.subr.bf16.mxu0 %v526
    %795 = vmatpush1.bf16.msra.mxu0 %v525
    %796 = vmatprep.subr.bf16.mxu0 %v530
    %797 = vmatpush1.bf16.msra.mxu0 %v529
    %798 = vmatprep.subr.bf16.mxu0 %v534
    %799 = vmatpush1.bf16.msra.mxu0 %v533
    %800 = vmatprep.mubr.bf16.mxu0 %v54
    %801 = vmatmul.mubr.bf16.gmra.mrb[0].mxu0 %v53
    %v802 = vpop.f32.mrb[0].mxu0
    %v803 = vadd.f32 %v168, %v802
    %v804 = vpop.f32.mrb[0].mxu0
    %v805 = vadd.f32 %v172, %v804
    %v806 = vpop.f32.mrb[0].mxu0
    %v807 = vpop.f32.mrb[0].mxu0
    %808 = vdwg.mxu0
    %809 = vmatprep.subr.bf16.mxu0 %v538
    %810 = vmatpush1.bf16.msra.mxu0 %v537
    %811 = vmatprep.subr.bf16.mxu0 %v542
    %812 = vmatpush1.bf16.msra.mxu0 %v541
    %813 = vmatprep.subr.bf16.mxu0 %v546
    %814 = vmatpush1.bf16.msra.mxu0 %v545
    %815 = vmatprep.subr.bf16.mxu0 %v550
    %816 = vmatpush1.bf16.msra.mxu0 %v549
    %817 = vmatprep.subr.bf16.mxu0 %v554
    %818 = vmatpush1.bf16.msra.mxu0 %v553
    %819 = vmatprep.subr.bf16.mxu0 %v558
    %820 = vmatpush1.bf16.msra.mxu0 %v557
    %821 = vmatprep.subr.bf16.mxu0 %v562
    %822 = vmatpush1.bf16.msra.mxu0 %v561
    %823 = vmatprep.subr.bf16.mxu0 %v566
    %824 = vmatpush1.bf16.msra.mxu0 %v565
    %825 = vmatprep.subr.bf16.mxu0 %v684
    %826 = vmatpush1.bf16.msra.mxu0 %v681
    %827 = vmatprep.subr.bf16.mxu0 0
    %828 = vmatpush1.bf16.msra.mxu0 0
    %829 = vmatprep.subr.bf16.mxu0 0
    %830 = vmatpush1.bf16.msra.mxu0 0
    %831 = vmatprep.subr.bf16.mxu0 0
    %832 = vmatpush1.bf16.msra.mxu0 0
    %833 = vmatprep.subr.bf16.mxu0 0
    %834 = vmatpush1.bf16.msra.mxu0 0
    %835 = vmatprep.subr.bf16.mxu0 0
    %836 = vmatpush1.bf16.msra.mxu0 0
    %837 = vmatprep.subr.bf16.mxu0 0
    %838 = vmatpush1.bf16.msra.mxu0 0
    %839 = vmatprep.subr.bf16.mxu0 0
    %840 = vmatpush1.bf16.msra.mxu0 0
    %841 = vmatprep.mubr.bf16.mxu0 %v669
    %842 = vmatmul.mubr.bf16.gmra.mrb[0].mxu0 %v55
    %v843 = vpop.f32.mrb[0].mxu0
    %v844 = vadd.f32 %v803, %v843
    %v845 = vpop.f32.mrb[0].mxu0
    %v846 = vadd.f32 %v805, %v845
    %v847 = vpop.f32.mrb[0].mxu0
    %v848 = vpop.f32.mrb[0].mxu0
    %849 = vdwg.mxu0
    %v850 = vmax.f32 %v762, 0.0
    %v851 = vmax.f32 %v764, 0.0
    %v852 = vmax.f32 %v844, 0.0
    %v853 = vmax.f32 %v846, 0.0
    %v854 = vpack.c.bf16 %v850, %v850
    %v855 = vpack.c.bf16 %v851, %v851
    %v856 = vpack.c.bf16 %v852, %v852
    %v857 = vpack.c.bf16 %v853, %v853
    %v858 = vld [vmem:[%s4] sm:$0xff]
    %v859 = vld [vmem:[%s4 + $0x8] sm:$0xff]
    %v860 = vld [vmem:[%s4 + $0x10] sm:$0xff]
    %v861 = vld [vmem:[%s4 + $0x18] sm:$0xff]
    %v862 = vld [vmem:[%s4 + $0x20] sm:$0xff]
    %v863 = vld [vmem:[%s4 + $0x28] sm:$0xff]
    %v864 = vld [vmem:[%s4 + $0x30] sm:$0xff]
    %v865 = vld [vmem:[%s4 + $0x38] sm:$0xff]
    %v866 = vld [vmem:[%s4 + $0x40] sm:$0xff]
    %v867 = vld [vmem:[%s4 + $0x48] sm:$0xff]
    %v868 = vld [vmem:[%s4 + $0x50] sm:$0xff]
    %v869 = vld [vmem:[%s4 + $0x58] sm:$0xff]
    %v870 = vld [vmem:[%s4 + $0x60] sm:$0xff]
    %v871 = vld [vmem:[%s4 + $0x68] sm:$0xff]
    %v872 = vld [vmem:[%s4 + $0x70] sm:$0xff]
    %v873 = vld [vmem:[%s4 + $0x78] sm:$0xff]
    %v874 = vld [vmem:[%s4 + $0x80] sm:$0xff]
    %v875 = vld [vmem:[%s4 + $0x88] sm:$0xff]
    %v876 = vld [vmem:[%s4 + $0x90] sm:$0xff]
    %v877 = vld [vmem:[%s4 + $0x98] sm:$0xff]
    %v878 = vld [vmem:[%s4 + $0xa0] sm:$0xff]
    %v879 = vld [vmem:[%s4 + $0xa8] sm:$0xff]
    %v880 = vld [vmem:[%s4 + $0xb0] sm:$0xff]
    %v881 = vld [vmem:[%s4 + $0xb8] sm:$0xff]
    %v882 = vld [vmem:[%s4 + $0xc0] sm:$0xff]
    %v883 = vld [vmem:[%s4 + $0xc8] sm:$0xff]
    %v884 = vld [vmem:[%s4 + $0xd0] sm:$0xff]
    %v885 = vld [vmem:[%s4 + $0xd8] sm:$0xff]
    %v886 = vld [vmem:[%s4 + $0xe0] sm:$0xff]
    %v887 = vld [vmem:[%s4 + $0xe8] sm:$0xff]
    %v888 = vld [vmem:[%s4 + $0xf0] sm:$0xff]
    %v889 = vld [vmem:[%s4 + $0xf8] sm:$0xff]
    %v890 = vld [vmem:[%s4 + $0x100] sm:$0xff]
    %v891 = vld [vmem:[%s4 + $0x108] sm:$0xff]
    %v892 = vld [vmem:[%s4 + $0x110] sm:$0xff]
    %v893 = vld [vmem:[%s4 + $0x118] sm:$0xff]
    %v894 = vld [vmem:[%s4 + $0x120] sm:$0xff]
    %v895 = vld [vmem:[%s4 + $0x128] sm:$0xff]
    %v896 = vld [vmem:[%s4 + $0x130] sm:$0xff]
    %v897 = vld [vmem:[%s4 + $0x138] sm:$0xff]
    %v898 = vld [vmem:[%s4 + $0x140] sm:$0xff]
    %v899 = vld [vmem:[%s4 + $0x148] sm:$0xff]
    %v900 = vld [vmem:[%s4 + $0x150] sm:$0xff]
    %v901 = vld [vmem:[%s4 + $0x158] sm:$0xff]
    %v902 = vld [vmem:[%s4 + $0x160] sm:$0xff]
    %v903 = vld [vmem:[%s4 + $0x168] sm:$0xff]
    %v904 = vld [vmem:[%s4 + $0x170] sm:$0xff]
    %v905 = vld [vmem:[%s4 + $0x178] sm:$0xff]
    %v906 = vld [vmem:[%s4 + $0x180] sm:$0xff]
    %v907 = vld [vmem:[%s4 + $0x188] sm:$0xff]
    %v908 = vld [vmem:[%s4 + $0x190] sm:$0xff]
    %v909 = vld [vmem:[%s4 + $0x198] sm:$0xff]
    %v910 = vld [vmem:[%s4 + $0x1a0] sm:$0xff]
    %v911 = vld [vmem:[%s4 + $0x1a8] sm:$0xff]
    %v912 = vld [vmem:[%s4 + $0x1b0] sm:$0xff]
    %v913 = vld [vmem:[%s4 + $0x1b8] sm:$0xff]
    %v914 = vld [vmem:[%s4 + $0x1c0] sm:$0xff]
    %v915 = vld [vmem:[%s4 + $0x1c8] sm:$0xff]
    %v916 = vld [vmem:[%s4 + $0x1d0] sm:$0xff]
    %v917 = vld [vmem:[%s4 + $0x1d8] sm:$0xff]
    %v918 = vld [vmem:[%s4 + $0x1e0] sm:$0xff]
    %v919 = vld [vmem:[%s4 + $0x1e8] sm:$0xff]
    %v920 = vld [vmem:[%s4 + $0x1f0] sm:$0xff]
    %v921 = vld [vmem:[%s4 + $0x1f8] sm:$0xff]
    %v922 = vld [vmem:[%s5] sm:$0x3]
    %v924 = vlaneseq
    %v925 = vshrl.u32 %v924, 7
    %v926 = vsub.s32 0, %v925
    %v927 = vrot.slane %v922, %v926
    %v928 = vlaneseq
    %v929 = vshrl.u32 %v928, 7
    %v930 = vsub.s32 1, %v929
    %v931 = vrot.slane %v922, %v930
    %v998 = vunpack.c.l.b16 %v858
    %v999 = vunpack.c.h.b16 %v858
    %v1000 = vunpack.c.l.b16 %v859
    %v1001 = vunpack.c.h.b16 %v859
    %v1002 = vunpack.c.l.b16 %v860
    %v1003 = vunpack.c.h.b16 %v860
    %v1004 = vunpack.c.l.b16 %v861
    %v1005 = vunpack.c.h.b16 %v861
    %v1006 = vunpack.c.l.b16 %v862
    %v1007 = vunpack.c.h.b16 %v862
    %v1008 = vunpack.c.l.b16 %v863
    %v1009 = vunpack.c.h.b16 %v863
    %v1010 = vunpack.c.l.b16 %v864
    %v1011 = vunpack.c.h.b16 %v864
    %v1012 = vunpack.c.l.b16 %v865
    %v1013 = vunpack.c.h.b16 %v865
    %v1014 = vunpack.c.l.b16 %v866
    %v1015 = vunpack.c.h.b16 %v866
    %v1016 = vunpack.c.l.b16 %v867
    %v1017 = vunpack.c.h.b16 %v867
    %v1018 = vunpack.c.l.b16 %v868
    %v1019 = vunpack.c.h.b16 %v868
    %v1020 = vunpack.c.l.b16 %v869
    %v1021 = vunpack.c.h.b16 %v869
    %v1022 = vunpack.c.l.b16 %v870
    %v1023 = vunpack.c.h.b16 %v870
    %v1024 = vunpack.c.l.b16 %v871
    %v1025 = vunpack.c.h.b16 %v871
    %v1026 = vunpack.c.l.b16 %v872
    %v1027 = vunpack.c.h.b16 %v872
    %v1028 = vunpack.c.l.b16 %v873
    %v1029 = vunpack.c.h.b16 %v873
    %v1030 = vunpack.c.l.b16 %v874
    %v1031 = vunpack.c.h.b16 %v874
    %v1032 = vunpack.c.l.b16 %v875
    %v1033 = vunpack.c.h.b16 %v875
    %v1034 = vunpack.c.l.b16 %v876
    %v1035 = vunpack.c.h.b16 %v876
    %v1036 = vunpack.c.l.b16 %v877
    %v1037 = vunpack.c.h.b16 %v877
    %v1038 = vunpack.c.l.b16 %v878
    %v1039 = vunpack.c.h.b16 %v878
    %v1040 = vunpack.c.l.b16 %v879
    %v1041 = vunpack.c.h.b16 %v879
    %v1042 = vunpack.c.l.b16 %v880
    %v1043 = vunpack.c.h.b16 %v880
    %v1044 = vunpack.c.l.b16 %v881
    %v1045 = vunpack.c.h.b16 %v881
    %v1046 = vunpack.c.l.b16 %v882
    %v1047 = vunpack.c.h.b16 %v882
    %v1048 = vunpack.c.l.b16 %v883
    %v1049 = vunpack.c.h.b16 %v883
    %v1050 = vunpack.c.l.b16 %v884
    %v1051 = vunpack.c.h.b16 %v884
    %v1052 = vunpack.c.l.b16 %v885
    %v1053 = vunpack.c.h.b16 %v885
    %v1054 = vunpack.c.l.b16 %v886
    %v1055 = vunpack.c.h.b16 %v886
    %v1056 = vunpack.c.l.b16 %v887
    %v1057 = vunpack.c.h.b16 %v887
    %v1058 = vunpack.c.l.b16 %v888
    %v1059 = vunpack.c.h.b16 %v888
    %v1060 = vunpack.c.l.b16 %v889
    %v1061 = vunpack.c.h.b16 %v889
    %v1062 = vunpack.c.l.b16 %v890
    %v1063 = vunpack.c.h.b16 %v890
    %v1064 = vunpack.c.l.b16 %v891
    %v1065 = vunpack.c.h.b16 %v891
    %v1066 = vunpack.c.l.b16 %v892
    %v1067 = vunpack.c.h.b16 %v892
    %v1068 = vunpack.c.l.b16 %v893
    %v1069 = vunpack.c.h.b16 %v893
    %v1070 = vunpack.c.l.b16 %v894
    %v1071 = vunpack.c.h.b16 %v894
    %v1072 = vunpack.c.l.b16 %v895
    %v1073 = vunpack.c.h.b16 %v895
    %v1074 = vunpack.c.l.b16 %v896
    %v1075 = vunpack.c.h.b16 %v896
    %v1076 = vunpack.c.l.b16 %v897
    %v1077 = vunpack.c.h.b16 %v897
    %v1078 = vunpack.c.l.b16 %v898
    %v1079 = vunpack.c.h.b16 %v898
    %v1080 = vunpack.c.l.b16 %v899
    %v1081 = vunpack.c.h.b16 %v899
    %v1082 = vunpack.c.l.b16 %v900
    %v1083 = vunpack.c.h.b16 %v900
    %v1084 = vunpack.c.l.b16 %v901
    %v1085 = vunpack.c.h.b16 %v901
    %v1086 = vunpack.c.l.b16 %v902
    %v1087 = vunpack.c.h.b16 %v902
    %v1088 = vunpack.c.l.b16 %v903
    %v1089 = vunpack.c.h.b16 %v903
    %v1090 = vunpack.c.l.b16 %v904
    %v1091 = vunpack.c.h.b16 %v904
    %v1092 = vunpack.c.l.b16 %v905
    %v1093 = vunpack.c.h.b16 %v905
    %v1094 = vunpack.c.l.b16 %v906
    %v1095 = vunpack.c.h.b16 %v906
    %v1096 = vunpack.c.l.b16 %v907
    %v1097 = vunpack.c.h.b16 %v907
    %v1098 = vunpack.c.l.b16 %v908
    %v1099 = vunpack.c.h.b16 %v908
    %v1100 = vunpack.c.l.b16 %v909
    %v1101 = vunpack.c.h.b16 %v909
    %v1102 = vunpack.c.l.b16 %v910
    %v1103 = vunpack.c.h.b16 %v910
    %v1104 = vunpack.c.l.b16 %v911
    %v1105 = vunpack.c.h.b16 %v911
    %v1106 = vunpack.c.l.b16 %v912
    %v1107 = vunpack.c.h.b16 %v912
    %v1108 = vunpack.c.l.b16 %v913
    %v1109 = vunpack.c.h.b16 %v913
    %v1110 = vunpack.c.l.b16 %v914
    %v1111 = vunpack.c.h.b16 %v914
    %v1112 = vunpack.c.l.b16 %v915
    %v1113 = vunpack.c.h.b16 %v915
    %v1114 = vunpack.c.l.b16 %v916
    %v1115 = vunpack.c.h.b16 %v916
    %v1116 = vunpack.c.l.b16 %v917
    %v1117 = vunpack.c.h.b16 %v917
    %v1118 = vunpack.c.l.b16 %v918
    %v1119 = vunpack.c.h.b16 %v918
    %v1120 = vunpack.c.l.b16 %v919
    %v1121 = vunpack.c.h.b16 %v919
    %v1122 = vunpack.c.l.b16 %v920
    %v1123 = vunpack.c.h.b16 %v920
    %v1124 = vunpack.c.l.b16 %v921
    %v1125 = vunpack.c.h.b16 %v921
    %v1126 = vpack.c.b16 %v1000, %v998
    %v1127 = vpack.c.b16 %v1001, %v999
    %v1128 = vpack.c.b16 %v1004, %v1002
    %v1129 = vpack.c.b16 %v1005, %v1003
    %v1130 = vpack.c.b16 %v1008, %v1006
    %v1131 = vpack.c.b16 %v1009, %v1007
    %v1132 = vpack.c.b16 %v1012, %v1010
    %v1133 = vpack.c.b16 %v1013, %v1011
    %v1134 = vpack.c.b16 %v1016, %v1014
    %v1135 = vpack.c.b16 %v1017, %v1015
    %v1136 = vpack.c.b16 %v1020, %v1018
    %v1137 = vpack.c.b16 %v1021, %v1019
    %v1138 = vpack.c.b16 %v1024, %v1022
    %v1139 = vpack.c.b16 %v1025, %v1023
    %v1140 = vpack.c.b16 %v1028, %v1026
    %v1141 = vpack.c.b16 %v1029, %v1027
    %v1142 = vpack.c.b16 %v1032, %v1030
    %v1143 = vpack.c.b16 %v1033, %v1031
    %v1144 = vpack.c.b16 %v1036, %v1034
    %v1145 = vpack.c.b16 %v1037, %v1035
    %v1146 = vpack.c.b16 %v1040, %v1038
    %v1147 = vpack.c.b16 %v1041, %v1039
    %v1148 = vpack.c.b16 %v1044, %v1042
    %v1149 = vpack.c.b16 %v1045, %v1043
    %v1150 = vpack.c.b16 %v1048, %v1046
    %v1151 = vpack.c.b16 %v1049, %v1047
    %v1152 = vpack.c.b16 %v1052, %v1050
    %v1153 = vpack.c.b16 %v1053, %v1051
    %v1154 = vpack.c.b16 %v1056, %v1054
    %v1155 = vpack.c.b16 %v1057, %v1055
    %v1156 = vpack.c.b16 %v1060, %v1058
    %v1157 = vpack.c.b16 %v1061, %v1059
    %v1158 = vpack.c.b16 %v1064, %v1062
    %v1159 = vpack.c.b16 %v1065, %v1063
    %v1160 = vpack.c.b16 %v1068, %v1066
    %v1161 = vpack.c.b16 %v1069, %v1067
    %v1162 = vpack.c.b16 %v1072, %v1070
    %v1163 = vpack.c.b16 %v1073, %v1071
    %v1164 = vpack.c.b16 %v1076, %v1074
    %v1165 = vpack.c.b16 %v1077, %v1075
    %v1166 = vpack.c.b16 %v1080, %v1078
    %v1167 = vpack.c.b16 %v1081, %v1079
    %v1168 = vpack.c.b16 %v1084, %v1082
    %v1169 = vpack.c.b16 %v1085, %v1083
    %v1170 = vpack.c.b16 %v1088, %v1086
    %v1171 = vpack.c.b16 %v1089, %v1087
    %v1172 = vpack.c.b16 %v1092, %v1090
    %v1173 = vpack.c.b16 %v1093, %v1091
    %v1174 = vpack.c.b16 %v1096, %v1094
    %v1175 = vpack.c.b16 %v1097, %v1095
    %v1176 = vpack.c.b16 %v1100, %v1098
    %v1177 = vpack.c.b16 %v1101, %v1099
    %v1178 = vpack.c.b16 %v1104, %v1102
    %v1179 = vpack.c.b16 %v1105, %v1103
    %v1180 = vpack.c.b16 %v1108, %v1106
    %v1181 = vpack.c.b16 %v1109, %v1107
    %v1182 = vpack.c.b16 %v1112, %v1110
    %v1183 = vpack.c.b16 %v1113, %v1111
    %v1184 = vpack.c.b16 %v1116, %v1114
    %v1185 = vpack.c.b16 %v1117, %v1115
    %v1186 = vpack.c.b16 %v1120, %v1118
    %v1187 = vpack.c.b16 %v1121, %v1119
    %v1188 = vpack.c.b16 %v1124, %v1122
    %v1189 = vpack.c.b16 %v1125, %v1123
    %1254 = vmatprep.subr.bf16.mxu0 %v1127
    %1255 = vmatpush1.bf16.msra.mxu0 %v1126
    %1256 = vmatprep.subr.bf16.mxu0 %v1129
    %1257 = vmatpush1.bf16.msra.mxu0 %v1128
    %1258 = vmatprep.subr.bf16.mxu0 %v1131
    %1259 = vmatpush1.bf16.msra.mxu0 %v1130
    %1260 = vmatprep.subr.bf16.mxu0 %v1133
    %1261 = vmatpush1.bf16.msra.mxu0 %v1132
    %1262 = vmatprep.subr.bf16.mxu0 %v1135
    %1263 = vmatpush1.bf16.msra.mxu0 %v1134
    %1264 = vmatprep.subr.bf16.mxu0 %v1137
    %1265 = vmatpush1.bf16.msra.mxu0 %v1136
    %1266 = vmatprep.subr.bf16.mxu0 %v1139
    %1267 = vmatpush1.bf16.msra.mxu0 %v1138
    %1268 = vmatprep.subr.bf16.mxu0 %v1141
    %1269 = vmatpush1.bf16.msra.mxu0 %v1140
    %1270 = vmatprep.subr.bf16.mxu0 %v1143
    %1271 = vmatpush1.bf16.msra.mxu0 %v1142
    %1272 = vmatprep.subr.bf16.mxu0 %v1145
    %1273 = vmatpush1.bf16.msra.mxu0 %v1144
    %1274 = vmatprep.subr.bf16.mxu0 %v1147
    %1275 = vmatpush1.bf16.msra.mxu0 %v1146
    %1276 = vmatprep.subr.bf16.mxu0 %v1149
    %1277 = vmatpush1.bf16.msra.mxu0 %v1148
    %1278 = vmatprep.subr.bf16.mxu0 %v1151
    %1279 = vmatpush1.bf16.msra.mxu0 %v1150
    %1280 = vmatprep.subr.bf16.mxu0 %v1153
    %1281 = vmatpush1.bf16.msra.mxu0 %v1152
    %1282 = vmatprep.subr.bf16.mxu0 %v1155
    %1283 = vmatpush1.bf16.msra.mxu0 %v1154
    %1284 = vmatprep.subr.bf16.mxu0 %v1157
    %1285 = vmatpush1.bf16.msra.mxu0 %v1156
    %1286 = vmatprep.mubr.bf16.mxu0 %v855
    %1287 = vmatmul.mubr.bf16.gmra.mrb[0].mxu0 %v854
    %v1288 = vpop.f32.mrb[0].mxu0
    %v1289 = vadd.f32 %v927, %v1288
    %v1290 = vpop.f32.mrb[0].mxu0
    %v1291 = vadd.f32 %v931, %v1290
    %v1292 = vpop.f32.mrb[0].mxu0
    %v1293 = vpop.f32.mrb[0].mxu0
    %1294 = vdwg.mxu0
    %1295 = vmatprep.subr.bf16.mxu0 %v1159
    %1296 = vmatpush1.bf16.msra.mxu0 %v1158
    %1297 = vmatprep.subr.bf16.mxu0 %v1161
    %1298 = vmatpush1.bf16.msra.mxu0 %v1160
    %1299 = vmatprep.subr.bf16.mxu0 %v1163
    %1300 = vmatpush1.bf16.msra.mxu0 %v1162
    %1301 = vmatprep.subr.bf16.mxu0 %v1165
    %1302 = vmatpush1.bf16.msra.mxu0 %v1164
    %1303 = vmatprep.subr.bf16.mxu0 %v1167
    %1304 = vmatpush1.bf16.msra.mxu0 %v1166
    %1305 = vmatprep.subr.bf16.mxu0 %v1169
    %1306 = vmatpush1.bf16.msra.mxu0 %v1168
    %1307 = vmatprep.subr.bf16.mxu0 %v1171
    %1308 = vmatpush1.bf16.msra.mxu0 %v1170
    %1309 = vmatprep.subr.bf16.mxu0 %v1173
    %1310 = vmatpush1.bf16.msra.mxu0 %v1172
    %1311 = vmatprep.subr.bf16.mxu0 %v1175
    %1312 = vmatpush1.bf16.msra.mxu0 %v1174
    %1313 = vmatprep.subr.bf16.mxu0 %v1177
    %1314 = vmatpush1.bf16.msra.mxu0 %v1176
    %1315 = vmatprep.subr.bf16.mxu0 %v1179
    %1316 = vmatpush1.bf16.msra.mxu0 %v1178
    %1317 = vmatprep.subr.bf16.mxu0 %v1181
    %1318 = vmatpush1.bf16.msra.mxu0 %v1180
    %1319 = vmatprep.subr.bf16.mxu0 %v1183
    %1320 = vmatpush1.bf16.msra.mxu0 %v1182
    %1321 = vmatprep.subr.bf16.mxu0 %v1185
    %1322 = vmatpush1.bf16.msra.mxu0 %v1184
    %1323 = vmatprep.subr.bf16.mxu0 %v1187
    %1324 = vmatpush1.bf16.msra.mxu0 %v1186
    %1325 = vmatprep.subr.bf16.mxu0 %v1189
    %1326 = vmatpush1.bf16.msra.mxu0 %v1188
    %1327 = vmatprep.mubr.bf16.mxu0 %v857
    %1328 = vmatmul.mubr.bf16.gmra.mrb[0].mxu0 %v856
    %v1329 = vpop.f32.mrb[0].mxu0
    %v1330 = vadd.f32 %v1289, %v1329
    %v1331 = vpop.f32.mrb[0].mxu0
    %v1332 = vadd.f32 %v1291, %v1331
    %v1333 = vpop.f32.mrb[0].mxu0
    %v1334 = vpop.f32.mrb[0].mxu0
    %1335 = vdwg.mxu0
    %v1336 = vmax.f32 %v1330, 0.0
    %v1337 = vmax.f32 %v1332, 0.0
    %v1338 = vpack.c.bf16 %v1336, %v1336
    %v1339 = vpack.c.bf16 %v1337, %v1337
    %v1340 = vld [vmem:[%s6] sm:$0xf]
    %v1341 = vld [vmem:[%s6 + $0x4] sm:$0xf]
    %v1342 = vld [vmem:[%s6 + $0x8] sm:$0xf]
    %v1343 = vld [vmem:[%s6 + $0xc] sm:$0xf]
    %v1344 = vld [vmem:[%s6 + $0x10] sm:$0xf]
    %v1345 = vld [vmem:[%s6 + $0x14] sm:$0xf]
    %v1346 = vld [vmem:[%s6 + $0x18] sm:$0xf]
    %v1347 = vld [vmem:[%s6 + $0x1c] sm:$0xf]
    %v1348 = vld [vmem:[%s6 + $0x20] sm:$0xf]
    %v1349 = vld [vmem:[%s6 + $0x24] sm:$0xf]
    %v1350 = vld [vmem:[%s6 + $0x28] sm:$0xf]
    %v1351 = vld [vmem:[%s6 + $0x2c] sm:$0xf]
    %v1352 = vld [vmem:[%s6 + $0x30] sm:$0xf]
    %v1353 = vld [vmem:[%s6 + $0x34] sm:$0xf]
    %v1354 = vld [vmem:[%s6 + $0x38] sm:$0xf]
    %v1355 = vld [vmem:[%s6 + $0x3c] sm:$0xf]
    %v1356 = vld [vmem:[%s6 + $0x40] sm:$0xf]
    %v1357 = vld [vmem:[%s6 + $0x44] sm:$0xf]
    %v1358 = vld [vmem:[%s6 + $0x48] sm:$0xf]
    %v1359 = vld [vmem:[%s6 + $0x4c] sm:$0xf]
    %v1360 = vld [vmem:[%s6 + $0x50] sm:$0xf]
    %v1361 = vld [vmem:[%s6 + $0x54] sm:$0xf]
    %v1362 = vld [vmem:[%s6 + $0x58] sm:$0xf]
    %v1363 = vld [vmem:[%s6 + $0x5c] sm:$0xf]
    %v1364 = vld [vmem:[%s6 + $0x60] sm:$0xf]
    %v1365 = vld [vmem:[%s6 + $0x64] sm:$0xf]
    %v1366 = vld [vmem:[%s6 + $0x68] sm:$0xf]
    %v1367 = vld [vmem:[%s6 + $0x6c] sm:$0xf]
    %v1368 = vld [vmem:[%s6 + $0x70] sm:$0xf]
    %v1369 = vld [vmem:[%s6 + $0x74] sm:$0xf]
    %v1370 = vld [vmem:[%s6 + $0x78] sm:$0xf]
    %v1371 = vld [vmem:[%s6 + $0x7c] sm:$0xf]
    %v1372 = vld [vmem:[%s7] sm:$0x1]
    %v1374 = vlaneseq
    %v1375 = vshrl.u32 %v1374, 7
    %v1376 = vsub.s32 0, %v1375
    %v1377 = vrot.slane %v1372, %v1376
    %v1411 = vunpack.c.l.b16 %v1340
    %v1412 = vunpack.c.l.b16 %v1341
    %v1413 = vunpack.c.l.b16 %v1342
    %v1414 = vunpack.c.l.b16 %v1343
    %v1415 = vunpack.c.l.b16 %v1344
    %v1416 = vunpack.c.l.b16 %v1345
    %v1417 = vunpack.c.l.b16 %v1346
    %v1418 = vunpack.c.l.b16 %v1347
    %v1419 = vunpack.c.l.b16 %v1348
    %v1420 = vunpack.c.l.b16 %v1349
    %v1421 = vunpack.c.l.b16 %v1350
    %v1422 = vunpack.c.l.b16 %v1351
    %v1423 = vunpack.c.l.b16 %v1352
    %v1424 = vunpack.c.l.b16 %v1353
    %v1425 = vunpack.c.l.b16 %v1354
    %v1426 = vunpack.c.l.b16 %v1355
    %v1427 = vunpack.c.l.b16 %v1356
    %v1428 = vunpack.c.l.b16 %v1357
    %v1429 = vunpack.c.l.b16 %v1358
    %v1430 = vunpack.c.l.b16 %v1359
    %v1431 = vunpack.c.l.b16 %v1360
    %v1432 = vunpack.c.l.b16 %v1361
    %v1433 = vunpack.c.l.b16 %v1362
    %v1434 = vunpack.c.l.b16 %v1363
    %v1435 = vunpack.c.l.b16 %v1364
    %v1436 = vunpack.c.l.b16 %v1365
    %v1437 = vunpack.c.l.b16 %v1366
    %v1438 = vunpack.c.l.b16 %v1367
    %v1439 = vunpack.c.l.b16 %v1368
    %v1440 = vunpack.c.l.b16 %v1369
    %v1441 = vunpack.c.l.b16 %v1370
    %v1442 = vunpack.c.l.b16 %v1371
    %v1443 = vpack.c.b16 %v1412, %v1411
    %v1444 = vpack.c.b16 %v1414, %v1413
    %v1445 = vpack.c.b16 %v1416, %v1415
    %v1446 = vpack.c.b16 %v1418, %v1417
    %v1447 = vpack.c.b16 %v1420, %v1419
    %v1448 = vpack.c.b16 %v1422, %v1421
    %v1449 = vpack.c.b16 %v1424, %v1423
    %v1450 = vpack.c.b16 %v1426, %v1425
    %v1451 = vpack.c.b16 %v1428, %v1427
    %v1452 = vpack.c.b16 %v1430, %v1429
    %v1453 = vpack.c.b16 %v1432, %v1431
    %v1454 = vpack.c.b16 %v1434, %v1433
    %v1455 = vpack.c.b16 %v1436, %v1435
    %v1456 = vpack.c.b16 %v1438, %v1437
    %v1457 = vpack.c.b16 %v1440, %v1439
    %v1458 = vpack.c.b16 %v1442, %v1441
    %1475 = vmatprep.subr.bf16.mxu0 0
    %1476 = vmatpush1.bf16.msra.mxu0 %v1443
    %1477 = vmatprep.subr.bf16.mxu0 0
    %1478 = vmatpush1.bf16.msra.mxu0 %v1444
    %1479 = vmatprep.subr.bf16.mxu0 0
    %1480 = vmatpush1.bf16.msra.mxu0 %v1445
    %1481 = vmatprep.subr.bf16.mxu0 0
    %1482 = vmatpush1.bf16.msra.mxu0 %v1446
    %1483 = vmatprep.subr.bf16.mxu0 0
    %1484 = vmatpush1.bf16.msra.mxu0 %v1447
    %1485 = vmatprep.subr.bf16.mxu0 0
    %1486 = vmatpush1.bf16.msra.mxu0 %v1448
    %1487 = vmatprep.subr.bf16.mxu0 0
    %1488 = vmatpush1.bf16.msra.mxu0 %v1449
    %1489 = vmatprep.subr.bf16.mxu0 0
    %1490 = vmatpush1.bf16.msra.mxu0 %v1450
    %1491 = vmatprep.subr.bf16.mxu0 0
    %1492 = vmatpush1.bf16.msra.mxu0 %v1451
    %1493 = vmatprep.subr.bf16.mxu0 0
    %1494 = vmatpush1.bf16.msra.mxu0 %v1452
    %1495 = vmatprep.subr.bf16.mxu0 0
    %1496 = vmatpush1.bf16.msra.mxu0 %v1453
    %1497 = vmatprep.subr.bf16.mxu0 0
    %1498 = vmatpush1.bf16.msra.mxu0 %v1454
    %1499 = vmatprep.subr.bf16.mxu0 0
    %1500 = vmatpush1.bf16.msra.mxu0 %v1455
    %1501 = vmatprep.subr.bf16.mxu0 0
    %1502 = vmatpush1.bf16.msra.mxu0 %v1456
    %1503 = vmatprep.subr.bf16.mxu0 0
    %1504 = vmatpush1.bf16.msra.mxu0 %v1457
    %1505 = vmatprep.subr.bf16.mxu0 0
    %1506 = vmatpush1.bf16.msra.mxu0 %v1458
    %1507 = vmatprep.mubr.bf16.mxu0 %v1339
    %1508 = vmatmul.mubr.bf16.gmra.mrb[0].mxu0 %v1338
    %v1509 = vpop.f32.mrb[0].mxu0
    %v1510 = vadd.f32 %v1377, %v1509
    %v1511 = vpop.f32.mrb[0].mxu0
    %v1512 = vpop.f32.mrb[0].mxu0
    %v1513 = vpop.f32.mrb[0].mxu0
    %1514 = vdwg.mxu0
    %vm1515 = vcmask 115712
    %1516 = vst.msk [vmem:[#allocation2] sm:$0x3] %vm1515, %v1510
    // Predicated region
    $region34: #{measure_vit_forward.3} parent=1 // pred_check
      _
    $region35: #{measure_vit_forward.3} parent=1 // pred_check_branch
      %1518 = sbr.rel (0) target = $region37
    $region36: #{measure_vit_forward.3} parent=1 // pred_region
      %s1520 = ssub.s32 32, 32
      %1521 = vsyncadd [#allocation3], %s1520
      %s1523 = sshll.u32 [#allocation2], 4
      %s1524 = int_to_ptr.vmem [resolvable:$true] %s1523
      %1526 = dma.vmem_to_hbm [thread:$0]  %s1524, 32, %s8, [#allocation3]
    $region37: #{measure_vit_forward.3} parent=1 // pred_fallthru
      _
    // Predicated region
    $region38: #{measure_vit_forward.3} parent=1 // pred_check
      _
    $region39: #{measure_vit_forward.3} parent=1 // pred_check_branch
      %1528 = sbr.rel (0) target = $region41
    $region40: #{measure_vit_forward.3} parent=1 // pred_region
      %1529 = dma.done [#allocation3], 32
    $region41: #{measure_vit_forward.3} parent=1 // pred_fallthru
      _
    %1530 = vsyncpa [#allocation3], 1

// kernel: measure_vit_forward.2
$region0: #{measure_vit_forward.2}
  #allocation0 [shape = 'u32[]', space=smem, size = 0x4, offset = 0x4, fixed_abs, tag = 'smem constant byte address 0x4 - core index']
  #allocation1 [shape = 'u32[144,128]{1,0:T(1,128)}', space=vmem, size = 0x12000, scoped, tag = 'internal scratch']
  %s0 = inlined_call_operand.smem [shape: u32[31], index: -1, kind: input, shape index: {}]
  %s1 = sld [smem:[%s0]]
  %s2 = scalar_lea.smem %s0, 1
  %s3 = sld [smem:[%s2]]
  %s4 = scalar_lea.smem %s0, 2
  %s5 = sld [smem:[%s4]]
  %s6 = scalar_lea.smem %s0, 3
  %s7 = sld [smem:[%s6]]
  %s8 = scalar_lea.smem %s0, 4
  %s9 = sld [smem:[%s8]]
  %s10 = scalar_lea.smem %s0, 5
  %s11 = sld [smem:[%s10]]
  %s12 = scalar_lea.smem %s0, 6
  %s13 = sld [smem:[%s12]]
  %s14 = scalar_lea.smem %s0, 7
  %s15 = sld [smem:[%s14]]
  %s16 = scalar_lea.smem %s0, 8
  %s17 = sld [smem:[%s16]]
  %s18 = scalar_lea.smem %s0, 9
  %s19 = sld [smem:[%s18]]
  %s20 = scalar_lea.smem %s0, 10
  %s21 = sld [smem:[%s20]]
  %s22 = scalar_lea.smem %s0, 11
  %s23 = sld [smem:[%s22]]
  %s24 = scalar_lea.smem %s0, 12
  %s25 = sld [smem:[%s24]]
  %s26 = scalar_lea.smem %s0, 13
  %s27 = sld [smem:[%s26]]
  %s28 = scalar_lea.smem %s0, 14
  %s29 = sld [smem:[%s28]]
  %s30 = scalar_lea.smem %s0, 15
  %s31 = sld [smem:[%s30]]
  %s32 = scalar_lea.smem %s0, 16
  %s33 = sld [smem:[%s32]]
  %s34 = scalar_lea.smem %s0, 17
  %s35 = sld [smem:[%s34]]
  %s36 = scalar_lea.smem %s0, 18
  %s37 = sld [smem:[%s36]]
  %s38 = scalar_lea.smem %s0, 19
  %s39 = sld [smem:[%s38]]
  %s40 = scalar_lea.smem %s0, 20
  %s41 = sld [smem:[%s40]]
  %s42 = scalar_lea.smem %s0, 21
  %s43 = sld [smem:[%s42]]
  %s44 = scalar_lea.smem %s0, 22
  %s45 = sld [smem:[%s44]]
  %s46 = scalar_lea.smem %s0, 23
  %s47 = sld [smem:[%s46]]
  %s48 = scalar_lea.smem %s0, 24
  %s49 = sld [smem:[%s48]]
  %s50 = scalar_lea.smem %s0, 25
  %s51 = sld [smem:[%s50]]
  %s52 = scalar_lea.smem %s0, 26
  %s53 = sld [smem:[%s52]]
  %s54 = scalar_lea.smem %s0, 27
  %s55 = sld [smem:[%s54]]
  %s56 = scalar_lea.smem %s0, 28
  %s57 = sld [smem:[%s56]]
  %s58 = scalar_lea.smem %s0, 29
  %s59 = sld [smem:[%s58]]
  %s60 = scalar_lea.smem %s0, 30
  %s61 = sld [smem:[%s60]]
  %s62 = sld [smem:[#allocation0]]
  $region130: #{measure_vit_forward.2} parent=0
    _
  %s64 = ssub.s32 1, %s62
  %s65 = scalar_select 0, %s64, %s62
  // Predicated region
  $region2: #{measure_vit_forward.2} parent=0 // pred_check
    _
  $region3: #{measure_vit_forward.2} parent=0 // pred_check_branch
    %67 = sbr.rel (0) target = $region5
  $region4: #{measure_vit_forward.2} parent=0 // pred_region
    _
  $region5: #{measure_vit_forward.2} parent=0 // pred_fallthru
    _
  // Predicated region
  $region6: #{measure_vit_forward.2} parent=0 // pred_check
    _
  $region7: #{measure_vit_forward.2} parent=0 // pred_check_branch
    %69 = sbr.rel (0) target = $region9
  $region8: #{measure_vit_forward.2} parent=0 // pred_region
    _
  $region9: #{measure_vit_forward.2} parent=0 // pred_fallthru
    _
  // Predicated region
  $region10: #{measure_vit_forward.2} parent=0 // pred_check
    _
  $region11: #{measure_vit_forward.2} parent=0 // pred_check_branch
    %71 = sbr.rel (0) target = $region13
  $region12: #{measure_vit_forward.2} parent=0 // pred_region
    _
  $region13: #{measure_vit_forward.2} parent=0 // pred_fallthru
    _
  // Predicated region
  $region14: #{measure_vit_forward.2} parent=0 // pred_check
    _
  $region15: #{measure_vit_forward.2} parent=0 // pred_check_branch
    %73 = sbr.rel (0) target = $region17
  $region16: #{measure_vit_forward.2} parent=0 // pred_region
    _
  $region17: #{measure_vit_forward.2} parent=0 // pred_fallthru
    _
  // Predicated region
  $region18: #{measure_vit_forward.2} parent=0 // pred_check
    _
  $region19: #{measure_vit_forward.2} parent=0 // pred_check_branch
    %75 = sbr.rel (0) target = $region21
  $region20: #{measure_vit_forward.2} parent=0 // pred_region
    _
  $region21: #{measure_vit_forward.2} parent=0 // pred_fallthru
    _
  // Predicated region
  $region22: #{measure_vit_forward.2} parent=0 // pred_check
    _
  $region23: #{measure_vit_forward.2} parent=0 // pred_check_branch
    %77 = sbr.rel (0) target = $region25
  $region24: #{measure_vit_forward.2} parent=0 // pred_region
    _
  $region25: #{measure_vit_forward.2} parent=0 // pred_fallthru
    _
  // Predicated region
  $region26: #{measure_vit_forward.2} parent=0 // pred_check
    _
  $region27: #{measure_vit_forward.2} parent=0 // pred_check_branch
    %79 = sbr.rel (0) target = $region29
  $region28: #{measure_vit_forward.2} parent=0 // pred_region
    _
  $region29: #{measure_vit_forward.2} parent=0 // pred_fallthru
    _
  // Predicated region
  $region30: #{measure_vit_forward.2} parent=0 // pred_check
    _
  $region31: #{measure_vit_forward.2} parent=0 // pred_check_branch
    %81 = sbr.rel (0) target = $region33
  $region32: #{measure_vit_forward.2} parent=0 // pred_region
    _
  $region33: #{measure_vit_forward.2} parent=0 // pred_fallthru
    _
  // Predicated region
  $region34: #{measure_vit_forward.2} parent=0 // pred_check
    _
  $region35: #{measure_vit_forward.2} parent=0 // pred_check_branch
    %83 = sbr.rel (0) target = $region37
  $region36: #{measure_vit_forward.2} parent=0 // pred_region
    _
  $region37: #{measure_vit_forward.2} parent=0 // pred_fallthru
    _
  // Predicated region
  $region38: #{measure_vit_forward.2} parent=0 // pred_check
    _
  $region39: #{measure_vit_forward.2} parent=0 // pred_check_branch
    %85 = sbr.rel (0) target = $region41
  $region40: #{measure_vit_forward.2} parent=0 // pred_region
    _
  $region41: #{measure_vit_forward.2} parent=0 // pred_fallthru
    _
  // Predicated region
  $region42: #{measure_vit_forward.2} parent=0 // pred_check
    _
  $region43: #{measure_vit_forward.2} parent=0 // pred_check_branch
    %87 = sbr.rel (0) target = $region45
  $region44: #{measure_vit_forward.2} parent=0 // pred_region
    _
  $region45: #{measure_vit_forward.2} parent=0 // pred_fallthru
    _
  // Predicated region
  $region46: #{measure_vit_forward.2} parent=0 // pred_check
    _
  $region47: #{measure_vit_forward.2} parent=0 // pred_check_branch
    %89 = sbr.rel (0) target = $region49
  $region48: #{measure_vit_forward.2} parent=0 // pred_region
    _
  $region49: #{measure_vit_forward.2} parent=0 // pred_fallthru
    _
  // Predicated region
  $region50: #{measure_vit_forward.2} parent=0 // pred_check
    _
  $region51: #{measure_vit_forward.2} parent=0 // pred_check_branch
    %91 = sbr.rel (0) target = $region53
  $region52: #{measure_vit_forward.2} parent=0 // pred_region
    _
  $region53: #{measure_vit_forward.2} parent=0 // pred_fallthru
    _
  // Predicated region
  $region54: #{measure_vit_forward.2} parent=0 // pred_check
    _
  $region55: #{measure_vit_forward.2} parent=0 // pred_check_branch
    %93 = sbr.rel (0) target = $region57
  $region56: #{measure_vit_forward.2} parent=0 // pred_region
    _
  $region57: #{measure_vit_forward.2} parent=0 // pred_fallthru
    _
  // Predicated region
  $region58: #{measure_vit_forward.2} parent=0 // pred_check
    _
  $region59: #{measure_vit_forward.2} parent=0 // pred_check_branch
    %95 = sbr.rel (0) target = $region61
  $region60: #{measure_vit_forward.2} parent=0 // pred_region
    _
  $region61: #{measure_vit_forward.2} parent=0 // pred_fallthru
    _
  // Predicated region
  $region62: #{measure_vit_forward.2} parent=0 // pred_check
    _
  $region63: #{measure_vit_forward.2} parent=0 // pred_check_branch
    %97 = sbr.rel (0) target = $region65
  $region64: #{measure_vit_forward.2} parent=0 // pred_region
    _
  $region65: #{measure_vit_forward.2} parent=0 // pred_fallthru
    _
  // Predicated region
  $region66: #{measure_vit_forward.2} parent=0 // pred_check
    _
  $region67: #{measure_vit_forward.2} parent=0 // pred_check_branch
    %99 = sbr.rel (0) target = $region69
  $region68: #{measure_vit_forward.2} parent=0 // pred_region
    _
  $region69: #{measure_vit_forward.2} parent=0 // pred_fallthru
    _
  // Predicated region
  $region70: #{measure_vit_forward.2} parent=0 // pred_check
    _
  $region71: #{measure_vit_forward.2} parent=0 // pred_check_branch
    %101 = sbr.rel (0) target = $region73
  $region72: #{measure_vit_forward.2} parent=0 // pred_region
    _
  $region73: #{measure_vit_forward.2} parent=0 // pred_fallthru
    _
  // Predicated region
  $region74: #{measure_vit_forward.2} parent=0 // pred_check
    _
  $region75: #{measure_vit_forward.2} parent=0 // pred_check_branch
    %103 = sbr.rel (0) target = $region77
  $region76: #{measure_vit_forward.2} parent=0 // pred_region
    _
  $region77: #{measure_vit_forward.2} parent=0 // pred_fallthru
    _
  // Predicated region
  $region78: #{measure_vit_forward.2} parent=0 // pred_check
    _
  $region79: #{measure_vit_forward.2} parent=0 // pred_check_branch
    %105 = sbr.rel (0) target = $region81
  $region80: #{measure_vit_forward.2} parent=0 // pred_region
    _
  $region81: #{measure_vit_forward.2} parent=0 // pred_fallthru
    _
  // Predicated region
  $region82: #{measure_vit_forward.2} parent=0 // pred_check
    _
  $region83: #{measure_vit_forward.2} parent=0 // pred_check_branch
    %107 = sbr.rel (0) target = $region85
  $region84: #{measure_vit_forward.2} parent=0 // pred_region
    _
  $region85: #{measure_vit_forward.2} parent=0 // pred_fallthru
    _
  // Predicated region
  $region86: #{measure_vit_forward.2} parent=0 // pred_check
    _
  $region87: #{measure_vit_forward.2} parent=0 // pred_check_branch
    %109 = sbr.rel (0) target = $region89
  $region88: #{measure_vit_forward.2} parent=0 // pred_region
    _
  $region89: #{measure_vit_forward.2} parent=0 // pred_fallthru
    _
  // Predicated region
  $region90: #{measure_vit_forward.2} parent=0 // pred_check
    _
  $region91: #{measure_vit_forward.2} parent=0 // pred_check_branch
    %111 = sbr.rel (0) target = $region93
  $region92: #{measure_vit_forward.2} parent=0 // pred_region
    _
  $region93: #{measure_vit_forward.2} parent=0 // pred_fallthru
    _
  // Predicated region
  $region94: #{measure_vit_forward.2} parent=0 // pred_check
    _
  $region95: #{measure_vit_forward.2} parent=0 // pred_check_branch
    %113 = sbr.rel (0) target = $region97
  $region96: #{measure_vit_forward.2} parent=0 // pred_region
    _
  $region97: #{measure_vit_forward.2} parent=0 // pred_fallthru
    _
  // Predicated region
  $region98: #{measure_vit_forward.2} parent=0 // pred_check
    _
  $region99: #{measure_vit_forward.2} parent=0 // pred_check_branch
    %115 = sbr.rel (0) target = $region101
  $region100: #{measure_vit_forward.2} parent=0 // pred_region
    _
  $region101: #{measure_vit_forward.2} parent=0 // pred_fallthru
    _
  // Predicated region
  $region102: #{measure_vit_forward.2} parent=0 // pred_check
    _
  $region103: #{measure_vit_forward.2} parent=0 // pred_check_branch
    %117 = sbr.rel (0) target = $region105
  $region104: #{measure_vit_forward.2} parent=0 // pred_region
    _
  $region105: #{measure_vit_forward.2} parent=0 // pred_fallthru
    _
  // Predicated region
  $region106: #{measure_vit_forward.2} parent=0 // pred_check
    _
  $region107: #{measure_vit_forward.2} parent=0 // pred_check_branch
    %119 = sbr.rel (0) target = $region109
  $region108: #{measure_vit_forward.2} parent=0 // pred_region
    _
  $region109: #{measure_vit_forward.2} parent=0 // pred_fallthru
    _
  // Predicated region
  $region110: #{measure_vit_forward.2} parent=0 // pred_check
    _
  $region111: #{measure_vit_forward.2} parent=0 // pred_check_branch
    %121 = sbr.rel (0) target = $region113
  $region112: #{measure_vit_forward.2} parent=0 // pred_region
    _
  $region113: #{measure_vit_forward.2} parent=0 // pred_fallthru
    _
  // Predicated region
  $region114: #{measure_vit_forward.2} parent=0 // pred_check
    _
  $region115: #{measure_vit_forward.2} parent=0 // pred_check_branch
    %123 = sbr.rel (0) target = $region117
  $region116: #{measure_vit_forward.2} parent=0 // pred_region
    _
  $region117: #{measure_vit_forward.2} parent=0 // pred_fallthru
    _
  // Predicated region
  $region118: #{measure_vit_forward.2} parent=0 // pred_check
    _
  $region119: #{measure_vit_forward.2} parent=0 // pred_check_branch
    %125 = sbr.rel (0) target = $region121
  $region120: #{measure_vit_forward.2} parent=0 // pred_region
    _
  $region121: #{measure_vit_forward.2} parent=0 // pred_fallthru
    _
  %v127 = vld [vmem:[%s1] sm:$0xff]
  %v128 = vld [vmem:[%s1 + $0x8] sm:$0xff]
  %v129 = vld [vmem:[%s1 + $0x10] sm:$0xff]
  %v130 = vpack.c.bf16 %v128, %v127
  %v131 = vpack.c.bf16 %v129, %v129
  %v132 = vld [vmem:[%s3] sm:$0xf]
  %v133 = vld [vmem:[%s3 + $0x4] sm:$0xf]
  %v134 = vld [vmem:[%s3 + $0x8] sm:$0xf]
  %v135 = vld [vmem:[%s3 + $0xc] sm:$0xf]
  %v136 = vld [vmem:[%s3 + $0x10] sm:$0xf]
  %v137 = vld [vmem:[%s3 + $0x14] sm:$0xf]
  %v138 = vld [vmem:[%s3 + $0x18] sm:$0xf]
  %v139 = vld [vmem:[%s3 + $0x1c] sm:$0xf]
  %v140 = vld [vmem:[%s3 + $0x20] sm:$0xf]
  %v141 = vld [vmem:[%s3 + $0x24] sm:$0xf]
  %v142 = vld [vmem:[%s3 + $0x28] sm:$0xf]
  %v143 = vld [vmem:[%s3 + $0x2c] sm:$0xf]
  %v144 = vld [vmem:[%s5] sm:$0x1]
  %v146 = vlaneseq
  %v147 = vshrl.u32 %v146, 7
  %v148 = vsub.s32 0, %v147
  %v149 = vrot.slane %v144, %v148
  %v163 = vunpack.c.l.b16 %v132
  %v164 = vunpack.c.l.b16 %v133
  %v165 = vunpack.c.l.b16 %v134
  %v166 = vunpack.c.l.b16 %v135
  %v167 = vunpack.c.l.b16 %v136
  %v168 = vunpack.c.l.b16 %v137
  %v169 = vunpack.c.l.b16 %v138
  %v170 = vunpack.c.l.b16 %v139
  %v171 = vunpack.c.l.b16 %v140
  %v172 = vunpack.c.l.b16 %v141
  %v173 = vunpack.c.l.b16 %v142
  %v174 = vunpack.c.l.b16 %v143
  %v175 = vpack.c.b16 %v164, %v163
  %v176 = vpack.c.b16 %v166, %v165
  %v177 = vpack.c.b16 %v168, %v167
  %v178 = vpack.c.b16 %v170, %v169
  %v179 = vpack.c.b16 %v172, %v171
  %v180 = vpack.c.b16 %v174, %v173
  %vm187 = vcmask 785408
  %v189 = vsel %vm187, %v130, 0
  %v192 = vsel %vm187, %v131, 0
  %194 = vmatprep.subr.bf16.mxu0 0
  %195 = vmatpush1.bf16.msra.mxu0 %v175
  %196 = vmatprep.subr.bf16.mxu0 0
  %197 = vmatpush1.bf16.msra.mxu0 %v176
  %198 = vmatprep.subr.bf16.mxu0 0
  %199 = vmatpush1.bf16.msra.mxu0 %v177
  %200 = vmatprep.subr.bf16.mxu0 0
  %201 = vmatpush1.bf16.msra.mxu0 %v178
  %202 = vmatprep.subr.bf16.mxu0 0
  %203 = vmatpush1.bf16.msra.mxu0 %v179
  %204 = vmatprep.subr.bf16.mxu0 0
  %205 = vmatpush1.bf16.msra.mxu0 %v180
  %206 = vmatprep.subr.bf16.mxu0 0
  %207 = vmatpush1.bf16.msra.mxu0 0
  %208 = vmatprep.subr.bf16.mxu0 0
  %209 = vmatpush1.bf16.msra.mxu0 0
  %210 = vmatprep.subr.bf16.mxu0 0
  %211 = vmatpush1.bf16.msra.mxu0 0
  %212 = vmatprep.subr.bf16.mxu0 0
  %213 = vmatpush1.bf16.msra.mxu0 0
  %214 = vmatprep.subr.bf16.mxu0 0
  %215 = vmatpush1.bf16.msra.mxu0 0
  %216 = vmatprep.subr.bf16.mxu0 0
  %217 = vmatpush1.bf16.msra.mxu0 0
  %218 = vmatprep.subr.bf16.mxu0 0
  %219 = vmatpush1.bf16.msra.mxu0 0
  %220 = vmatprep.subr.bf16.mxu0 0
  %221 = vmatpush1.bf16.msra.mxu0 0
  %222 = vmatprep.subr.bf16.mxu0 0
  %223 = vmatpush1.bf16.msra.mxu0 0
  %224 = vmatprep.subr.bf16.mxu0 0
  %225 = vmatpush1.bf16.msra.mxu0 0
  %226 = vmatprep.mubr.bf16.mxu0 0
  %227 = vmatmul.mubr.bf16.gmra.mrb[0].mxu0 %v189
  %v228 = vpop.f32.mrb[0].mxu0
  %v229 = vadd.f32 %v149, %v228
  %v230 = vpop.f32.mrb[0].mxu0
  %v231 = vpop.f32.mrb[0].mxu0
  %v232 = vadd.f32 %v149, %v231
  %v233 = vpop.f32.mrb[0].mxu0
  %234 = vmatprep.mubr.bf16.mxu0 0
  %235 = vmatmul.mubr.bf16.gmra.mrb[0].mxu0 %v192
  %v236 = vpop.f32.mrb[0].mxu0
  %v237 = vadd.f32 %v149, %v236
  %v238 = vpop.f32.mrb[0].mxu0
  %v239 = vpop.f32.mrb[0].mxu0
  %v240 = vpop.f32.mrb[0].mxu0
  %241 = vdwg.mxu0
  %v242 = vld [vmem:[%s7] sm:$0xff]
  %v243 = vld [vmem:[%s7 + $0x8] sm:$0xf]
  %vm246 = vcmask 1043456
  %v247 = vrot.slane %v242, 4
  %v248 = vrot.slane %v243, 4
  %v249 = vsel %vm246, %v247, %v248
  %v252 = vsel %vm246, %v243, %v247
  %v253 = vadd.f32 %v229, %v242
  %v254 = vadd.f32 %v232, %v252
  %v255 = vadd.f32 %v237, %v249
  %vm256 = vcmask 261120
  %v257 = vsel %vm256, %v253, 0.0
  %258 = vadd.xlane.f32.xlu0 %v257
  %v259 = vpop.xlane.xlu0 %258
  %v260 = vsel %vm256, %v254, 0.0
  %261 = vadd.xlane.f32.xlu0 %v260
  %v262 = vpop.xlane.xlu0 %261
  %v263 = vsel %vm256, %v255, 0.0
  %264 = vadd.xlane.f32.xlu0 %v263
  %v265 = vpop.xlane.xlu0 %264
  %v266 = vrcp.pop 32.0
  %v267 = vmul.f32 %v259, %v266
  %v268 = vmul.f32 %v262, %v266
  %v269 = vmul.f32 %v265, %v266
  %v270 = vsub.f32 %v253, %v267
  %v271 = vsub.f32 %v254, %v268
  %v272 = vsub.f32 %v255, %v269
  %v273 = vmul.f32 %v270, %v270
  %v274 = vmul.f32 %v271, %v271
  %v275 = vmul.f32 %v272, %v272
  %v276 = vsel %vm256, %v273, 0.0
  %277 = vadd.xlane.f32.xlu0 %v276
  %v278 = vpop.xlane.xlu0 %277
  %v279 = vsel %vm256, %v274, 0.0
  %280 = vadd.xlane.f32.xlu0 %v279
  %v281 = vpop.xlane.xlu0 %280
  %v282 = vsel %vm256, %v275, 0.0
  %283 = vadd.xlane.f32.xlu0 %v282
  %v284 = vpop.xlane.xlu0 %283
  %v285 = vmul.f32 %v278, %v266
  %v286 = vmul.f32 %v281, %v266
  %v287 = vmul.f32 %v284, %v266
  %v288 = vadd.f32 %v285, 1e-06
  %v289 = vadd.f32 %v286, 1e-06
  %v290 = vadd.f32 %v287, 1e-06
  %v291 = vrsqrt.pop %v288
  %v292 = vrsqrt.pop %v289
  %v293 = vrsqrt.pop %v290
  %v294 = vmul.f32 %v270, %v291
  %v295 = vmul.f32 %v271, %v292
  %v296 = vmul.f32 %v272, %v293
  %v297 = vld [vmem:[%s9] sm:$0x1]
  %v299 = vlaneseq
  %v300 = vshrl.u32 %v299, 7
  %v301 = vsub.s32 0, %v300
  %v302 = vrot.slane %v297, %v301
  %v304 = vmul.f32 %v294, %v302
  %v305 = vmul.f32 %v295, %v302
  %v306 = vmul.f32 %v296, %v302
  %v307 = vld [vmem:[%s11] sm:$0x1]
  %v309 = vlaneseq
  %v310 = vshrl.u32 %v309, 7
  %v311 = vsub.s32 0, %v310
  %v312 = vrot.slane %v307, %v311
  %v314 = vadd.f32 %v304, %v312
  %v315 = vadd.f32 %v305, %v312
  %v316 = vadd.f32 %v306, %v312
  %v317 = vpack.c.bf16 %v315, %v314
  %v318 = vpack.c.bf16 %v316, %v316
  %v319 = vld [vmem:[%s13] sm:$0xf]
  %v320 = vld [vmem:[%s13 + $0x4] sm:$0xf]
  %v321 = vld [vmem:[%s13 + $0x8] sm:$0xf]
  %v322 = vld [vmem:[%s13 + $0xc] sm:$0xf]
  %v323 = vld [vmem:[%s15] sm:$0x1]
  %v325 = vlaneseq
  %v326 = vshrl.u32 %v325, 7
  %v327 = vsub.s32 0, %v326
  %v328 = vrot.slane %v323, %v327
  %v334 = vunpack.c.l.b16 %v319
  %v335 = vunpack.c.l.b16 %v320
  %v336 = vunpack.c.l.b16 %v321
  %v337 = vunpack.c.l.b16 %v322
  %v338 = vpack.c.b16 %v335, %v334
  %v339 = vpack.c.b16 %v337, %v336
  %v343 = vsel %vm256, %v317, 0
  %v346 = vsel %vm256, %v318, 0
  %348 = vmatprep.subr.bf16.mxu0 0
  %349 = vmatpush1.bf16.msra.mxu0 %v338
  %350 = vmatprep.subr.bf16.mxu0 0
  %351 = vmatpush1.bf16.msra.mxu0 %v339
  %352 = vmatprep.subr.bf16.mxu0 0
  %353 = vmatpush1.bf16.msra.mxu0 0
  %354 = vmatprep.subr.bf16.mxu0 0
  %355 = vmatpush1.bf16.msra.mxu0 0
  %356 = vmatprep.subr.bf16.mxu0 0
  %357 = vmatpush1.bf16.msra.mxu0 0
  %358 = vmatprep.subr.bf16.mxu0 0
  %359 = vmatpush1.bf16.msra.mxu0 0
  %360 = vmatprep.subr.bf16.mxu0 0
  %361 = vmatpush1.bf16.msra.mxu0 0
  %362 = vmatprep.subr.bf16.mxu0 0
  %363 = vmatpush1.bf16.msra.mxu0 0
  %364 = vmatprep.subr.bf16.mxu0 0
  %365 = vmatpush1.bf16.msra.mxu0 0
  %366 = vmatprep.subr.bf16.mxu0 0
  %367 = vmatpush1.bf16.msra.mxu0 0
  %368 = vmatprep.subr.bf16.mxu0 0
  %369 = vmatpush1.bf16.msra.mxu0 0
  %370 = vmatprep.subr.bf16.mxu0 0
  %371 = vmatpush1.bf16.msra.mxu0 0
  %372 = vmatprep.subr.bf16.mxu0 0
  %373 = vmatpush1.bf16.msra.mxu0 0
  %374 = vmatprep.subr.bf16.mxu0 0
  %375 = vmatpush1.bf16.msra.mxu0 0
  %376 = vmatprep.subr.bf16.mxu0 0
  %377 = vmatpush1.bf16.msra.mxu0 0
  %378 = vmatprep.subr.bf16.mxu0 0
  %379 = vmatpush1.bf16.msra.mxu0 0
  %380 = vmatprep.mubr.bf16.mxu0 0
  %381 = vmatmul.mubr.bf16.gmra.mrb[0].mxu0 %v343
  %v382 = vpop.f32.mrb[0].mxu0
  %v383 = vadd.f32 %v328, %v382
  %v384 = vpop.f32.mrb[0].mxu0
  %v385 = vpop.f32.mrb[0].mxu0
  %v386 = vadd.f32 %v328, %v385
  %v387 = vpop.f32.mrb[0].mxu0
  %388 = vmatprep.mubr.bf16.mxu0 0
  %389 = vmatmul.mubr.bf16.gmra.mrb[0].mxu0 %v346
  %v390 = vpop.f32.mrb[0].mxu0
  %v391 = vadd.f32 %v328, %v390
  %v392 = vpop.f32.mrb[0].mxu0
  %v393 = vpop.f32.mrb[0].mxu0
  %v394 = vpop.f32.mrb[0].mxu0
  %395 = vdwg.mxu0
  %v396 = vpack.c.bf16 %v386, %v383
  %398 = vrot.lane.b32.xlu0 %v396, 96
  %v399 = vpop.permute.xlu0 %398
  %vm400 = vcmask 64512
  %v402 = vsel %vm400, %v396, 0
  %v405 = vsel %vm400, %v399, 0
  %407 = vmatprep.subr.bf16.mxu0 0
  %408 = vmatpush1.bf16.xpose.msra.mxu0 %v405
  %409 = vmatprep.subr.bf16.mxu0 0
  %410 = vmatpush1.bf16.xpose.msra.mxu0 0
  %411 = vmatprep.subr.bf16.mxu0 0
  %412 = vmatpush1.bf16.xpose.msra.mxu0 0
  %413 = vmatprep.subr.bf16.mxu0 0
  %414 = vmatpush1.bf16.xpose.msra.mxu0 0
  %415 = vmatprep.subr.bf16.mxu0 0
  %416 = vmatpush1.bf16.xpose.msra.mxu0 0
  %417 = vmatprep.subr.bf16.mxu0 0
  %418 = vmatpush1.bf16.xpose.msra.mxu0 0
  %419 = vmatprep.subr.bf16.mxu0 0
  %420 = vmatpush1.bf16.xpose.msra.mxu0 0
  %421 = vmatprep.subr.bf16.mxu0 0
  %422 = vmatpush1.bf16.xpose.msra.mxu0 0
  %423 = vmatprep.subr.bf16.mxu0 0
  %424 = vmatpush1.bf16.xpose.msra.mxu0 0
  %425 = vmatprep.subr.bf16.mxu0 0
  %426 = vmatpush1.bf16.xpose.msra.mxu0 0
  %427 = vmatprep.subr.bf16.mxu0 0
  %428 = vmatpush1.bf16.xpose.msra.mxu0 0
  %429 = vmatprep.subr.bf16.mxu0 0
  %430 = vmatpush1.bf16.xpose.msra.mxu0 0
  %431 = vmatprep.subr.bf16.mxu0 0
  %432 = vmatpush1.bf16.xpose.msra.mxu0 0
  %433 = vmatprep.subr.bf16.mxu0 0
  %434 = vmatpush1.bf16.xpose.msra.mxu0 0
  %435 = vmatprep.subr.bf16.mxu0 0
  %436 = vmatpush1.bf16.xpose.msra.mxu0 0
  %437 = vmatprep.subr.bf16.mxu0 0
  %438 = vmatpush1.bf16.xpose.msra.mxu0 0
  %439 = vmatprep.mubr.bf16.mxu0 0
  %440 = vmatmul.mubr.bf16.gmra.mrb[0].mxu0 %v402
  %v441 = vpop.f32.mrb[0].mxu0
  %v442 = vadd.f32 0.0, %v441
  %v443 = vpop.f32.mrb[0].mxu0
  %v444 = vpop.f32.mrb[0].mxu0
  %v445 = vadd.f32 0.0, %v444
  %v446 = vpop.f32.mrb[0].mxu0
  %447 = vdwg.mxu0
  %v448 = vmul.f32 %v442, 0.35355338
  %v449 = vmul.f32 %v445, 0.35355338
  %vm450 = vcmask 97280
  %v451 = vsel %vm450, %v448, -inf
  %452 = vmax.xlane.f32.xlu0 %v451
  %v453 = vpop.xlane.xlu0 %452
  %vm454 = vcmask 93184
  %v455 = vsel %vm454, %v449, -inf
  %456 = vmax.xlane.f32.xlu0 %v455
  %v457 = vpop.xlane.xlu0 %456
  %v458 = vsub.f32 %v448, %v453
  %v459 = vsub.f32 %v449, %v457
  %v460 = vmul.f32 %v458, 1.442695
  %v461 = vpow.pop %v460
  %v462 = vmul.f32 %v459, 1.442695
  %v463 = vpow.pop %v462
  %v464 = vsel %vm450, %v461, 0.0
  %465 = vadd.xlane.f32.xlu0 %v464
  %v466 = vpop.xlane.xlu0 %465
  %v467 = vsel %vm454, %v463, 0.0
  %468 = vadd.xlane.f32.xlu0 %v467
  %v469 = vpop.xlane.xlu0 %468
  %v470 = vrcp.pop %v466
  %v471 = vrcp.pop %v469
  %v472 = vmul.f32 %v461, %v470
  %v473 = vmul.f32 %v463, %v471
  %v474 = vpack.c.bf16 %v473, %v472
  %475 = vrot.lane.b32.xlu0 %v396, 64
  %v476 = vpop.permute.xlu0 %475
  %v478 = vsel %vm450, %v474, 0
  %vm480 = vcmask 1045504
  %v482 = vsel %vm480, %v476, 0
  %484 = vmatprep.subr.bf16.mxu0 0
  %485 = vmatpush1.bf16.msra.mxu0 %v482
  %486 = vmatprep.subr.bf16.mxu0 0
  %487 = vmatpush1.bf16.msra.mxu0 0
  %488 = vmatprep.subr.bf16.mxu0 0
  %489 = vmatpush1.bf16.msra.mxu0 0
  %490 = vmatprep.subr.bf16.mxu0 0
  %491 = vmatpush1.bf16.msra.mxu0 0
  %492 = vmatprep.subr.bf16.mxu0 0
  %493 = vmatpush1.bf16.msra.mxu0 0
  %494 = vmatprep.subr.bf16.mxu0 0
  %495 = vmatpush1.bf16.msra.mxu0 0
  %496 = vmatprep.subr.bf16.mxu0 0
  %497 = vmatpush1.bf16.msra.mxu0 0
  %498 = vmatprep.subr.bf16.mxu0 0
  %499 = vmatpush1.bf16.msra.mxu0 0
  %500 = vmatprep.subr.bf16.mxu0 0
  %501 = vmatpush1.bf16.msra.mxu0 0
  %502 = vmatprep.subr.bf16.mxu0 0
  %503 = vmatpush1.bf16.msra.mxu0 0
  %504 = vmatprep.subr.bf16.mxu0 0
  %505 = vmatpush1.bf16.msra.mxu0 0
  %506 = vmatprep.subr.bf16.mxu0 0
  %507 = vmatpush1.bf16.msra.mxu0 0
  %508 = vmatprep.subr.bf16.mxu0 0
  %509 = vmatpush1.bf16.msra.mxu0 0
  %510 = vmatprep.subr.bf16.mxu0 0
  %511 = vmatpush1.bf16.msra.mxu0 0
  %512 = vmatprep.subr.bf16.mxu0 0
  %513 = vmatpush1.bf16.msra.mxu0 0
  %514 = vmatprep.subr.bf16.mxu0 0
  %515 = vmatpush1.bf16.msra.mxu0 0
  %516 = vmatprep.mubr.bf16.mxu0 0
  %517 = vmatmul.mubr.bf16.gmra.mrb[0].mxu0 %v478
  %v518 = vpop.f32.mrb[0].mxu0
  %v519 = vadd.f32 0.0, %v518
  %v520 = vpop.f32.mrb[0].mxu0
  %v521 = vpop.f32.mrb[0].mxu0
  %v522 = vadd.f32 0.0, %v521
  %v523 = vpop.f32.mrb[0].mxu0
  %524 = vdwg.mxu0
  %525 = vrot.lane.b32.xlu0 %v396, 120
  %v526 = vpop.permute.xlu0 %525
  %527 = vrot.lane.b32.xlu0 %v396, 88
  %v528 = vpop.permute.xlu0 %527
  %v530 = vsel %vm400, %v526, 0
  %v533 = vsel %vm400, %v528, 0
  %535 = vmatprep.subr.bf16.mxu0 0
  %536 = vmatpush1.bf16.xpose.msra.mxu0 %v533
  %537 = vmatprep.subr.bf16.mxu0 0
  %538 = vmatpush1.bf16.xpose.msra.mxu0 0
  %539 = vmatprep.subr.bf16.mxu0 0
  %540 = vmatpush1.bf16.xpose.msra.mxu0 0
  %541 = vmatprep.subr.bf16.mxu0 0
  %542 = vmatpush1.bf16.xpose.msra.mxu0 0
  %543 = vmatprep.subr.bf16.mxu0 0
  %544 = vmatpush1.bf16.xpose.msra.mxu0 0
  %545 = vmatprep.subr.bf16.mxu0 0
  %546 = vmatpush1.bf16.xpose.msra.mxu0 0
  %547 = vmatprep.subr.bf16.mxu0 0
  %548 = vmatpush1.bf16.xpose.msra.mxu0 0
  %549 = vmatprep.subr.bf16.mxu0 0
  %550 = vmatpush1.bf16.xpose.msra.mxu0 0
  %551 = vmatprep.subr.bf16.mxu0 0
  %552 = vmatpush1.bf16.xpose.msra.mxu0 0
  %553 = vmatprep.subr.bf16.mxu0 0
  %554 = vmatpush1.bf16.xpose.msra.mxu0 0
  %555 = vmatprep.subr.bf16.mxu0 0
  %556 = vmatpush1.bf16.xpose.msra.mxu0 0
  %557 = vmatprep.subr.bf16.mxu0 0
  %558 = vmatpush1.bf16.xpose.msra.mxu0 0
  %559 = vmatprep.subr.bf16.mxu0 0
  %560 = vmatpush1.bf16.xpose.msra.mxu0 0
  %561 = vmatprep.subr.bf16.mxu0 0
  %562 = vmatpush1.bf16.xpose.msra.mxu0 0
  %563 = vmatprep.subr.bf16.mxu0 0
  %564 = vmatpush1.bf16.xpose.msra.mxu0 0
  %565 = vmatprep.subr.bf16.mxu0 0
  %566 = vmatpush1.bf16.xpose.msra.mxu0 0
  %567 = vmatprep.mubr.bf16.mxu0 0
  %568 = vmatmul.mubr.bf16.gmra.mrb[0].mxu0 %v530
  %v569 = vpop.f32.mrb[0].mxu0
  %v570 = vadd.f32 0.0, %v569
  %v571 = vpop.f32.mrb[0].mxu0
  %v572 = vpop.f32.mrb[0].mxu0
  %v573 = vadd.f32 0.0, %v572
  %v574 = vpop.f32.mrb[0].mxu0
  %575 = vdwg.mxu0
  %v576 = vmul.f32 %v570, 0.35355338
  %v577 = vmul.f32 %v573, 0.35355338
  %v578 = vsel %vm450, %v576, -inf
  %579 = vmax.xlane.f32.xlu0 %v578
  %v580 = vpop.xlane.xlu0 %579
  %v581 = vsel %vm454, %v577, -inf
  %582 = vmax.xlane.f32.xlu0 %v581
  %v583 = vpop.xlane.xlu0 %582
  %v584 = vsub.f32 %v576, %v580
  %v585 = vsub.f32 %v577, %v583
  %v586 = vmul.f32 %v584, 1.442695
  %v587 = vpow.pop %v586
  %v588 = vmul.f32 %v585, 1.442695
  %v589 = vpow.pop %v588
  %v590 = vsel %vm450, %v587, 0.0
  %591 = vadd.xlane.f32.xlu0 %v590
  %v592 = vpop.xlane.xlu0 %591
  %v593 = vsel %vm454, %v589, 0.0
  %594 = vadd.xlane.f32.xlu0 %v593
  %v595 = vpop.xlane.xlu0 %594
  %v596 = vrcp.pop %v592
  %v597 = vrcp.pop %v595
  %v598 = vmul.f32 %v587, %v596
  %v599 = vmul.f32 %v589, %v597
  %v600 = vpack.c.bf16 %v599, %v598
  %601 = vrot.lane.b32.xlu0 %v396, 56
  %v602 = vpop.permute.xlu0 %601
  %v604 = vsel %vm450, %v600, 0
  %v607 = vsel %vm480, %v602, 0
  %609 = vmatprep.subr.bf16.mxu0 0
  %610 = vmatpush1.bf16.msra.mxu0 %v607
  %611 = vmatprep.subr.bf16.mxu0 0
  %612 = vmatpush1.bf16.msra.mxu0 0
  %613 = vmatprep.subr.bf16.mxu0 0
  %614 = vmatpush1.bf16.msra.mxu0 0
  %615 = vmatprep.subr.bf16.mxu0 0
  %616 = vmatpush1.bf16.msra.mxu0 0
  %617 = vmatprep.subr.bf16.mxu0 0
  %618 = vmatpush1.bf16.msra.mxu0 0
  %619 = vmatprep.subr.bf16.mxu0 0
  %620 = vmatpush1.bf16.msra.mxu0 0
  %621 = vmatprep.subr.bf16.mxu0 0
  %622 = vmatpush1.bf16.msra.mxu0 0
  %623 = vmatprep.subr.bf16.mxu0 0
  %624 = vmatpush1.bf16.msra.mxu0 0
  %625 = vmatprep.subr.bf16.mxu0 0
  %626 = vmatpush1.bf16.msra.mxu0 0
  %627 = vmatprep.subr.bf16.mxu0 0
  %628 = vmatpush1.bf16.msra.mxu0 0
  %629 = vmatprep.subr.bf16.mxu0 0
  %630 = vmatpush1.bf16.msra.mxu0 0
  %631 = vmatprep.subr.bf16.mxu0 0
  %632 = vmatpush1.bf16.msra.mxu0 0
  %633 = vmatprep.subr.bf16.mxu0 0
  %634 = vmatpush1.bf16.msra.mxu0 0
  %635 = vmatprep.subr.bf16.mxu0 0
  %636 = vmatpush1.bf16.msra.mxu0 0
  %637 = vmatprep.subr.bf16.mxu0 0
  %638 = vmatpush1.bf16.msra.mxu0 0
  %639 = vmatprep.subr.bf16.mxu0 0
  %640 = vmatpush1.bf16.msra.mxu0 0
  %641 = vmatprep.mubr.bf16.mxu0 0
  %642 = vmatmul.mubr.bf16.gmra.mrb[0].mxu0 %v604
  %v643 = vpop.f32.mrb[0].mxu0
  %v644 = vadd.f32 0.0, %v643
  %v645 = vpop.f32.mrb[0].mxu0
  %v646 = vpop.f32.mrb[0].mxu0
  %v647 = vadd.f32 0.0, %v646
  %v648 = vpop.f32.mrb[0].mxu0
  %649 = vdwg.mxu0
  %650 = vrot.lane.b32.xlu0 %v396, 112
  %v651 = vpop.permute.xlu0 %650
  %652 = vrot.lane.b32.xlu0 %v396, 80
  %v653 = vpop.permute.xlu0 %652
  %v655 = vsel %vm400, %v651, 0
  %v658 = vsel %vm400, %v653, 0
  %660 = vmatprep.subr.bf16.mxu0 0
  %661 = vmatpush1.bf16.xpose.msra.mxu0 %v658
  %662 = vmatprep.subr.bf16.mxu0 0
  %663 = vmatpush1.bf16.xpose.msra.mxu0 0
  %664 = vmatprep.subr.bf16.mxu0 0
  %665 = vmatpush1.bf16.xpose.msra.mxu0 0
  %666 = vmatprep.subr.bf16.mxu0 0
  %667 = vmatpush1.bf16.xpose.msra.mxu0 0
  %668 = vmatprep.subr.bf16.mxu0 0
  %669 = vmatpush1.bf16.xpose.msra.mxu0 0
  %670 = vmatprep.subr.bf16.mxu0 0
  %671 = vmatpush1.bf16.xpose.msra.mxu0 0
  %672 = vmatprep.subr.bf16.mxu0 0
  %673 = vmatpush1.bf16.xpose.msra.mxu0 0
  %674 = vmatprep.subr.bf16.mxu0 0
  %675 = vmatpush1.bf16.xpose.msra.mxu0 0
  %676 = vmatprep.subr.bf16.mxu0 0
  %677 = vmatpush1.bf16.xpose.msra.mxu0 0
  %678 = vmatprep.subr.bf16.mxu0 0
  %679 = vmatpush1.bf16.xpose.msra.mxu0 0
  %680 = vmatprep.subr.bf16.mxu0 0
  %681 = vmatpush1.bf16.xpose.msra.mxu0 0
  %682 = vmatprep.subr.bf16.mxu0 0
  %683 = vmatpush1.bf16.xpose.msra.mxu0 0
  %684 = vmatprep.subr.bf16.mxu0 0
  %685 = vmatpush1.bf16.xpose.msra.mxu0 0
  %686 = vmatprep.subr.bf16.mxu0 0
  %687 = vmatpush1.bf16.xpose.msra.mxu0 0
  %688 = vmatprep.subr.bf16.mxu0 0
  %689 = vmatpush1.bf16.xpose.msra.mxu0 0
  %690 = vmatprep.subr.bf16.mxu0 0
  %691 = vmatpush1.bf16.xpose.msra.mxu0 0
  %692 = vmatprep.mubr.bf16.mxu0 0
  %693 = vmatmul.mubr.bf16.gmra.mrb[0].mxu0 %v655
  %v694 = vpop.f32.mrb[0].mxu0
  %v695 = vadd.f32 0.0, %v694
  %v696 = vpop.f32.mrb[0].mxu0
  %v697 = vpop.f32.mrb[0].mxu0
  %v698 = vadd.f32 0.0, %v697
  %v699 = vpop.f32.mrb[0].mxu0
  %700 = vdwg.mxu0
  %v701 = vmul.f32 %v695, 0.35355338
  %v702 = vmul.f32 %v698, 0.35355338
  %v703 = vsel %vm450, %v701, -inf
  %704 = vmax.xlane.f32.xlu0 %v703
  %v705 = vpop.xlane.xlu0 %704
  %v706 = vsel %vm454, %v702, -inf
  %707 = vmax.xlane.f32.xlu0 %v706
  %v708 = vpop.xlane.xlu0 %707
  %v709 = vsub.f32 %v701, %v705
  %v710 = vsub.f32 %v702, %v708
  %v711 = vmul.f32 %v709, 1.442695
  %v712 = vpow.pop %v711
  %v713 = vmul.f32 %v710, 1.442695
  %v714 = vpow.pop %v713
  %v715 = vsel %vm450, %v712, 0.0
  %716 = vadd.xlane.f32.xlu0 %v715
  %v717 = vpop.xlane.xlu0 %716
  %v718 = vsel %vm454, %v714, 0.0
  %719 = vadd.xlane.f32.xlu0 %v718
  %v720 = vpop.xlane.xlu0 %719
  %v721 = vrcp.pop %v717
  %v722 = vrcp.pop %v720
  %v723 = vmul.f32 %v712, %v721
  %v724 = vmul.f32 %v714, %v722
  %v725 = vpack.c.bf16 %v724, %v723
  %726 = vrot.lane.b32.xlu0 %v396, 48
  %v727 = vpop.permute.xlu0 %726
  %v729 = vsel %vm450, %v725, 0
  %v732 = vsel %vm480, %v727, 0
  %734 = vmatprep.subr.bf16.mxu0 0
  %735 = vmatpush1.bf16.msra.mxu0 %v732
  %736 = vmatprep.subr.bf16.mxu0 0
  %737 = vmatpush1.bf16.msra.mxu0 0
  %738 = vmatprep.subr.bf16.mxu0 0
  %739 = vmatpush1.bf16.msra.mxu0 0
  %740 = vmatprep.subr.bf16.mxu0 0
  %741 = vmatpush1.bf16.msra.mxu0 0
  %742 = vmatprep.subr.bf16.mxu0 0
  %743 = vmatpush1.bf16.msra.mxu0 0
  %744 = vmatprep.subr.bf16.mxu0 0
  %745 = vmatpush1.bf16.msra.mxu0 0
  %746 = vmatprep.subr.bf16.mxu0 0
  %747 = vmatpush1.bf16.msra.mxu0 0
  %748 = vmatprep.subr.bf16.mxu0 0
  %749 = vmatpush1.bf16.msra.mxu0 0
  %750 = vmatprep.subr.bf16.mxu0 0
  %751 = vmatpush1.bf16.msra.mxu0 0
  %752 = vmatprep.subr.bf16.mxu0 0
  %753 = vmatpush1.bf16.msra.mxu0 0
  %754 = vmatprep.subr.bf16.mxu0 0
  %755 = vmatpush1.bf16.msra.mxu0 0
  %756 = vmatprep.subr.bf16.mxu0 0
  %757 = vmatpush1.bf16.msra.mxu0 0
  %758 = vmatprep.subr.bf16.mxu0 0
  %759 = vmatpush1.bf16.msra.mxu0 0
  %760 = vmatprep.subr.bf16.mxu0 0
  %761 = vmatpush1.bf16.msra.mxu0 0
  %762 = vmatprep.subr.bf16.mxu0 0
  %763 = vmatpush1.bf16.msra.mxu0 0
  %764 = vmatprep.subr.bf16.mxu0 0
  %765 = vmatpush1.bf16.msra.mxu0 0
  %766 = vmatprep.mubr.bf16.mxu0 0
  %767 = vmatmul.mubr.bf16.gmra.mrb[0].mxu0 %v729
  %v768 = vpop.f32.mrb[0].mxu0
  %v769 = vadd.f32 0.0, %v768
  %v770 = vpop.f32.mrb[0].mxu0
  %v771 = vpop.f32.mrb[0].mxu0
  %v772 = vadd.f32 0.0, %v771
  %v773 = vpop.f32.mrb[0].mxu0
  %774 = vdwg.mxu0
  %775 = vrot.lane.b32.xlu0 %v396, 104
  %v776 = vpop.permute.xlu0 %775
  %777 = vrot.lane.b32.xlu0 %v396, 72
  %v778 = vpop.permute.xlu0 %777
  %v780 = vsel %vm400, %v776, 0
  %v783 = vsel %vm400, %v778, 0
  %785 = vmatprep.subr.bf16.mxu0 0
  %786 = vmatpush1.bf16.xpose.msra.mxu0 %v783
  %787 = vmatprep.subr.bf16.mxu0 0
  %788 = vmatpush1.bf16.xpose.msra.mxu0 0
  %789 = vmatprep.subr.bf16.mxu0 0
  %790 = vmatpush1.bf16.xpose.msra.mxu0 0
  %791 = vmatprep.subr.bf16.mxu0 0
  %792 = vmatpush1.bf16.xpose.msra.mxu0 0
  %793 = vmatprep.subr.bf16.mxu0 0
  %794 = vmatpush1.bf16.xpose.msra.mxu0 0
  %795 = vmatprep.subr.bf16.mxu0 0
  %796 = vmatpush1.bf16.xpose.msra.mxu0 0
  %797 = vmatprep.subr.bf16.mxu0 0
  %798 = vmatpush1.bf16.xpose.msra.mxu0 0
  %799 = vmatprep.subr.bf16.mxu0 0
  %800 = vmatpush1.bf16.xpose.msra.mxu0 0
  %801 = vmatprep.subr.bf16.mxu0 0
  %802 = vmatpush1.bf16.xpose.msra.mxu0 0
  %803 = vmatprep.subr.bf16.mxu0 0
  %804 = vmatpush1.bf16.xpose.msra.mxu0 0
  %805 = vmatprep.subr.bf16.mxu0 0
  %806 = vmatpush1.bf16.xpose.msra.mxu0 0
  %807 = vmatprep.subr.bf16.mxu0 0
  %808 = vmatpush1.bf16.xpose.msra.mxu0 0
  %809 = vmatprep.subr.bf16.mxu0 0
  %810 = vmatpush1.bf16.xpose.msra.mxu0 0
  %811 = vmatprep.subr.bf16.mxu0 0
  %812 = vmatpush1.bf16.xpose.msra.mxu0 0
  %813 = vmatprep.subr.bf16.mxu0 0
  %814 = vmatpush1.bf16.xpose.msra.mxu0 0
  %815 = vmatprep.subr.bf16.mxu0 0
  %816 = vmatpush1.bf16.xpose.msra.mxu0 0
  %817 = vmatprep.mubr.bf16.mxu0 0
  %818 = vmatmul.mubr.bf16.gmra.mrb[0].mxu0 %v780
  %v819 = vpop.f32.mrb[0].mxu0
  %v820 = vadd.f32 0.0, %v819
  %v821 = vpop.f32.mrb[0].mxu0
  %v822 = vpop.f32.mrb[0].mxu0
  %v823 = vadd.f32 0.0, %v822
  %v824 = vpop.f32.mrb[0].mxu0
  %825 = vdwg.mxu0
  %v826 = vmul.f32 %v820, 0.35355338
  %v827 = vmul.f32 %v823, 0.35355338
  %v828 = vsel %vm450, %v826, -inf
  %829 = vmax.xlane.f32.xlu0 %v828
  %v830 = vpop.xlane.xlu0 %829
  %v831 = vsel %vm454, %v827, -inf
  %832 = vmax.xlane.f32.xlu0 %v831
  %v833 = vpop.xlane.xlu0 %832
  %v834 = vsub.f32 %v826, %v830
  %v835 = vsub.f32 %v827, %v833
  %v836 = vmul.f32 %v834, 1.442695
  %v837 = vpow.pop %v836
  %v838 = vmul.f32 %v835, 1.442695
  %v839 = vpow.pop %v838
  %v840 = vsel %vm450, %v837, 0.0
  %841 = vadd.xlane.f32.xlu0 %v840
  %v842 = vpop.xlane.xlu0 %841
  %v843 = vsel %vm454, %v839, 0.0
  %844 = vadd.xlane.f32.xlu0 %v843
  %v845 = vpop.xlane.xlu0 %844
  %v846 = vrcp.pop %v842
  %v847 = vrcp.pop %v845
  %v848 = vmul.f32 %v837, %v846
  %v849 = vmul.f32 %v839, %v847
  %v850 = vpack.c.bf16 %v849, %v848
  %851 = vrot.lane.b32.xlu0 %v396, 40
  %v852 = vpop.permute.xlu0 %851
  %v854 = vsel %vm450, %v850, 0
  %v857 = vsel %vm480, %v852, 0
  %859 = vmatprep.subr.bf16.mxu0 0
  %860 = vmatpush1.bf16.msra.mxu0 %v857
  %861 = vmatprep.subr.bf16.mxu0 0
  %862 = vmatpush1.bf16.msra.mxu0 0
  %863 = vmatprep.subr.bf16.mxu0 0
  %864 = vmatpush1.bf16.msra.mxu0 0
  %865 = vmatprep.subr.bf16.mxu0 0
  %866 = vmatpush1.bf16.msra.mxu0 0
  %867 = vmatprep.subr.bf16.mxu0 0
  %868 = vmatpush1.bf16.msra.mxu0 0
  %869 = vmatprep.subr.bf16.mxu0 0
  %870 = vmatpush1.bf16.msra.mxu0 0
  %871 = vmatprep.subr.bf16.mxu0 0
  %872 = vmatpush1.bf16.msra.mxu0 0
  %873 = vmatprep.subr.bf16.mxu0 0
  %874 = vmatpush1.bf16.msra.mxu0 0
  %875 = vmatprep.subr.bf16.mxu0 0
  %876 = vmatpush1.bf16.msra.mxu0 0
  %877 = vmatprep.subr.bf16.mxu0 0
  %878 = vmatpush1.bf16.msra.mxu0 0
  %879 = vmatprep.subr.bf16.mxu0 0
  %880 = vmatpush1.bf16.msra.mxu0 0
  %881 = vmatprep.subr.bf16.mxu0 0
  %882 = vmatpush1.bf16.msra.mxu0 0
  %883 = vmatprep.subr.bf16.mxu0 0
  %884 = vmatpush1.bf16.msra.mxu0 0
  %885 = vmatprep.subr.bf16.mxu0 0
  %886 = vmatpush1.bf16.msra.mxu0 0
  %887 = vmatprep.subr.bf16.mxu0 0
  %888 = vmatpush1.bf16.msra.mxu0 0
  %889 = vmatprep.subr.bf16.mxu0 0
  %890 = vmatpush1.bf16.msra.mxu0 0
  %891 = vmatprep.mubr.bf16.mxu0 0
  %892 = vmatmul.mubr.bf16.gmra.mrb[0].mxu0 %v854
  %v893 = vpop.f32.mrb[0].mxu0
  %v894 = vadd.f32 0.0, %v893
  %v895 = vpop.f32.mrb[0].mxu0
  %v896 = vpop.f32.mrb[0].mxu0
  %v897 = vadd.f32 0.0, %v896
  %v898 = vpop.f32.mrb[0].mxu0
  %899 = vdwg.mxu0
  %902 = vrot.lane.b32.xlu0 %v644, 8
  %v903 = vpop.permute.xlu0 %902
  %904 = vrot.lane.b32.xlu0 %v647, 8
  %v905 = vpop.permute.xlu0 %904
  %910 = vrot.lane.b32.xlu0 %v769, 16
  %v911 = vpop.permute.xlu0 %910
  %912 = vrot.lane.b32.xlu0 %v772, 16
  %v913 = vpop.permute.xlu0 %912
  %918 = vrot.lane.b32.xlu0 %v894, 24
  %v919 = vpop.permute.xlu0 %918
  %920 = vrot.lane.b32.xlu0 %v897, 24
  %v921 = vpop.permute.xlu0 %920
  %v924 = vsel %vm400, %v519, %v903
  %v925 = vsel %vm400, %v522, %v905
  %vm926 = vcmask 130048
  %v927 = vsel %vm926, %v924, %v911
  %v928 = vsel %vm926, %v925, %v913
  %vm929 = vcmask 195584
  %v930 = vsel %vm929, %v927, %v919
  %v931 = vsel %vm929, %v928, %v921
  %v932 = vpack.c.bf16 %v391, %v386
  %v934 = vrot.slane %v932, 2
  %935 = vrot.lane.b32.xlu0 %v934, 96
  %v936 = vpop.permute.xlu0 %935
  %v938 = vsel %vm400, %v934, 0
  %v941 = vsel %vm400, %v936, 0
  %943 = vmatprep.subr.bf16.mxu0 0
  %944 = vmatpush1.bf16.xpose.msra.mxu0 %v941
  %945 = vmatprep.subr.bf16.mxu0 0
  %946 = vmatpush1.bf16.xpose.msra.mxu0 0
  %947 = vmatprep.subr.bf16.mxu0 0
  %948 = vmatpush1.bf16.xpose.msra.mxu0 0
  %949 = vmatprep.subr.bf16.mxu0 0
  %950 = vmatpush1.bf16.xpose.msra.mxu0 0
  %951 = vmatprep.subr.bf16.mxu0 0
  %952 = vmatpush1.bf16.xpose.msra.mxu0 0
  %953 = vmatprep.subr.bf16.mxu0 0
  %954 = vmatpush1.bf16.xpose.msra.mxu0 0
  %955 = vmatprep.subr.bf16.mxu0 0
  %956 = vmatpush1.bf16.xpose.msra.mxu0 0
  %957 = vmatprep.subr.bf16.mxu0 0
  %958 = vmatpush1.bf16.xpose.msra.mxu0 0
  %959 = vmatprep.subr.bf16.mxu0 0
  %960 = vmatpush1.bf16.xpose.msra.mxu0 0
  %961 = vmatprep.subr.bf16.mxu0 0
  %962 = vmatpush1.bf16.xpose.msra.mxu0 0
  %963 = vmatprep.subr.bf16.mxu0 0
  %964 = vmatpush1.bf16.xpose.msra.mxu0 0
  %965 = vmatprep.subr.bf16.mxu0 0
  %966 = vmatpush1.bf16.xpose.msra.mxu0 0
  %967 = vmatprep.subr.bf16.mxu0 0
  %968 = vmatpush1.bf16.xpose.msra.mxu0 0
  %969 = vmatprep.subr.bf16.mxu0 0
  %970 = vmatpush1.bf16.xpose.msra.mxu0 0
  %971 = vmatprep.subr.bf16.mxu0 0
  %972 = vmatpush1.bf16.xpose.msra.mxu0 0
  %973 = vmatprep.subr.bf16.mxu0 0
  %974 = vmatpush1.bf16.xpose.msra.mxu0 0
  %975 = vmatprep.mubr.bf16.mxu0 0
  %976 = vmatmul.mubr.bf16.gmra.mrb[0].mxu0 %v938
  %v977 = vpop.f32.mrb[0].mxu0
  %v978 = vadd.f32 0.0, %v977
  %v979 = vpop.f32.mrb[0].mxu0
  %v980 = vpop.f32.mrb[0].mxu0
  %v981 = vadd.f32 0.0, %v980
  %v982 = vpop.f32.mrb[0].mxu0
  %983 = vdwg.mxu0
  %v984 = vmul.f32 %v978, 0.35355338
  %v985 = vmul.f32 %v981, 0.35355338
  %v986 = vsel %vm450, %v984, -inf
  %987 = vmax.xlane.f32.xlu0 %v986
  %v988 = vpop.xlane.xlu0 %987
  %v989 = vsel %vm454, %v985, -inf
  %990 = vmax.xlane.f32.xlu0 %v989
  %v991 = vpop.xlane.xlu0 %990
  %v992 = vsub.f32 %v984, %v988
  %v993 = vsub.f32 %v985, %v991
  %v994 = vmul.f32 %v992, 1.442695
  %v995 = vpow.pop %v994
  %v996 = vmul.f32 %v993, 1.442695
  %v997 = vpow.pop %v996
  %v998 = vsel %vm450, %v995, 0.0
  %999 = vadd.xlane.f32.xlu0 %v998
  %v1000 = vpop.xlane.xlu0 %999
  %v1001 = vsel %vm454, %v997, 0.0
  %1002 = vadd.xlane.f32.xlu0 %v1001
  %v1003 = vpop.xlane.xlu0 %1002
  %v1004 = vrcp.pop %v1000
  %v1005 = vrcp.pop %v1003
  %v1006 = vmul.f32 %v995, %v1004
  %v1007 = vmul.f32 %v997, %v1005
  %v1008 = vpack.c.bf16 %v1007, %v1006
  %1009 = vrot.lane.b32.xlu0 %v934, 64
  %v1010 = vpop.permute.xlu0 %1009
  %v1012 = vsel %vm450, %v1008, 0
  %v1015 = vsel %vm480, %v1010, 0
  %1017 = vmatprep.subr.bf16.mxu0 0
  %1018 = vmatpush1.bf16.msra.mxu0 %v1015
  %1019 = vmatprep.subr.bf16.mxu0 0
  %1020 = vmatpush1.bf16.msra.mxu0 0
  %1021 = vmatprep.subr.bf16.mxu0 0
  %1022 = vmatpush1.bf16.msra.mxu0 0
  %1023 = vmatprep.subr.bf16.mxu0 0
  %1024 = vmatpush1.bf16.msra.mxu0 0
  %1025 = vmatprep.subr.bf16.mxu0 0
  %1026 = vmatpush1.bf16.msra.mxu0 0
  %1027 = vmatprep.subr.bf16.mxu0 0
  %1028 = vmatpush1.bf16.msra.mxu0 0
  %1029 = vmatprep.subr.bf16.mxu0 0
  %1030 = vmatpush1.bf16.msra.mxu0 0
  %1031 = vmatprep.subr.bf16.mxu0 0
  %1032 = vmatpush1.bf16.msra.mxu0 0
  %1033 = vmatprep.subr.bf16.mxu0 0
  %1034 = vmatpush1.bf16.msra.mxu0 0
  %1035 = vmatprep.subr.bf16.mxu0 0
  %1036 = vmatpush1.bf16.msra.mxu0 0
  %1037 = vmatprep.subr.bf16.mxu0 0
  %1038 = vmatpush1.bf16.msra.mxu0 0
  %1039 = vmatprep.subr.bf16.mxu0 0
  %1040 = vmatpush1.bf16.msra.mxu0 0
  %1041 = vmatprep.subr.bf16.mxu0 0
  %1042 = vmatpush1.bf16.msra.mxu0 0
  %1043 = vmatprep.subr.bf16.mxu0 0
  %1044 = vmatpush1.bf16.msra.mxu0 0
  %1045 = vmatprep.subr.bf16.mxu0 0
  %1046 = vmatpush1.bf16.msra.mxu0 0
  %1047 = vmatprep.subr.bf16.mxu0 0
  %1048 = vmatpush1.bf16.msra.mxu0 0
  %1049 = vmatprep.mubr.bf16.mxu0 0
  %1050 = vmatmul.mubr.bf16.gmra.mrb[0].mxu0 %v1012
  %v1051 = vpop.f32.mrb[0].mxu0
  %v1052 = vadd.f32 0.0, %v1051
  %v1053 = vpop.f32.mrb[0].mxu0
  %v1054 = vpop.f32.mrb[0].mxu0
  %v1055 = vadd.f32 0.0, %v1054
  %v1056 = vpop.f32.mrb[0].mxu0
  %1057 = vdwg.mxu0
  %1058 = vrot.lane.b32.xlu0 %v934, 120
  %v1059 = vpop.permute.xlu0 %1058
  %1060 = vrot.lane.b32.xlu0 %v934, 88
  %v1061 = vpop.permute.xlu0 %1060
  %v1063 = vsel %vm400, %v1059, 0
  %v1066 = vsel %vm400, %v1061, 0
  %1068 = vmatprep.subr.bf16.mxu0 0
  %1069 = vmatpush1.bf16.xpose.msra.mxu0 %v1066
  %1070 = vmatprep.subr.bf16.mxu0 0
  %1071 = vmatpush1.bf16.xpose.msra.mxu0 0
  %1072 = vmatprep.subr.bf16.mxu0 0
  %1073 = vmatpush1.bf16.xpose.msra.mxu0 0
  %1074 = vmatprep.subr.bf16.mxu0 0
  %1075 = vmatpush1.bf16.xpose.msra.mxu0 0
  %1076 = vmatprep.subr.bf16.mxu0 0
  %1077 = vmatpush1.bf16.xpose.msra.mxu0 0
  %1078 = vmatprep.subr.bf16.mxu0 0
  %1079 = vmatpush1.bf16.xpose.msra.mxu0 0
  %1080 = vmatprep.subr.bf16.mxu0 0
  %1081 = vmatpush1.bf16.xpose.msra.mxu0 0
  %1082 = vmatprep.subr.bf16.mxu0 0
  %1083 = vmatpush1.bf16.xpose.msra.mxu0 0
  %1084 = vmatprep.subr.bf16.mxu0 0
  %1085 = vmatpush1.bf16.xpose.msra.mxu0 0
  %1086 = vmatprep.subr.bf16.mxu0 0
  %1087 = vmatpush1.bf16.xpose.msra.mxu0 0
  %1088 = vmatprep.subr.bf16.mxu0 0
  %1089 = vmatpush1.bf16.xpose.msra.mxu0 0
  %1090 = vmatprep.subr.bf16.mxu0 0
  %1091 = vmatpush1.bf16.xpose.msra.mxu0 0
  %1092 = vmatprep.subr.bf16.mxu0 0
  %1093 = vmatpush1.bf16.xpose.msra.mxu0 0
  %1094 = vmatprep.subr.bf16.mxu0 0
  %1095 = vmatpush1.bf16.xpose.msra.mxu0 0
  %1096 = vmatprep.subr.bf16.mxu0 0
  %1097 = vmatpush1.bf16.xpose.msra.mxu0 0
  %1098 = vmatprep.subr.bf16.mxu0 0
  %1099 = vmatpush1.bf16.xpose.msra.mxu0 0
  %1100 = vmatprep.mubr.bf16.mxu0 0
  %1101 = vmatmul.mubr.bf16.gmra.mrb[0].mxu0 %v1063
  %v1102 = vpop.f32.mrb[0].mxu0
  %v1103 = vadd.f32 0.0, %v1102
  %v1104 = vpop.f32.mrb[0].mxu0
  %v1105 = vpop.f32.mrb[0].mxu0
  %v1106 = vadd.f32 0.0, %v1105
  %v1107 = vpop.f32.mrb[0].mxu0
  %1108 = vdwg.mxu0
  %v1109 = vmul.f32 %v1103, 0.35355338
  %v1110 = vmul.f32 %v1106, 0.35355338
  %v1111 = vsel %vm450, %v1109, -inf
  %1112 = vmax.xlane.f32.xlu0 %v1111
  %v1113 = vpop.xlane.xlu0 %1112
  %v1114 = vsel %vm454, %v1110, -inf
  %1115 = vmax.xlane.f32.xlu0 %v1114
  %v1116 = vpop.xlane.xlu0 %1115
  %v1117 = vsub.f32 %v1109, %v1113
  %v1118 = vsub.f32 %v1110, %v1116
  %v1119 = vmul.f32 %v1117, 1.442695
  %v1120 = vpow.pop %v1119
  %v1121 = vmul.f32 %v1118, 1.442695
  %v1122 = vpow.pop %v1121
  %v1123 = vsel %vm450, %v1120, 0.0
  %1124 = vadd.xlane.f32.xlu0 %v1123
  %v1125 = vpop.xlane.xlu0 %1124
  %v1126 = vsel %vm454, %v1122, 0.0
  %1127 = vadd.xlane.f32.xlu0 %v1126
  %v1128 = vpop.xlane.xlu0 %1127
  %v1129 = vrcp.pop %v1125
  %v1130 = vrcp.pop %v1128
  %v1131 = vmul.f32 %v1120, %v1129
  %v1132 = vmul.f32 %v1122, %v1130
  %v1133 = vpack.c.bf16 %v1132, %v1131
  %1134 = vrot.lane.b32.xlu0 %v934, 56
  %v1135 = vpop.permute.xlu0 %1134
  %v1137 = vsel %vm450, %v1133, 0
  %v1140 = vsel %vm480, %v1135, 0
  %1142 = vmatprep.subr.bf16.mxu0 0
  %1143 = vmatpush1.bf16.msra.mxu0 %v1140
  %1144 = vmatprep.subr.bf16.mxu0 0
  %1145 = vmatpush1.bf16.msra.mxu0 0
  %1146 = vmatprep.subr.bf16.mxu0 0
  %1147 = vmatpush1.bf16.msra.mxu0 0
  %1148 = vmatprep.subr.bf16.mxu0 0
  %1149 = vmatpush1.bf16.msra.mxu0 0
  %1150 = vmatprep.subr.bf16.mxu0 0
  %1151 = vmatpush1.bf16.msra.mxu0 0
  %1152 = vmatprep.subr.bf16.mxu0 0
  %1153 = vmatpush1.bf16.msra.mxu0 0
  %1154 = vmatprep.subr.bf16.mxu0 0
  %1155 = vmatpush1.bf16.msra.mxu0 0
  %1156 = vmatprep.subr.bf16.mxu0 0
  %1157 = vmatpush1.bf16.msra.mxu0 0
  %1158 = vmatprep.subr.bf16.mxu0 0
  %1159 = vmatpush1.bf16.msra.mxu0 0
  %1160 = vmatprep.subr.bf16.mxu0 0
  %1161 = vmatpush1.bf16.msra.mxu0 0
  %1162 = vmatprep.subr.bf16.mxu0 0
  %1163 = vmatpush1.bf16.msra.mxu0 0
  %1164 = vmatprep.subr.bf16.mxu0 0
  %1165 = vmatpush1.bf16.msra.mxu0 0
  %1166 = vmatprep.subr.bf16.mxu0 0
  %1167 = vmatpush1.bf16.msra.mxu0 0
  %1168 = vmatprep.subr.bf16.mxu0 0
  %1169 = vmatpush1.bf16.msra.mxu0 0
  %1170 = vmatprep.subr.bf16.mxu0 0
  %1171 = vmatpush1.bf16.msra.mxu0 0
  %1172 = vmatprep.subr.bf16.mxu0 0
  %1173 = vmatpush1.bf16.msra.mxu0 0
  %1174 = vmatprep.mubr.bf16.mxu0 0
  %1175 = vmatmul.mubr.bf16.gmra.mrb[0].mxu0 %v1137
  %v1176 = vpop.f32.mrb[0].mxu0
  %v1177 = vadd.f32 0.0, %v1176
  %v1178 = vpop.f32.mrb[0].mxu0
  %v1179 = vpop.f32.mrb[0].mxu0
  %v1180 = vadd.f32 0.0, %v1179
  %v1181 = vpop.f32.mrb[0].mxu0
  %1182 = vdwg.mxu0
  %1183 = vrot.lane.b32.xlu0 %v934, 112
  %v1184 = vpop.permute.xlu0 %1183
  %1185 = vrot.lane.b32.xlu0 %v934, 80
  %v1186 = vpop.permute.xlu0 %1185
  %v1188 = vsel %vm400, %v1184, 0
  %v1191 = vsel %vm400, %v1186, 0
  %1193 = vmatprep.subr.bf16.mxu0 0
  %1194 = vmatpush1.bf16.xpose.msra.mxu0 %v1191
  %1195 = vmatprep.subr.bf16.mxu0 0
  %1196 = vmatpush1.bf16.xpose.msra.mxu0 0
  %1197 = vmatprep.subr.bf16.mxu0 0
  %1198 = vmatpush1.bf16.xpose.msra.mxu0 0
  %1199 = vmatprep.subr.bf16.mxu0 0
  %1200 = vmatpush1.bf16.xpose.msra.mxu0 0
  %1201 = vmatprep.subr.bf16.mxu0 0
  %1202 = vmatpush1.bf16.xpose.msra.mxu0 0
  %1203 = vmatprep.subr.bf16.mxu0 0
  %1204 = vmatpush1.bf16.xpose.msra.mxu0 0
  %1205 = vmatprep.subr.bf16.mxu0 0
  %1206 = vmatpush1.bf16.xpose.msra.mxu0 0
  %1207 = vmatprep.subr.bf16.mxu0 0
  %1208 = vmatpush1.bf16.xpose.msra.mxu0 0
  %1209 = vmatprep.subr.bf16.mxu0 0
  %1210 = vmatpush1.bf16.xpose.msra.mxu0 0
  %1211 = vmatprep.subr.bf16.mxu0 0
  %1212 = vmatpush1.bf16.xpose.msra.mxu0 0
  %1213 = vmatprep.subr.bf16.mxu0 0
  %1214 = vmatpush1.bf16.xpose.msra.mxu0 0
  %1215 = vmatprep.subr.bf16.mxu0 0
  %1216 = vmatpush1.bf16.xpose.msra.mxu0 0
  %1217 = vmatprep.subr.bf16.mxu0 0
  %1218 = vmatpush1.bf16.xpose.msra.mxu0 0
  %1219 = vmatprep.subr.bf16.mxu0 0
  %1220 = vmatpush1.bf16.xpose.msra.mxu0 0
  %1221 = vmatprep.subr.bf16.mxu0 0
  %1222 = vmatpush1.bf16.xpose.msra.mxu0 0
  %1223 = vmatprep.subr.bf16.mxu0 0
  %1224 = vmatpush1.bf16.xpose.msra.mxu0 0
  %1225 = vmatprep.mubr.bf16.mxu0 0
  %1226 = vmatmul.mubr.bf16.gmra.mrb[0].mxu0 %v1188
  %v1227 = vpop.f32.mrb[0].mxu0
  %v1228 = vadd.f32 0.0, %v1227
  %v1229 = vpop.f32.mrb[0].mxu0
  %v1230 = vpop.f32.mrb[0].mxu0
  %v1231 = vadd.f32 0.0, %v1230
  %v1232 = vpop.f32.mrb[0].mxu0
  %1233 = vdwg.mxu0
  %v1234 = vmul.f32 %v1228, 0.35355338
  %v1235 = vmul.f32 %v1231, 0.35355338
  %v1236 = vsel %vm450, %v1234, -inf
  %1237 = vmax.xlane.f32.xlu0 %v1236
  %v1238 = vpop.xlane.xlu0 %1237
  %v1239 = vsel %vm454, %v1235, -inf
  %1240 = vmax.xlane.f32.xlu0 %v1239
  %v1241 = vpop.xlane.xlu0 %1240
  %v1242 = vsub.f32 %v1234, %v1238
  %v1243 = vsub.f32 %v1235, %v1241
  %v1244 = vmul.f32 %v1242, 1.442695
  %v1245 = vpow.pop %v1244
  %v1246 = vmul.f32 %v1243, 1.442695
  %v1247 = vpow.pop %v1246
  %v1248 = vsel %vm450, %v1245, 0.0
  %1249 = vadd.xlane.f32.xlu0 %v1248
  %v1250 = vpop.xlane.xlu0 %1249
  %v1251 = vsel %vm454, %v1247, 0.0
  %1252 = vadd.xlane.f32.xlu0 %v1251
  %v1253 = vpop.xlane.xlu0 %1252
  %v1254 = vrcp.pop %v1250
  %v1255 = vrcp.pop %v1253
  %v1256 = vmul.f32 %v1245, %v1254
  %v1257 = vmul.f32 %v1247, %v1255
  %v1258 = vpack.c.bf16 %v1257, %v1256
  %1259 = vrot.lane.b32.xlu0 %v934, 48
  %v1260 = vpop.permute.xlu0 %1259
  %v1262 = vsel %vm450, %v1258, 0
  %v1265 = vsel %vm480, %v1260, 0
  %1267 = vmatprep.subr.bf16.mxu0 0
  %1268 = vmatpush1.bf16.msra.mxu0 %v1265
  %1269 = vmatprep.subr.bf16.mxu0 0
  %1270 = vmatpush1.bf16.msra.mxu0 0
  %1271 = vmatprep.subr.bf16.mxu0 0
  %1272 = vmatpush1.bf16.msra.mxu0 0
  %1273 = vmatprep.subr.bf16.mxu0 0
  %1274 = vmatpush1.bf16.msra.mxu0 0
  %1275 = vmatprep.subr.bf16.mxu0 0
  %1276 = vmatpush1.bf16.msra.mxu0 0
  %1277 = vmatprep.subr.bf16.mxu0 0
  %1278 = vmatpush1.bf16.msra.mxu0 0
  %1279 = vmatprep.subr.bf16.mxu0 0
  %1280 = vmatpush1.bf16.msra.mxu0 0
  %1281 = vmatprep.subr.bf16.mxu0 0
  %1282 = vmatpush1.bf16.msra.mxu0 0
  %1283 = vmatprep.subr.bf16.mxu0 0
  %1284 = vmatpush1.bf16.msra.mxu0 0
  %1285 = vmatprep.subr.bf16.mxu0 0
  %1286 = vmatpush1.bf16.msra.mxu0 0
  %1287 = vmatprep.subr.bf16.mxu0 0
  %1288 = vmatpush1.bf16.msra.mxu0 0
  %1289 = vmatprep.subr.bf16.mxu0 0
  %1290 = vmatpush1.bf16.msra.mxu0 0
  %1291 = vmatprep.subr.bf16.mxu0 0
  %1292 = vmatpush1.bf16.msra.mxu0 0
  %1293 = vmatprep.subr.bf16.mxu0 0
  %1294 = vmatpush1.bf16.msra.mxu0 0
  %1295 = vmatprep.subr.bf16.mxu0 0
  %1296 = vmatpush1.bf16.msra.mxu0 0
  %1297 = vmatprep.subr.bf16.mxu0 0
  %1298 = vmatpush1.bf16.msra.mxu0 0
  %1299 = vmatprep.mubr.bf16.mxu0 0
  %1300 = vmatmul.mubr.bf16.gmra.mrb[0].mxu0 %v1262
  %v1301 = vpop.f32.mrb[0].mxu0
  %v1302 = vadd.f32 0.0, %v1301
  %v1303 = vpop.f32.mrb[0].mxu0
  %v1304 = vpop.f32.mrb[0].mxu0
  %v1305 = vadd.f32 0.0, %v1304
  %v1306 = vpop.f32.mrb[0].mxu0
  %1307 = vdwg.mxu0
  %1308 = vrot.lane.b32.xlu0 %v934, 104
  %v1309 = vpop.permute.xlu0 %1308
  %1310 = vrot.lane.b32.xlu0 %v934, 72
  %v1311 = vpop.permute.xlu0 %1310
  %v1313 = vsel %vm400, %v1309, 0
  %v1316 = vsel %vm400, %v1311, 0
  %1318 = vmatprep.subr.bf16.mxu0 0
  %1319 = vmatpush1.bf16.xpose.msra.mxu0 %v1316
  %1320 = vmatprep.subr.bf16.mxu0 0
  %1321 = vmatpush1.bf16.xpose.msra.mxu0 0
  %1322 = vmatprep.subr.bf16.mxu0 0
  %1323 = vmatpush1.bf16.xpose.msra.mxu0 0
  %1324 = vmatprep.subr.bf16.mxu0 0
  %1325 = vmatpush1.bf16.xpose.msra.mxu0 0
  %1326 = vmatprep.subr.bf16.mxu0 0
  %1327 = vmatpush1.bf16.xpose.msra.mxu0 0
  %1328 = vmatprep.subr.bf16.mxu0 0
  %1329 = vmatpush1.bf16.xpose.msra.mxu0 0
  %1330 = vmatprep.subr.bf16.mxu0 0
  %1331 = vmatpush1.bf16.xpose.msra.mxu0 0
  %1332 = vmatprep.subr.bf16.mxu0 0
  %1333 = vmatpush1.bf16.xpose.msra.mxu0 0
  %1334 = vmatprep.subr.bf16.mxu0 0
  %1335 = vmatpush1.bf16.xpose.msra.mxu0 0
  %1336 = vmatprep.subr.bf16.mxu0 0
  %1337 = vmatpush1.bf16.xpose.msra.mxu0 0
  %1338 = vmatprep.subr.bf16.mxu0 0
  %1339 = vmatpush1.bf16.xpose.msra.mxu0 0
  %1340 = vmatprep.subr.bf16.mxu0 0
  %1341 = vmatpush1.bf16.xpose.msra.mxu0 0
  %1342 = vmatprep.subr.bf16.mxu0 0
  %1343 = vmatpush1.bf16.xpose.msra.mxu0 0
  %1344 = vmatprep.subr.bf16.mxu0 0
  %1345 = vmatpush1.bf16.xpose.msra.mxu0 0
  %1346 = vmatprep.subr.bf16.mxu0 0
  %1347 = vmatpush1.bf16.xpose.msra.mxu0 0
  %1348 = vmatprep.subr.bf16.mxu0 0
  %1349 = vmatpush1.bf16.xpose.msra.mxu0 0
  %1350 = vmatprep.mubr.bf16.mxu0 0
  %1351 = vmatmul.mubr.bf16.gmra.mrb[0].mxu0 %v1313
  %v1352 = vpop.f32.mrb[0].mxu0
  %v1353 = vadd.f32 0.0, %v1352
  %v1354 = vpop.f32.mrb[0].mxu0
  %v1355 = vpop.f32.mrb[0].mxu0
  %v1356 = vadd.f32 0.0, %v1355
  %v1357 = vpop.f32.mrb[0].mxu0
  %1358 = vdwg.mxu0
  %v1359 = vmul.f32 %v1353, 0.35355338
  %v1360 = vmul.f32 %v1356, 0.35355338
  %v1361 = vsel %vm450, %v1359, -inf
  %1362 = vmax.xlane.f32.xlu0 %v1361
  %v1363 = vpop.xlane.xlu0 %1362
  %v1364 = vsel %vm454, %v1360, -inf
  %1365 = vmax.xlane.f32.xlu0 %v1364
  %v1366 = vpop.xlane.xlu0 %1365
  %v1367 = vsub.f32 %v1359, %v1363
  %v1368 = vsub.f32 %v1360, %v1366
  %v1369 = vmul.f32 %v1367, 1.442695
  %v1370 = vpow.pop %v1369
  %v1371 = vmul.f32 %v1368, 1.442695
  %v1372 = vpow.pop %v1371
  %v1373 = vsel %vm450, %v1370, 0.0
  %1374 = vadd.xlane.f32.xlu0 %v1373
  %v1375 = vpop.xlane.xlu0 %1374
  %v1376 = vsel %vm454, %v1372, 0.0
  %1377 = vadd.xlane.f32.xlu0 %v1376
  %v1378 = vpop.xlane.xlu0 %1377
  %v1379 = vrcp.pop %v1375
  %v1380 = vrcp.pop %v1378
  %v1381 = vmul.f32 %v1370, %v1379
  %v1382 = vmul.f32 %v1372, %v1380
  %v1383 = vpack.c.bf16 %v1382, %v1381
  %1384 = vrot.lane.b32.xlu0 %v934, 40
  %v1385 = vpop.permute.xlu0 %1384
  %v1387 = vsel %vm450, %v1383, 0
  %v1390 = vsel %vm480, %v1385, 0
  %1392 = vmatprep.subr.bf16.mxu0 0
  %1393 = vmatpush1.bf16.msra.mxu0 %v1390
  %1394 = vmatprep.subr.bf16.mxu0 0
  %1395 = vmatpush1.bf16.msra.mxu0 0
  %1396 = vmatprep.subr.bf16.mxu0 0
  %1397 = vmatpush1.bf16.msra.mxu0 0
  %1398 = vmatprep.subr.bf16.mxu0 0
  %1399 = vmatpush1.bf16.msra.mxu0 0
  %1400 = vmatprep.subr.bf16.mxu0 0
  %1401 = vmatpush1.bf16.msra.mxu0 0
  %1402 = vmatprep.subr.bf16.mxu0 0
  %1403 = vmatpush1.bf16.msra.mxu0 0
  %1404 = vmatprep.subr.bf16.mxu0 0
  %1405 = vmatpush1.bf16.msra.mxu0 0
  %1406 = vmatprep.subr.bf16.mxu0 0
  %1407 = vmatpush1.bf16.msra.mxu0 0
  %1408 = vmatprep.subr.bf16.mxu0 0
  %1409 = vmatpush1.bf16.msra.mxu0 0
  %1410 = vmatprep.subr.bf16.mxu0 0
  %1411 = vmatpush1.bf16.msra.mxu0 0
  %1412 = vmatprep.subr.bf16.mxu0 0
  %1413 = vmatpush1.bf16.msra.mxu0 0
  %1414 = vmatprep.subr.bf16.mxu0 0
  %1415 = vmatpush1.bf16.msra.mxu0 0
  %1416 = vmatprep.subr.bf16.mxu0 0
  %1417 = vmatpush1.bf16.msra.mxu0 0
  %1418 = vmatprep.subr.bf16.mxu0 0
  %1419 = vmatpush1.bf16.msra.mxu0 0
  %1420 = vmatprep.subr.bf16.mxu0 0
  %1421 = vmatpush1.bf16.msra.mxu0 0
  %1422 = vmatprep.subr.bf16.mxu0 0
  %1423 = vmatpush1.bf16.msra.mxu0 0
  %1424 = vmatprep.mubr.bf16.mxu0 0
  %1425 = vmatmul.mubr.bf16.gmra.mrb[0].mxu0 %v1387
  %v1426 = vpop.f32.mrb[0].mxu0
  %v1427 = vadd.f32 0.0, %v1426
  %v1428 = vpop.f32.mrb[0].mxu0
  %v1429 = vpop.f32.mrb[0].mxu0
  %v1430 = vadd.f32 0.0, %v1429
  %v1431 = vpop.f32.mrb[0].mxu0
  %1432 = vdwg.mxu0
  %1435 = vrot.lane.b32.xlu0 %v1177, 8
  %v1436 = vpop.permute.xlu0 %1435
  %1437 = vrot.lane.b32.xlu0 %v1180, 8
  %v1438 = vpop.permute.xlu0 %1437
  %1443 = vrot.lane.b32.xlu0 %v1302, 16
  %v1444 = vpop.permute.xlu0 %1443
  %1445 = vrot.lane.b32.xlu0 %v1305, 16
  %v1446 = vpop.permute.xlu0 %1445
  %1451 = vrot.lane.b32.xlu0 %v1427, 24
  %v1452 = vpop.permute.xlu0 %1451
  %1453 = vrot.lane.b32.xlu0 %v1430, 24
  %v1454 = vpop.permute.xlu0 %1453
  %v1457 = vsel %vm400, %v1052, %v1436
  %v1458 = vsel %vm400, %v1055, %v1438
  %v1459 = vsel %vm926, %v1457, %v1444
  %v1460 = vsel %vm926, %v1458, %v1446
  %v1461 = vsel %vm929, %v1459, %v1452
  %v1462 = vsel %vm929, %v1460, %v1454
  %v1465 = vrot.slane %v1461, 4
  %v1466 = vrot.slane %v1462, 4
  %v1467 = vsel %vm246, %v1465, %v1466
  %v1470 = vsel %vm246, %v931, %v1465
  %v1471 = vpack.c.bf16 %v1470, %v930
  %v1472 = vpack.c.bf16 %v1467, %v1467
  %v1473 = vld [vmem:[%s17] sm:$0xf]
  %v1474 = vld [vmem:[%s17 + $0x4] sm:$0xf]
  %v1475 = vld [vmem:[%s17 + $0x8] sm:$0xf]
  %v1476 = vld [vmem:[%s17 + $0xc] sm:$0xf]
  %v1477 = vld [vmem:[%s19] sm:$0x1]
  %v1479 = vlaneseq
  %v1480 = vshrl.u32 %v1479, 7
  %v1481 = vsub.s32 0, %v1480
  %v1482 = vrot.slane %v1477, %v1481
  %v1488 = vunpack.c.l.b16 %v1473
  %v1489 = vunpack.c.l.b16 %v1474
  %v1490 = vunpack.c.l.b16 %v1475
  %v1491 = vunpack.c.l.b16 %v1476
  %v1492 = vpack.c.b16 %v1489, %v1488
  %v1493 = vpack.c.b16 %v1491, %v1490
  %v1497 = vsel %vm256, %v1471, 0
  %v1500 = vsel %vm256, %v1472, 0
  %1502 = vmatprep.subr.bf16.mxu0 0
  %1503 = vmatpush1.bf16.msra.mxu0 %v1492
  %1504 = vmatprep.subr.bf16.mxu0 0
  %1505 = vmatpush1.bf16.msra.mxu0 %v1493
  %1506 = vmatprep.subr.bf16.mxu0 0
  %1507 = vmatpush1.bf16.msra.mxu0 0
  %1508 = vmatprep.subr.bf16.mxu0 0
  %1509 = vmatpush1.bf16.msra.mxu0 0
  %1510 = vmatprep.subr.bf16.mxu0 0
  %1511 = vmatpush1.bf16.msra.mxu0 0
  %1512 = vmatprep.subr.bf16.mxu0 0
  %1513 = vmatpush1.bf16.msra.mxu0 0
  %1514 = vmatprep.subr.bf16.mxu0 0
  %1515 = vmatpush1.bf16.msra.mxu0 0
  %1516 = vmatprep.subr.bf16.mxu0 0
  %1517 = vmatpush1.bf16.msra.mxu0 0
  %1518 = vmatprep.subr.bf16.mxu0 0
  %1519 = vmatpush1.bf16.msra.mxu0 0
  %1520 = vmatprep.subr.bf16.mxu0 0
  %1521 = vmatpush1.bf16.msra.mxu0 0
  %1522 = vmatprep.subr.bf16.mxu0 0
  %1523 = vmatpush1.bf16.msra.mxu0 0
  %1524 = vmatprep.subr.bf16.mxu0 0
  %1525 = vmatpush1.bf16.msra.mxu0 0
  %1526 = vmatprep.subr.bf16.mxu0 0
  %1527 = vmatpush1.bf16.msra.mxu0 0
  %1528 = vmatprep.subr.bf16.mxu0 0
  %1529 = vmatpush1.bf16.msra.mxu0 0
  %1530 = vmatprep.subr.bf16.mxu0 0
  %1531 = vmatpush1.bf16.msra.mxu0 0
  %1532 = vmatprep.subr.bf16.mxu0 0
  %1533 = vmatpush1.bf16.msra.mxu0 0
  %1534 = vmatprep.mubr.bf16.mxu0 0
  %1535 = vmatmul.mubr.bf16.gmra.mrb[0].mxu0 %v1497
  %v1536 = vpop.f32.mrb[0].mxu0
  %v1537 = vadd.f32 %v1482, %v1536
  %v1538 = vpop.f32.mrb[0].mxu0
  %v1539 = vpop.f32.mrb[0].mxu0
  %v1540 = vadd.f32 %v1482, %v1539
  %v1541 = vpop.f32.mrb[0].mxu0
  %1542 = vmatprep.mubr.bf16.mxu0 0
  %1543 = vmatmul.mubr.bf16.gmra.mrb[0].mxu0 %v1500
  %v1544 = vpop.f32.mrb[0].mxu0
  %v1545 = vadd.f32 %v1482, %v1544
  %v1546 = vpop.f32.mrb[0].mxu0
  %v1547 = vpop.f32.mrb[0].mxu0
  %v1548 = vpop.f32.mrb[0].mxu0
  %1549 = vdwg.mxu0
  %v1550 = vadd.f32 %v253, %v1537
  %v1551 = vadd.f32 %v254, %v1540
  %v1552 = vadd.f32 %v255, %v1545
  %v1553 = vsel %vm256, %v1550, 0.0
  %1554 = vadd.xlane.f32.xlu0 %v1553
  %v1555 = vpop.xlane.xlu0 %1554
  %v1556 = vsel %vm256, %v1551, 0.0
  %1557 = vadd.xlane.f32.xlu0 %v1556
  %v1558 = vpop.xlane.xlu0 %1557
  %v1559 = vsel %vm256, %v1552, 0.0
  %1560 = vadd.xlane.f32.xlu0 %v1559
  %v1561 = vpop.xlane.xlu0 %1560
  %v1562 = vmul.f32 %v1555, %v266
  %v1563 = vmul.f32 %v1558, %v266
  %v1564 = vmul.f32 %v1561, %v266
  %v1565 = vsub.f32 %v1550, %v1562
  %v1566 = vsub.f32 %v1551, %v1563
  %v1567 = vsub.f32 %v1552, %v1564
  %v1568 = vmul.f32 %v1565, %v1565
  %v1569 = vmul.f32 %v1566, %v1566
  %v1570 = vmul.f32 %v1567, %v1567
  %v1571 = vsel %vm256, %v1568, 0.0
  %1572 = vadd.xlane.f32.xlu0 %v1571
  %v1573 = vpop.xlane.xlu0 %1572
  %v1574 = vsel %vm256, %v1569, 0.0
  %1575 = vadd.xlane.f32.xlu0 %v1574
  %v1576 = vpop.xlane.xlu0 %1575
  %v1577 = vsel %vm256, %v1570, 0.0
  %1578 = vadd.xlane.f32.xlu0 %v1577
  %v1579 = vpop.xlane.xlu0 %1578
  %v1580 = vmul.f32 %v1573, %v266
  %v1581 = vmul.f32 %v1576, %v266
  %v1582 = vmul.f32 %v1579, %v266
  %v1583 = vadd.f32 %v1580, 1e-06
  %v1584 = vadd.f32 %v1581, 1e-06
  %v1585 = vadd.f32 %v1582, 1e-06
  %v1586 = vrsqrt.pop %v1583
  %v1587 = vrsqrt.pop %v1584
  %v1588 = vrsqrt.pop %v1585
  %v1589 = vmul.f32 %v1565, %v1586
  %v1590 = vmul.f32 %v1566, %v1587
  %v1591 = vmul.f32 %v1567, %v1588
  %v1592 = vld [vmem:[%s21] sm:$0x1]
  %v1594 = vlaneseq
  %v1595 = vshrl.u32 %v1594, 7
  %v1596 = vsub.s32 0, %v1595
  %v1597 = vrot.slane %v1592, %v1596
  %v1599 = vmul.f32 %v1589, %v1597
  %v1600 = vmul.f32 %v1590, %v1597
  %v1601 = vmul.f32 %v1591, %v1597
  %v1602 = vld [vmem:[%s23] sm:$0x1]
  %v1604 = vlaneseq
  %v1605 = vshrl.u32 %v1604, 7
  %v1606 = vsub.s32 0, %v1605
  %v1607 = vrot.slane %v1602, %v1606
  %v1609 = vadd.f32 %v1599, %v1607
  %v1610 = vadd.f32 %v1600, %v1607
  %v1611 = vadd.f32 %v1601, %v1607
  %v1612 = vpack.c.bf16 %v1610, %v1609
  %v1613 = vpack.c.bf16 %v1611, %v1611
  %v1614 = vld [vmem:[%s25] sm:$0xf]
  %v1615 = vld [vmem:[%s25 + $0x4] sm:$0xf]
  %v1616 = vld [vmem:[%s25 + $0x8] sm:$0xf]
  %v1617 = vld [vmem:[%s25 + $0xc] sm:$0xf]
  %v1618 = vld [vmem:[%s27] sm:$0x1]
  %v1620 = vlaneseq
  %v1621 = vshrl.u32 %v1620, 7
  %v1622 = vsub.s32 0, %v1621
  %v1623 = vrot.slane %v1618, %v1622
  %v1629 = vunpack.c.l.b16 %v1614
  %v1630 = vunpack.c.l.b16 %v1615
  %v1631 = vunpack.c.l.b16 %v1616
  %v1632 = vunpack.c.l.b16 %v1617
  %v1633 = vpack.c.b16 %v1630, %v1629
  %v1634 = vpack.c.b16 %v1632, %v1631
  %v1638 = vsel %vm256, %v1612, 0
  %v1641 = vsel %vm256, %v1613, 0
  %1643 = vmatprep.subr.bf16.mxu0 0
  %1644 = vmatpush1.bf16.msra.mxu0 %v1633
  %1645 = vmatprep.subr.bf16.mxu0 0
  %1646 = vmatpush1.bf16.msra.mxu0 %v1634
  %1647 = vmatprep.subr.bf16.mxu0 0
  %1648 = vmatpush1.bf16.msra.mxu0 0
  %1649 = vmatprep.subr.bf16.mxu0 0
  %1650 = vmatpush1.bf16.msra.mxu0 0
  %1651 = vmatprep.subr.bf16.mxu0 0
  %1652 = vmatpush1.bf16.msra.mxu0 0
  %1653 = vmatprep.subr.bf16.mxu0 0
  %1654 = vmatpush1.bf16.msra.mxu0 0
  %1655 = vmatprep.subr.bf16.mxu0 0
  %1656 = vmatpush1.bf16.msra.mxu0 0
  %1657 = vmatprep.subr.bf16.mxu0 0
  %1658 = vmatpush1.bf16.msra.mxu0 0
  %1659 = vmatprep.subr.bf16.mxu0 0
  %1660 = vmatpush1.bf16.msra.mxu0 0
  %1661 = vmatprep.subr.bf16.mxu0 0
  %1662 = vmatpush1.bf16.msra.mxu0 0
  %1663 = vmatprep.subr.bf16.mxu0 0
  %1664 = vmatpush1.bf16.msra.mxu0 0
  %1665 = vmatprep.subr.bf16.mxu0 0
  %1666 = vmatpush1.bf16.msra.mxu0 0
  %1667 = vmatprep.subr.bf16.mxu0 0
  %1668 = vmatpush1.bf16.msra.mxu0 0
  %1669 = vmatprep.subr.bf16.mxu0 0
  %1670 = vmatpush1.bf16.msra.mxu0 0
  %1671 = vmatprep.subr.bf16.mxu0 0
  %1672 = vmatpush1.bf16.msra.mxu0 0
  %1673 = vmatprep.subr.bf16.mxu0 0
  %1674 = vmatpush1.bf16.msra.mxu0 0
  %1675 = vmatprep.mubr.bf16.mxu0 0
  %1676 = vmatmul.mubr.bf16.gmra.mrb[0].mxu0 %v1638
  %v1677 = vpop.f32.mrb[0].mxu0
  %v1678 = vadd.f32 %v1623, %v1677
  %v1679 = vpop.f32.mrb[0].mxu0
  %v1680 = vpop.f32.mrb[0].mxu0
  %v1681 = vadd.f32 %v1623, %v1680
  %v1682 = vpop.f32.mrb[0].mxu0
  %1683 = vmatprep.mubr.bf16.mxu0 0
  %1684 = vmatmul.mubr.bf16.gmra.mrb[0].mxu0 %v1641
  %v1685 = vpop.f32.mrb[0].mxu0
  %v1686 = vadd.f32 %v1623, %v1685
  %v1687 = vpop.f32.mrb[0].mxu0
  %v1688 = vpop.f32.mrb[0].mxu0
  %v1689 = vpop.f32.mrb[0].mxu0
  %1690 = vdwg.mxu0
  %v1691 = vmul.f32 %v1678, %v1678
  %v1692 = vmul.f32 %v1681, %v1681
  %v1693 = vmul.f32 %v1686, %v1686
  %v1694 = vmul.f32 %v1678, %v1691
  %v1695 = vmul.f32 %v1681, %v1692
  %v1696 = vmul.f32 %v1686, %v1693
  %v1697 = vmul.f32 %v1694, 0.044715
  %v1698 = vmul.f32 %v1695, 0.044715
  %v1699 = vmul.f32 %v1696, 0.044715
  %v1700 = vadd.f32 %v1678, %v1697
  %v1701 = vadd.f32 %v1681, %v1698
  %v1702 = vadd.f32 %v1686, %v1699
  %v1703 = vmul.f32 %v1700, 0.7978846
  %v1704 = vmul.f32 %v1701, 0.7978846
  %v1705 = vmul.f32 %v1702, 0.7978846
  %v1706 = vtanh.pop %v1703
  %v1707 = vtanh.pop %v1704
  %v1708 = vtanh.pop %v1705
  %v1709 = vadd.f32 %v1706, 1.0
  %v1710 = vadd.f32 %v1707, 1.0
  %v1711 = vadd.f32 %v1708, 1.0
  %v1712 = vmul.f32 %v1709, 0.5
  %v1713 = vmul.f32 %v1710, 0.5
  %v1714 = vmul.f32 %v1711, 0.5
  %v1715 = vmul.f32 %v1678, %v1712
  %v1716 = vmul.f32 %v1681, %v1713
  %v1717 = vmul.f32 %v1686, %v1714
  %v1718 = vpack.c.bf16 %v1716, %v1715
  %v1719 = vpack.c.bf16 %v1717, %v1717
  %v1720 = vld [vmem:[%s29] sm:$0xf]
  %v1721 = vld [vmem:[%s29 + $0x4] sm:$0xf]
  %v1722 = vld [vmem:[%s29 + $0x8] sm:$0xf]
  %v1723 = vld [vmem:[%s29 + $0xc] sm:$0xf]
  %v1724 = vld [vmem:[%s29 + $0x10] sm:$0xf]
  %v1725 = vld [vmem:[%s29 + $0x14] sm:$0xf]
  %v1726 = vld [vmem:[%s29 + $0x18] sm:$0xf]
  %v1727 = vld [vmem:[%s29 + $0x1c] sm:$0xf]
  %v1728 = vld [vmem:[%s31] sm:$0x1]
  %v1730 = vlaneseq
  %v1731 = vshrl.u32 %v1730, 7
  %v1732 = vsub.s32 0, %v1731
  %v1733 = vrot.slane %v1728, %v1732
  %v1743 = vunpack.c.l.b16 %v1720
  %v1744 = vunpack.c.l.b16 %v1721
  %v1745 = vunpack.c.l.b16 %v1722
  %v1746 = vunpack.c.l.b16 %v1723
  %v1747 = vunpack.c.l.b16 %v1724
  %v1748 = vunpack.c.l.b16 %v1725
  %v1749 = vunpack.c.l.b16 %v1726
  %v1750 = vunpack.c.l.b16 %v1727
  %v1751 = vpack.c.b16 %v1744, %v1743
  %v1752 = vpack.c.b16 %v1746, %v1745
  %v1753 = vpack.c.b16 %v1748, %v1747
  %v1754 = vpack.c.b16 %v1750, %v1749
  %vm1759 = vcmask 523264
  %v1761 = vsel %vm1759, %v1718, 0
  %v1764 = vsel %vm1759, %v1719, 0
  %1766 = vmatprep.subr.bf16.mxu0 0
  %1767 = vmatpush1.bf16.msra.mxu0 %v1751
  %1768 = vmatprep.subr.bf16.mxu0 0
  %1769 = vmatpush1.bf16.msra.mxu0 %v1752
  %1770 = vmatprep.subr.bf16.mxu0 0
  %1771 = vmatpush1.bf16.msra.mxu0 %v1753
  %1772 = vmatprep.subr.bf16.mxu0 0
  %1773 = vmatpush1.bf16.msra.mxu0 %v1754
  %1774 = vmatprep.subr.bf16.mxu0 0
  %1775 = vmatpush1.bf16.msra.mxu0 0
  %1776 = vmatprep.subr.bf16.mxu0 0
  %1777 = vmatpush1.bf16.msra.mxu0 0
  %1778 = vmatprep.subr.bf16.mxu0 0
  %1779 = vmatpush1.bf16.msra.mxu0 0
  %1780 = vmatprep.subr.bf16.mxu0 0
  %1781 = vmatpush1.bf16.msra.mxu0 0
  %1782 = vmatprep.subr.bf16.mxu0 0
  %1783 = vmatpush1.bf16.msra.mxu0 0
  %1784 = vmatprep.subr.bf16.mxu0 0
  %1785 = vmatpush1.bf16.msra.mxu0 0
  %1786 = vmatprep.subr.bf16.mxu0 0
  %1787 = vmatpush1.bf16.msra.mxu0 0
  %1788 = vmatprep.subr.bf16.mxu0 0
  %1789 = vmatpush1.bf16.msra.mxu0 0
  %1790 = vmatprep.subr.bf16.mxu0 0
  %1791 = vmatpush1.bf16.msra.mxu0 0
  %1792 = vmatprep.subr.bf16.mxu0 0
  %1793 = vmatpush1.bf16.msra.mxu0 0
  %1794 = vmatprep.subr.bf16.mxu0 0
  %1795 = vmatpush1.bf16.msra.mxu0 0
  %1796 = vmatprep.subr.bf16.mxu0 0
  %1797 = vmatpush1.bf16.msra.mxu0 0
  %1798 = vmatprep.mubr.bf16.mxu0 0
  %1799 = vmatmul.mubr.bf16.gmra.mrb[0].mxu0 %v1761
  %v1800 = vpop.f32.mrb[0].mxu0
  %v1801 = vadd.f32 %v1733, %v1800
  %v1802 = vpop.f32.mrb[0].mxu0
  %v1803 = vpop.f32.mrb[0].mxu0
  %v1804 = vadd.f32 %v1733, %v1803
  %v1805 = vpop.f32.mrb[0].mxu0
  %1806 = vmatprep.mubr.bf16.mxu0 0
  %1807 = vmatmul.mubr.bf16.gmra.mrb[0].mxu0 %v1764
  %v1808 = vpop.f32.mrb[0].mxu0
  %v1809 = vadd.f32 %v1733, %v1808
  %v1810 = vpop.f32.mrb[0].mxu0
  %v1811 = vpop.f32.mrb[0].mxu0
  %v1812 = vpop.f32.mrb[0].mxu0
  %1813 = vdwg.mxu0
  %v1814 = vadd.f32 %v1550, %v1801
  %v1815 = vadd.f32 %v1551, %v1804
  %v1816 = vadd.f32 %v1552, %v1809
  %v1817 = vsel %vm256, %v1814, 0.0
  %1818 = vadd.xlane.f32.xlu0 %v1817
  %v1819 = vpop.xlane.xlu0 %1818
  %v1820 = vsel %vm256, %v1815, 0.0
  %1821 = vadd.xlane.f32.xlu0 %v1820
  %v1822 = vpop.xlane.xlu0 %1821
  %v1823 = vsel %vm256, %v1816, 0.0
  %1824 = vadd.xlane.f32.xlu0 %v1823
  %v1825 = vpop.xlane.xlu0 %1824
  %v1826 = vmul.f32 %v1819, %v266
  %v1827 = vmul.f32 %v1822, %v266
  %v1828 = vmul.f32 %v1825, %v266
  %v1829 = vsub.f32 %v1814, %v1826
  %v1830 = vsub.f32 %v1815, %v1827
  %v1831 = vsub.f32 %v1816, %v1828
  %v1832 = vmul.f32 %v1829, %v1829
  %v1833 = vmul.f32 %v1830, %v1830
  %v1834 = vmul.f32 %v1831, %v1831
  %v1835 = vsel %vm256, %v1832, 0.0
  %1836 = vadd.xlane.f32.xlu0 %v1835
  %v1837 = vpop.xlane.xlu0 %1836
  %v1838 = vsel %vm256, %v1833, 0.0
  %1839 = vadd.xlane.f32.xlu0 %v1838
  %v1840 = vpop.xlane.xlu0 %1839
  %v1841 = vsel %vm256, %v1834, 0.0
  %1842 = vadd.xlane.f32.xlu0 %v1841
  %v1843 = vpop.xlane.xlu0 %1842
  %v1844 = vmul.f32 %v1837, %v266
  %v1845 = vmul.f32 %v1840, %v266
  %v1846 = vmul.f32 %v1843, %v266
  %v1847 = vadd.f32 %v1844, 1e-06
  %v1848 = vadd.f32 %v1845, 1e-06
  %v1849 = vadd.f32 %v1846, 1e-06
  %v1850 = vrsqrt.pop %v1847
  %v1851 = vrsqrt.pop %v1848
  %v1852 = vrsqrt.pop %v1849
  %v1853 = vmul.f32 %v1829, %v1850
  %v1854 = vmul.f32 %v1830, %v1851
  %v1855 = vmul.f32 %v1831, %v1852
  %v1856 = vld [vmem:[%s33] sm:$0x1]
  %v1858 = vlaneseq
  %v1859 = vshrl.u32 %v1858, 7
  %v1860 = vsub.s32 0, %v1859
  %v1861 = vrot.slane %v1856, %v1860
  %v1863 = vmul.f32 %v1853, %v1861
  %v1864 = vmul.f32 %v1854, %v1861
  %v1865 = vmul.f32 %v1855, %v1861
  %v1866 = vld [vmem:[%s35] sm:$0x1]
  %v1868 = vlaneseq
  %v1869 = vshrl.u32 %v1868, 7
  %v1870 = vsub.s32 0, %v1869
  %v1871 = vrot.slane %v1866, %v1870
  %v1873 = vadd.f32 %v1863, %v1871
  %v1874 = vadd.f32 %v1864, %v1871
  %v1875 = vadd.f32 %v1865, %v1871
  %v1876 = vpack.c.bf16 %v1874, %v1873
  %v1877 = vpack.c.bf16 %v1875, %v1875
  %v1878 = vld [vmem:[%s37] sm:$0xf]
  %v1879 = vld [vmem:[%s37 + $0x4] sm:$0xf]
  %v1880 = vld [vmem:[%s37 + $0x8] sm:$0xf]
  %v1881 = vld [vmem:[%s37 + $0xc] sm:$0xf]
  %v1882 = vld [vmem:[%s39] sm:$0x1]
  %v1884 = vlaneseq
  %v1885 = vshrl.u32 %v1884, 7
  %v1886 = vsub.s32 0, %v1885
  %v1887 = vrot.slane %v1882, %v1886
  %v1893 = vunpack.c.l.b16 %v1878
  %v1894 = vunpack.c.l.b16 %v1879
  %v1895 = vunpack.c.l.b16 %v1880
  %v1896 = vunpack.c.l.b16 %v1881
  %v1897 = vpack.c.b16 %v1894, %v1893
  %v1898 = vpack.c.b16 %v1896, %v1895
  %v1902 = vsel %vm256, %v1876, 0
  %v1905 = vsel %vm256, %v1877, 0
  %1907 = vmatprep.subr.bf16.mxu0 0
  %1908 = vmatpush1.bf16.msra.mxu0 %v1897
  %1909 = vmatprep.subr.bf16.mxu0 0
  %1910 = vmatpush1.bf16.msra.mxu0 %v1898
  %1911 = vmatprep.subr.bf16.mxu0 0
  %1912 = vmatpush1.bf16.msra.mxu0 0
  %1913 = vmatprep.subr.bf16.mxu0 0
  %1914 = vmatpush1.bf16.msra.mxu0 0
  %1915 = vmatprep.subr.bf16.mxu0 0
  %1916 = vmatpush1.bf16.msra.mxu0 0
  %1917 = vmatprep.subr.bf16.mxu0 0
  %1918 = vmatpush1.bf16.msra.mxu0 0
  %1919 = vmatprep.subr.bf16.mxu0 0
  %1920 = vmatpush1.bf16.msra.mxu0 0
  %1921 = vmatprep.subr.bf16.mxu0 0
  %1922 = vmatpush1.bf16.msra.mxu0 0
  %1923 = vmatprep.subr.bf16.mxu0 0
  %1924 = vmatpush1.bf16.msra.mxu0 0
  %1925 = vmatprep.subr.bf16.mxu0 0
  %1926 = vmatpush1.bf16.msra.mxu0 0
  %1927 = vmatprep.subr.bf16.mxu0 0
  %1928 = vmatpush1.bf16.msra.mxu0 0
  %1929 = vmatprep.subr.bf16.mxu0 0
  %1930 = vmatpush1.bf16.msra.mxu0 0
  %1931 = vmatprep.subr.bf16.mxu0 0
  %1932 = vmatpush1.bf16.msra.mxu0 0
  %1933 = vmatprep.subr.bf16.mxu0 0
  %1934 = vmatpush1.bf16.msra.mxu0 0
  %1935 = vmatprep.subr.bf16.mxu0 0
  %1936 = vmatpush1.bf16.msra.mxu0 0
  %1937 = vmatprep.subr.bf16.mxu0 0
  %1938 = vmatpush1.bf16.msra.mxu0 0
  %1939 = vmatprep.mubr.bf16.mxu0 0
  %1940 = vmatmul.mubr.bf16.gmra.mrb[0].mxu0 %v1902
  %v1941 = vpop.f32.mrb[0].mxu0
  %v1942 = vadd.f32 %v1887, %v1941
  %v1943 = vpop.f32.mrb[0].mxu0
  %v1944 = vpop.f32.mrb[0].mxu0
  %v1945 = vadd.f32 %v1887, %v1944
  %v1946 = vpop.f32.mrb[0].mxu0
  %1947 = vmatprep.mubr.bf16.mxu0 0
  %1948 = vmatmul.mubr.bf16.gmra.mrb[0].mxu0 %v1905
  %v1949 = vpop.f32.mrb[0].mxu0
  %v1950 = vadd.f32 %v1887, %v1949
  %v1951 = vpop.f32.mrb[0].mxu0
  %v1952 = vpop.f32.mrb[0].mxu0
  %v1953 = vpop.f32.mrb[0].mxu0
  %1954 = vdwg.mxu0
  %v1955 = vpack.c.bf16 %v1945, %v1942
  %1957 = vrot.lane.b32.xlu0 %v1955, 96
  %v1958 = vpop.permute.xlu0 %1957
  %v1960 = vsel %vm400, %v1955, 0
  %v1963 = vsel %vm400, %v1958, 0
  %1965 = vmatprep.subr.bf16.mxu0 0
  %1966 = vmatpush1.bf16.xpose.msra.mxu0 %v1963
  %1967 = vmatprep.subr.bf16.mxu0 0
  %1968 = vmatpush1.bf16.xpose.msra.mxu0 0
  %1969 = vmatprep.subr.bf16.mxu0 0
  %1970 = vmatpush1.bf16.xpose.msra.mxu0 0
  %1971 = vmatprep.subr.bf16.mxu0 0
  %1972 = vmatpush1.bf16.xpose.msra.mxu0 0
  %1973 = vmatprep.subr.bf16.mxu0 0
  %1974 = vmatpush1.bf16.xpose.msra.mxu0 0
  %1975 = vmatprep.subr.bf16.mxu0 0
  %1976 = vmatpush1.bf16.xpose.msra.mxu0 0
  %1977 = vmatprep.subr.bf16.mxu0 0
  %1978 = vmatpush1.bf16.xpose.msra.mxu0 0
  %1979 = vmatprep.subr.bf16.mxu0 0
  %1980 = vmatpush1.bf16.xpose.msra.mxu0 0
  %1981 = vmatprep.subr.bf16.mxu0 0
  %1982 = vmatpush1.bf16.xpose.msra.mxu0 0
  %1983 = vmatprep.subr.bf16.mxu0 0
  %1984 = vmatpush1.bf16.xpose.msra.mxu0 0
  %1985 = vmatprep.subr.bf16.mxu0 0
  %1986 = vmatpush1.bf16.xpose.msra.mxu0 0
  %1987 = vmatprep.subr.bf16.mxu0 0
  %1988 = vmatpush1.bf16.xpose.msra.mxu0 0
  %1989 = vmatprep.subr.bf16.mxu0 0
  %1990 = vmatpush1.bf16.xpose.msra.mxu0 0
  %1991 = vmatprep.subr.bf16.mxu0 0
  %1992 = vmatpush1.bf16.xpose.msra.mxu0 0
  %1993 = vmatprep.subr.bf16.mxu0 0
  %1994 = vmatpush1.bf16.xpose.msra.mxu0 0
  %1995 = vmatprep.subr.bf16.mxu0 0
  %1996 = vmatpush1.bf16.xpose.msra.mxu0 0
  %1997 = vmatprep.mubr.bf16.mxu0 0
  %1998 = vmatmul.mubr.bf16.gmra.mrb[0].mxu0 %v1960
  %v1999 = vpop.f32.mrb[0].mxu0
  %v2000 = vadd.f32 0.0, %v1999
  %v2001 = vpop.f32.mrb[0].mxu0
  %v2002 = vpop.f32.mrb[0].mxu0
  %v2003 = vadd.f32 0.0, %v2002
  %v2004 = vpop.f32.mrb[0].mxu0
  %2005 = vdwg.mxu0
  %v2006 = vmul.f32 %v2000, 0.35355338
  %v2007 = vmul.f32 %v2003, 0.35355338
  %v2008 = vsel %vm450, %v2006, -inf
  %2009 = vmax.xlane.f32.xlu0 %v2008
  %v2010 = vpop.xlane.xlu0 %2009
  %v2011 = vsel %vm454, %v2007, -inf
  %2012 = vmax.xlane.f32.xlu0 %v2011
  %v2013 = vpop.xlane.xlu0 %2012
  %v2014 = vsub.f32 %v2006, %v2010
  %v2015 = vsub.f32 %v2007, %v2013
  %v2016 = vmul.f32 %v2014, 1.442695
  %v2017 = vpow.pop %v2016
  %v2018 = vmul.f32 %v2015, 1.442695
  %v2019 = vpow.pop %v2018
  %v2020 = vsel %vm450, %v2017, 0.0
  %2021 = vadd.xlane.f32.xlu0 %v2020
  %v2022 = vpop.xlane.xlu0 %2021
  %v2023 = vsel %vm454, %v2019, 0.0
  %2024 = vadd.xlane.f32.xlu0 %v2023
  %v2025 = vpop.xlane.xlu0 %2024
  %v2026 = vrcp.pop %v2022
  %v2027 = vrcp.pop %v2025
  %v2028 = vmul.f32 %v2017, %v2026
  %v2029 = vmul.f32 %v2019, %v2027
  %v2030 = vpack.c.bf16 %v2029, %v2028
  %2031 = vrot.lane.b32.xlu0 %v1955, 64
  %v2032 = vpop.permute.xlu0 %2031
  %v2034 = vsel %vm450, %v2030, 0
  %v2037 = vsel %vm480, %v2032, 0
  %2039 = vmatprep.subr.bf16.mxu0 0
  %2040 = vmatpush1.bf16.msra.mxu0 %v2037
  %2041 = vmatprep.subr.bf16.mxu0 0
  %2042 = vmatpush1.bf16.msra.mxu0 0
  %2043 = vmatprep.subr.bf16.mxu0 0
  %2044 = vmatpush1.bf16.msra.mxu0 0
  %2045 = vmatprep.subr.bf16.mxu0 0
  %2046 = vmatpush1.bf16.msra.mxu0 0
  %2047 = vmatprep.subr.bf16.mxu0 0
  %2048 = vmatpush1.bf16.msra.mxu0 0
  %2049 = vmatprep.subr.bf16.mxu0 0
  %2050 = vmatpush1.bf16.msra.mxu0 0
  %2051 = vmatprep.subr.bf16.mxu0 0
  %2052 = vmatpush1.bf16.msra.mxu0 0
  %2053 = vmatprep.subr.bf16.mxu0 0
  %2054 = vmatpush1.bf16.msra.mxu0 0
  %2055 = vmatprep.subr.bf16.mxu0 0
  %2056 = vmatpush1.bf16.msra.mxu0 0
  %2057 = vmatprep.subr.bf16.mxu0 0
  %2058 = vmatpush1.bf16.msra.mxu0 0
  %2059 = vmatprep.subr.bf16.mxu0 0
  %2060 = vmatpush1.bf16.msra.mxu0 0
  %2061 = vmatprep.subr.bf16.mxu0 0
  %2062 = vmatpush1.bf16.msra.mxu0 0
  %2063 = vmatprep.subr.bf16.mxu0 0
  %2064 = vmatpush1.bf16.msra.mxu0 0
  %2065 = vmatprep.subr.bf16.mxu0 0
  %2066 = vmatpush1.bf16.msra.mxu0 0
  %2067 = vmatprep.subr.bf16.mxu0 0
  %2068 = vmatpush1.bf16.msra.mxu0 0
  %2069 = vmatprep.subr.bf16.mxu0 0
  %2070 = vmatpush1.bf16.msra.mxu0 0
  %2071 = vmatprep.mubr.bf16.mxu0 0
  %2072 = vmatmul.mubr.bf16.gmra.mrb[0].mxu0 %v2034
  %v2073 = vpop.f32.mrb[0].mxu0
  %v2074 = vadd.f32 0.0, %v2073
  %v2075 = vpop.f32.mrb[0].mxu0
  %v2076 = vpop.f32.mrb[0].mxu0
  %v2077 = vadd.f32 0.0, %v2076
  %v2078 = vpop.f32.mrb[0].mxu0
  %2079 = vdwg.mxu0
  %2080 = vrot.lane.b32.xlu0 %v1955, 120
  %v2081 = vpop.permute.xlu0 %2080
  %2082 = vrot.lane.b32.xlu0 %v1955, 88
  %v2083 = vpop.permute.xlu0 %2082
  %v2085 = vsel %vm400, %v2081, 0
  %v2088 = vsel %vm400, %v2083, 0
  %2090 = vmatprep.subr.bf16.mxu0 0
  %2091 = vmatpush1.bf16.xpose.msra.mxu0 %v2088
  %2092 = vmatprep.subr.bf16.mxu0 0
  %2093 = vmatpush1.bf16.xpose.msra.mxu0 0
  %2094 = vmatprep.subr.bf16.mxu0 0
  %2095 = vmatpush1.bf16.xpose.msra.mxu0 0
  %2096 = vmatprep.subr.bf16.mxu0 0
  %2097 = vmatpush1.bf16.xpose.msra.mxu0 0
  %2098 = vmatprep.subr.bf16.mxu0 0
  %2099 = vmatpush1.bf16.xpose.msra.mxu0 0
  %2100 = vmatprep.subr.bf16.mxu0 0
  %2101 = vmatpush1.bf16.xpose.msra.mxu0 0
  %2102 = vmatprep.subr.bf16.mxu0 0
  %2103 = vmatpush1.bf16.xpose.msra.mxu0 0
  %2104 = vmatprep.subr.bf16.mxu0 0
  %2105 = vmatpush1.bf16.xpose.msra.mxu0 0
  %2106 = vmatprep.subr.bf16.mxu0 0
  %2107 = vmatpush1.bf16.xpose.msra.mxu0 0
  %2108 = vmatprep.subr.bf16.mxu0 0
  %2109 = vmatpush1.bf16.xpose.msra.mxu0 0
  %2110 = vmatprep.subr.bf16.mxu0 0
  %2111 = vmatpush1.bf16.xpose.msra.mxu0 0
  %2112 = vmatprep.subr.bf16.mxu0 0
  %2113 = vmatpush1.bf16.xpose.msra.mxu0 0
  %2114 = vmatprep.subr.bf16.mxu0 0
  %2115 = vmatpush1.bf16.xpose.msra.mxu0 0
  %2116 = vmatprep.subr.bf16.mxu0 0
  %2117 = vmatpush1.bf16.xpose.msra.mxu0 0
  %2118 = vmatprep.subr.bf16.mxu0 0
  %2119 = vmatpush1.bf16.xpose.msra.mxu0 0
  %2120 = vmatprep.subr.bf16.mxu0 0
  %2121 = vmatpush1.bf16.xpose.msra.mxu0 0
  %2122 = vmatprep.mubr.bf16.mxu0 0
  %2123 = vmatmul.mubr.bf16.gmra.mrb[0].mxu0 %v2085
  %v2124 = vpop.f32.mrb[0].mxu0
  %v2125 = vadd.f32 0.0, %v2124
  %v2126 = vpop.f32.mrb[0].mxu0
  %v2127 = vpop.f32.mrb[0].mxu0
  %v2128 = vadd.f32 0.0, %v2127
  %v2129 = vpop.f32.mrb[0].mxu0
  %2130 = vdwg.mxu0
  %v2131 = vmul.f32 %v2125, 0.35355338
  %v2132 = vmul.f32 %v2128, 0.35355338
  %v2133 = vsel %vm450, %v2131, -inf
  %2134 = vmax.xlane.f32.xlu0 %v2133
  %v2135 = vpop.xlane.xlu0 %2134
  %v2136 = vsel %vm454, %v2132, -inf
  %2137 = vmax.xlane.f32.xlu0 %v2136
  %v2138 = vpop.xlane.xlu0 %2137
  %v2139 = vsub.f32 %v2131, %v2135
  %v2140 = vsub.f32 %v2132, %v2138
  %v2141 = vmul.f32 %v2139, 1.442695
  %v2142 = vpow.pop %v2141
  %v2143 = vmul.f32 %v2140, 1.442695
  %v2144 = vpow.pop %v2143
  %v2145 = vsel %vm450, %v2142, 0.0
  %2146 = vadd.xlane.f32.xlu0 %v2145
  %v2147 = vpop.xlane.xlu0 %2146
  %v2148 = vsel %vm454, %v2144, 0.0
  %2149 = vadd.xlane.f32.xlu0 %v2148
  %v2150 = vpop.xlane.xlu0 %2149
  %v2151 = vrcp.pop %v2147
  %v2152 = vrcp.pop %v2150
  %v2153 = vmul.f32 %v2142, %v2151
  %v2154 = vmul.f32 %v2144, %v2152
  %v2155 = vpack.c.bf16 %v2154, %v2153
  %2156 = vrot.lane.b32.xlu0 %v1955, 56
  %v2157 = vpop.permute.xlu0 %2156
  %v2159 = vsel %vm450, %v2155, 0
  %v2162 = vsel %vm480, %v2157, 0
  %2164 = vmatprep.subr.bf16.mxu0 0
  %2165 = vmatpush1.bf16.msra.mxu0 %v2162
  %2166 = vmatprep.subr.bf16.mxu0 0
  %2167 = vmatpush1.bf16.msra.mxu0 0
  %2168 = vmatprep.subr.bf16.mxu0 0
  %2169 = vmatpush1.bf16.msra.mxu0 0
  %2170 = vmatprep.subr.bf16.mxu0 0
  %2171 = vmatpush1.bf16.msra.mxu0 0
  %2172 = vmatprep.subr.bf16.mxu0 0
  %2173 = vmatpush1.bf16.msra.mxu0 0
  %2174 = vmatprep.subr.bf16.mxu0 0
  %2175 = vmatpush1.bf16.msra.mxu0 0
  %2176 = vmatprep.subr.bf16.mxu0 0
  %2177 = vmatpush1.bf16.msra.mxu0 0
  %2178 = vmatprep.subr.bf16.mxu0 0
  %2179 = vmatpush1.bf16.msra.mxu0 0
  %2180 = vmatprep.subr.bf16.mxu0 0
  %2181 = vmatpush1.bf16.msra.mxu0 0
  %2182 = vmatprep.subr.bf16.mxu0 0
  %2183 = vmatpush1.bf16.msra.mxu0 0
  %2184 = vmatprep.subr.bf16.mxu0 0
  %2185 = vmatpush1.bf16.msra.mxu0 0
  %2186 = vmatprep.subr.bf16.mxu0 0
  %2187 = vmatpush1.bf16.msra.mxu0 0
  %2188 = vmatprep.subr.bf16.mxu0 0
  %2189 = vmatpush1.bf16.msra.mxu0 0
  %2190 = vmatprep.subr.bf16.mxu0 0
  %2191 = vmatpush1.bf16.msra.mxu0 0
  %2192 = vmatprep.subr.bf16.mxu0 0
  %2193 = vmatpush1.bf16.msra.mxu0 0
  %2194 = vmatprep.subr.bf16.mxu0 0
  %2195 = vmatpush1.bf16.msra.mxu0 0
  %2196 = vmatprep.mubr.bf16.mxu0 0
  %2197 = vmatmul.mubr.bf16.gmra.mrb[0].mxu0 %v2159
  %v2198 = vpop.f32.mrb[0].mxu0
  %v2199 = vadd.f32 0.0, %v2198
  %v2200 = vpop.f32.mrb[0].mxu0
  %v2201 = vpop.f32.mrb[0].mxu0
  %v2202 = vadd.f32 0.0, %v2201
  %v2203 = vpop.f32.mrb[0].mxu0
  %2204 = vdwg.mxu0
  %2205 = vrot.lane.b32.xlu0 %v1955, 112
  %v2206 = vpop.permute.xlu0 %2205
  %2207 = vrot.lane.b32.xlu0 %v1955, 80
  %v2208 = vpop.permute.xlu0 %2207
  %v2210 = vsel %vm400, %v2206, 0
  %v2213 = vsel %vm400, %v2208, 0
  %2215 = vmatprep.subr.bf16.mxu0 0
  %2216 = vmatpush1.bf16.xpose.msra.mxu0 %v2213
  %2217 = vmatprep.subr.bf16.mxu0 0
  %2218 = vmatpush1.bf16.xpose.msra.mxu0 0
  %2219 = vmatprep.subr.bf16.mxu0 0
  %2220 = vmatpush1.bf16.xpose.msra.mxu0 0
  %2221 = vmatprep.subr.bf16.mxu0 0
  %2222 = vmatpush1.bf16.xpose.msra.mxu0 0
  %2223 = vmatprep.subr.bf16.mxu0 0
  %2224 = vmatpush1.bf16.xpose.msra.mxu0 0
  %2225 = vmatprep.subr.bf16.mxu0 0
  %2226 = vmatpush1.bf16.xpose.msra.mxu0 0
  %2227 = vmatprep.subr.bf16.mxu0 0
  %2228 = vmatpush1.bf16.xpose.msra.mxu0 0
  %2229 = vmatprep.subr.bf16.mxu0 0
  %2230 = vmatpush1.bf16.xpose.msra.mxu0 0
  %2231 = vmatprep.subr.bf16.mxu0 0
  %2232 = vmatpush1.bf16.xpose.msra.mxu0 0
  %2233 = vmatprep.subr.bf16.mxu0 0
  %2234 = vmatpush1.bf16.xpose.msra.mxu0 0
  %2235 = vmatprep.subr.bf16.mxu0 0
  %2236 = vmatpush1.bf16.xpose.msra.mxu0 0
  %2237 = vmatprep.subr.bf16.mxu0 0
  %2238 = vmatpush1.bf16.xpose.msra.mxu0 0
  %2239 = vmatprep.subr.bf16.mxu0 0
  %2240 = vmatpush1.bf16.xpose.msra.mxu0 0
  %2241 = vmatprep.subr.bf16.mxu0 0
  %2242 = vmatpush1.bf16.xpose.msra.mxu0 0
  %2243 = vmatprep.subr.bf16.mxu0 0
  %2244 = vmatpush1.bf16.xpose.msra.mxu0 0
  %2245 = vmatprep.subr.bf16.mxu0 0
  %2246 = vmatpush1.bf16.xpose.msra.mxu0 0
  %2247 = vmatprep.mubr.bf16.mxu0 0
  %2248 = vmatmul.mubr.bf16.gmra.mrb[0].mxu0 %v2210
  %v2249 = vpop.f32.mrb[0].mxu0
  %v2250 = vadd.f32 0.0, %v2249
  %v2251 = vpop.f32.mrb[0].mxu0
  %v2252 = vpop.f32.mrb[0].mxu0
  %v2253 = vadd.f32 0.0, %v2252
  %v2254 = vpop.f32.mrb[0].mxu0
  %2255 = vdwg.mxu0
  %v2256 = vmul.f32 %v2250, 0.35355338
  %v2257 = vmul.f32 %v2253, 0.35355338
  %v2258 = vsel %vm450, %v2256, -inf
  %2259 = vmax.xlane.f32.xlu0 %v2258
  %v2260 = vpop.xlane.xlu0 %2259
  %v2261 = vsel %vm454, %v2257, -inf
  %2262 = vmax.xlane.f32.xlu0 %v2261
  %v2263 = vpop.xlane.xlu0 %2262
  %v2264 = vsub.f32 %v2256, %v2260
  %v2265 = vsub.f32 %v2257, %v2263
  %v2266 = vmul.f32 %v2264, 1.442695
  %v2267 = vpow.pop %v2266
  %v2268 = vmul.f32 %v2265, 1.442695
  %v2269 = vpow.pop %v2268
  %v2270 = vsel %vm450, %v2267, 0.0
  %2271 = vadd.xlane.f32.xlu0 %v2270
  %v2272 = vpop.xlane.xlu0 %2271
  %v2273 = vsel %vm454, %v2269, 0.0
  %2274 = vadd.xlane.f32.xlu0 %v2273
  %v2275 = vpop.xlane.xlu0 %2274
  %v2276 = vrcp.pop %v2272
  %v2277 = vrcp.pop %v2275
  %v2278 = vmul.f32 %v2267, %v2276
  %v2279 = vmul.f32 %v2269, %v2277
  %v2280 = vpack.c.bf16 %v2279, %v2278
  %2281 = vrot.lane.b32.xlu0 %v1955, 48
  %v2282 = vpop.permute.xlu0 %2281
  %v2284 = vsel %vm450, %v2280, 0
  %v2287 = vsel %vm480, %v2282, 0
  %2289 = vmatprep.subr.bf16.mxu0 0
  %2290 = vmatpush1.bf16.msra.mxu0 %v2287
  %2291 = vmatprep.subr.bf16.mxu0 0
  %2292 = vmatpush1.bf16.msra.mxu0 0
  %2293 = vmatprep.subr.bf16.mxu0 0
  %2294 = vmatpush1.bf16.msra.mxu0 0
  %2295 = vmatprep.subr.bf16.mxu0 0
  %2296 = vmatpush1.bf16.msra.mxu0 0
  %2297 = vmatprep.subr.bf16.mxu0 0
  %2298 = vmatpush1.bf16.msra.mxu0 0
  %2299 = vmatprep.subr.bf16.mxu0 0
  %2300 = vmatpush1.bf16.msra.mxu0 0
  %2301 = vmatprep.subr.bf16.mxu0 0
  %2302 = vmatpush1.bf16.msra.mxu0 0
  %2303 = vmatprep.subr.bf16.mxu0 0
  %2304 = vmatpush1.bf16.msra.mxu0 0
  %2305 = vmatprep.subr.bf16.mxu0 0
  %2306 = vmatpush1.bf16.msra.mxu0 0
  %2307 = vmatprep.subr.bf16.mxu0 0
  %2308 = vmatpush1.bf16.msra.mxu0 0
  %2309 = vmatprep.subr.bf16.mxu0 0
  %2310 = vmatpush1.bf16.msra.mxu0 0
  %2311 = vmatprep.subr.bf16.mxu0 0
  %2312 = vmatpush1.bf16.msra.mxu0 0
  %2313 = vmatprep.subr.bf16.mxu0 0
  %2314 = vmatpush1.bf16.msra.mxu0 0
  %2315 = vmatprep.subr.bf16.mxu0 0
  %2316 = vmatpush1.bf16.msra.mxu0 0
  %2317 = vmatprep.subr.bf16.mxu0 0
  %2318 = vmatpush1.bf16.msra.mxu0 0
  %2319 = vmatprep.subr.bf16.mxu0 0
  %2320 = vmatpush1.bf16.msra.mxu0 0
  %2321 = vmatprep.mubr.bf16.mxu0 0
  %2322 = vmatmul.mubr.bf16.gmra.mrb[0].mxu0 %v2284
  %v2323 = vpop.f32.mrb[0].mxu0
  %v2324 = vadd.f32 0.0, %v2323
  %v2325 = vpop.f32.mrb[0].mxu0
  %v2326 = vpop.f32.mrb[0].mxu0
  %v2327 = vadd.f32 0.0, %v2326
  %v2328 = vpop.f32.mrb[0].mxu0
  %2329 = vdwg.mxu0
  %2330 = vrot.lane.b32.xlu0 %v1955, 104
  %v2331 = vpop.permute.xlu0 %2330
  %2332 = vrot.lane.b32.xlu0 %v1955, 72
  %v2333 = vpop.permute.xlu0 %2332
  %v2335 = vsel %vm400, %v2331, 0
  %v2338 = vsel %vm400, %v2333, 0
  %2340 = vmatprep.subr.bf16.mxu0 0
  %2341 = vmatpush1.bf16.xpose.msra.mxu0 %v2338
  %2342 = vmatprep.subr.bf16.mxu0 0
  %2343 = vmatpush1.bf16.xpose.msra.mxu0 0
  %2344 = vmatprep.subr.bf16.mxu0 0
  %2345 = vmatpush1.bf16.xpose.msra.mxu0 0
  %2346 = vmatprep.subr.bf16.mxu0 0
  %2347 = vmatpush1.bf16.xpose.msra.mxu0 0
  %2348 = vmatprep.subr.bf16.mxu0 0
  %2349 = vmatpush1.bf16.xpose.msra.mxu0 0
  %2350 = vmatprep.subr.bf16.mxu0 0
  %2351 = vmatpush1.bf16.xpose.msra.mxu0 0
  %2352 = vmatprep.subr.bf16.mxu0 0
  %2353 = vmatpush1.bf16.xpose.msra.mxu0 0
  %2354 = vmatprep.subr.bf16.mxu0 0
  %2355 = vmatpush1.bf16.xpose.msra.mxu0 0
  %2356 = vmatprep.subr.bf16.mxu0 0
  %2357 = vmatpush1.bf16.xpose.msra.mxu0 0
  %2358 = vmatprep.subr.bf16.mxu0 0
  %2359 = vmatpush1.bf16.xpose.msra.mxu0 0
  %2360 = vmatprep.subr.bf16.mxu0 0
  %2361 = vmatpush1.bf16.xpose.msra.mxu0 0
  %2362 = vmatprep.subr.bf16.mxu0 0
  %2363 = vmatpush1.bf16.xpose.msra.mxu0 0
  %2364 = vmatprep.subr.bf16.mxu0 0
  %2365 = vmatpush1.bf16.xpose.msra.mxu0 0
  %2366 = vmatprep.subr.bf16.mxu0 0
  %2367 = vmatpush1.bf16.xpose.msra.mxu0 0
  %2368 = vmatprep.subr.bf16.mxu0 0
  %2369 = vmatpush1.bf16.xpose.msra.mxu0 0
  %2370 = vmatprep.subr.bf16.mxu0 0
  %2371 = vmatpush1.bf16.xpose.msra.mxu0 0
  %2372 = vmatprep.mubr.bf16.mxu0 0
  %2373 = vmatmul.mubr.bf16.gmra.mrb[0].mxu0 %v2335
  %v2374 = vpop.f32.mrb[0].mxu0
  %v2375 = vadd.f32 0.0, %v2374
  %v2376 = vpop.f32.mrb[0].mxu0
  %v2377 = vpop.f32.mrb[0].mxu0
  %v2378 = vadd.f32 0.0, %v2377
  %v2379 = vpop.f32.mrb[0].mxu0
  %2380 = vdwg.mxu0
  %v2381 = vmul.f32 %v2375, 0.35355338
  %v2382 = vmul.f32 %v2378, 0.35355338
  %v2383 = vsel %vm450, %v2381, -inf
  %2384 = vmax.xlane.f32.xlu0 %v2383
  %v2385 = vpop.xlane.xlu0 %2384
  %v2386 = vsel %vm454, %v2382, -inf
  %2387 = vmax.xlane.f32.xlu0 %v2386
  %v2388 = vpop.xlane.xlu0 %2387
  %v2389 = vsub.f32 %v2381, %v2385
  %v2390 = vsub.f32 %v2382, %v2388
  %v2391 = vmul.f32 %v2389, 1.442695
  %v2392 = vpow.pop %v2391
  %v2393 = vmul.f32 %v2390, 1.442695
  %v2394 = vpow.pop %v2393
  %v2395 = vsel %vm450, %v2392, 0.0
  %2396 = vadd.xlane.f32.xlu0 %v2395
  %v2397 = vpop.xlane.xlu0 %2396
  %v2398 = vsel %vm454, %v2394, 0.0
  %2399 = vadd.xlane.f32.xlu0 %v2398
  %v2400 = vpop.xlane.xlu0 %2399
  %v2401 = vrcp.pop %v2397
  %v2402 = vrcp.pop %v2400
  %v2403 = vmul.f32 %v2392, %v2401
  %v2404 = vmul.f32 %v2394, %v2402
  %v2405 = vpack.c.bf16 %v2404, %v2403
  %2406 = vrot.lane.b32.xlu0 %v1955, 40
  %v2407 = vpop.permute.xlu0 %2406
  %v2409 = vsel %vm450, %v2405, 0
  %v2412 = vsel %vm480, %v2407, 0
  %2414 = vmatprep.subr.bf16.mxu0 0
  %2415 = vmatpush1.bf16.msra.mxu0 %v2412
  %2416 = vmatprep.subr.bf16.mxu0 0
  %2417 = vmatpush1.bf16.msra.mxu0 0
  %2418 = vmatprep.subr.bf16.mxu0 0
  %2419 = vmatpush1.bf16.msra.mxu0 0
  %2420 = vmatprep.subr.bf16.mxu0 0
  %2421 = vmatpush1.bf16.msra.mxu0 0
  %2422 = vmatprep.subr.bf16.mxu0 0
  %2423 = vmatpush1.bf16.msra.mxu0 0
  %2424 = vmatprep.subr.bf16.mxu0 0
  %2425 = vmatpush1.bf16.msra.mxu0 0
  %2426 = vmatprep.subr.bf16.mxu0 0
  %2427 = vmatpush1.bf16.msra.mxu0 0
  %2428 = vmatprep.subr.bf16.mxu0 0
  %2429 = vmatpush1.bf16.msra.mxu0 0
  %2430 = vmatprep.subr.bf16.mxu0 0
  %2431 = vmatpush1.bf16.msra.mxu0 0
  %2432 = vmatprep.subr.bf16.mxu0 0
  %2433 = vmatpush1.bf16.msra.mxu0 0
  %2434 = vmatprep.subr.bf16.mxu0 0
  %2435 = vmatpush1.bf16.msra.mxu0 0
  %2436 = vmatprep.subr.bf16.mxu0 0
  %2437 = vmatpush1.bf16.msra.mxu0 0
  %2438 = vmatprep.subr.bf16.mxu0 0
  %2439 = vmatpush1.bf16.msra.mxu0 0
  %2440 = vmatprep.subr.bf16.mxu0 0
  %2441 = vmatpush1.bf16.msra.mxu0 0
  %2442 = vmatprep.subr.bf16.mxu0 0
  %2443 = vmatpush1.bf16.msra.mxu0 0
  %2444 = vmatprep.subr.bf16.mxu0 0
  %2445 = vmatpush1.bf16.msra.mxu0 0
  %2446 = vmatprep.mubr.bf16.mxu0 0
  %2447 = vmatmul.mubr.bf16.gmra.mrb[0].mxu0 %v2409
  %v2448 = vpop.f32.mrb[0].mxu0
  %v2449 = vadd.f32 0.0, %v2448
  %v2450 = vpop.f32.mrb[0].mxu0
  %v2451 = vpop.f32.mrb[0].mxu0
  %v2452 = vadd.f32 0.0, %v2451
  %v2453 = vpop.f32.mrb[0].mxu0
  %2454 = vdwg.mxu0
  %2457 = vrot.lane.b32.xlu0 %v2199, 8
  %v2458 = vpop.permute.xlu0 %2457
  %2459 = vrot.lane.b32.xlu0 %v2202, 8
  %v2460 = vpop.permute.xlu0 %2459
  %2465 = vrot.lane.b32.xlu0 %v2324, 16
  %v2466 = vpop.permute.xlu0 %2465
  %2467 = vrot.lane.b32.xlu0 %v2327, 16
  %v2468 = vpop.permute.xlu0 %2467
  %2473 = vrot.lane.b32.xlu0 %v2449, 24
  %v2474 = vpop.permute.xlu0 %2473
  %2475 = vrot.lane.b32.xlu0 %v2452, 24
  %v2476 = vpop.permute.xlu0 %2475
  %v2479 = vsel %vm400, %v2074, %v2458
  %v2480 = vsel %vm400, %v2077, %v2460
  %v2481 = vsel %vm926, %v2479, %v2466
  %v2482 = vsel %vm926, %v2480, %v2468
  %v2483 = vsel %vm929, %v2481, %v2474
  %v2484 = vsel %vm929, %v2482, %v2476
  %v2485 = vpack.c.bf16 %v1950, %v1945
  %v2487 = vrot.slane %v2485, 2
  %2488 = vrot.lane.b32.xlu0 %v2487, 96
  %v2489 = vpop.permute.xlu0 %2488
  %v2491 = vsel %vm400, %v2487, 0
  %v2494 = vsel %vm400, %v2489, 0
  %2496 = vmatprep.subr.bf16.mxu0 0
  %2497 = vmatpush1.bf16.xpose.msra.mxu0 %v2494
  %2498 = vmatprep.subr.bf16.mxu0 0
  %2499 = vmatpush1.bf16.xpose.msra.mxu0 0
  %2500 = vmatprep.subr.bf16.mxu0 0
  %2501 = vmatpush1.bf16.xpose.msra.mxu0 0
  %2502 = vmatprep.subr.bf16.mxu0 0
  %2503 = vmatpush1.bf16.xpose.msra.mxu0 0
  %2504 = vmatprep.subr.bf16.mxu0 0
  %2505 = vmatpush1.bf16.xpose.msra.mxu0 0
  %2506 = vmatprep.subr.bf16.mxu0 0
  %2507 = vmatpush1.bf16.xpose.msra.mxu0 0
  %2508 = vmatprep.subr.bf16.mxu0 0
  %2509 = vmatpush1.bf16.xpose.msra.mxu0 0
  %2510 = vmatprep.subr.bf16.mxu0 0
  %2511 = vmatpush1.bf16.xpose.msra.mxu0 0
  %2512 = vmatprep.subr.bf16.mxu0 0
  %2513 = vmatpush1.bf16.xpose.msra.mxu0 0
  %2514 = vmatprep.subr.bf16.mxu0 0
  %2515 = vmatpush1.bf16.xpose.msra.mxu0 0
  %2516 = vmatprep.subr.bf16.mxu0 0
  %2517 = vmatpush1.bf16.xpose.msra.mxu0 0
  %2518 = vmatprep.subr.bf16.mxu0 0
  %2519 = vmatpush1.bf16.xpose.msra.mxu0 0
  %2520 = vmatprep.subr.bf16.mxu0 0
  %2521 = vmatpush1.bf16.xpose.msra.mxu0 0
  %2522 = vmatprep.subr.bf16.mxu0 0
  %2523 = vmatpush1.bf16.xpose.msra.mxu0 0
  %2524 = vmatprep.subr.bf16.mxu0 0
  %2525 = vmatpush1.bf16.xpose.msra.mxu0 0
  %2526 = vmatprep.subr.bf16.mxu0 0
  %2527 = vmatpush1.bf16.xpose.msra.mxu0 0
  %2528 = vmatprep.mubr.bf16.mxu0 0
  %2529 = vmatmul.mubr.bf16.gmra.mrb[0].mxu0 %v2491
  %v2530 = vpop.f32.mrb[0].mxu0
  %v2531 = vadd.f32 0.0, %v2530
  %v2532 = vpop.f32.mrb[0].mxu0
  %v2533 = vpop.f32.mrb[0].mxu0
  %v2534 = vadd.f32 0.0, %v2533
  %v2535 = vpop.f32.mrb[0].mxu0
  %2536 = vdwg.mxu0
  %v2537 = vmul.f32 %v2531, 0.35355338
  %v2538 = vmul.f32 %v2534, 0.35355338
  %v2539 = vsel %vm450, %v2537, -inf
  %2540 = vmax.xlane.f32.xlu0 %v2539
  %v2541 = vpop.xlane.xlu0 %2540
  %v2542 = vsel %vm454, %v2538, -inf
  %2543 = vmax.xlane.f32.xlu0 %v2542
  %v2544 = vpop.xlane.xlu0 %2543
  %v2545 = vsub.f32 %v2537, %v2541
  %v2546 = vsub.f32 %v2538, %v2544
  %v2547 = vmul.f32 %v2545, 1.442695
  %v2548 = vpow.pop %v2547
  %v2549 = vmul.f32 %v2546, 1.442695
  %v2550 = vpow.pop %v2549
  %v2551 = vsel %vm450, %v2548, 0.0
  %2552 = vadd.xlane.f32.xlu0 %v2551
  %v2553 = vpop.xlane.xlu0 %2552
  %v2554 = vsel %vm454, %v2550, 0.0
  %2555 = vadd.xlane.f32.xlu0 %v2554
  %v2556 = vpop.xlane.xlu0 %2555
  %v2557 = vrcp.pop %v2553
  %v2558 = vrcp.pop %v2556
  %v2559 = vmul.f32 %v2548, %v2557
  %v2560 = vmul.f32 %v2550, %v2558
  %v2561 = vpack.c.bf16 %v2560, %v2559
  %2562 = vrot.lane.b32.xlu0 %v2487, 64
  %v2563 = vpop.permute.xlu0 %2562
  %v2565 = vsel %vm450, %v2561, 0
  %v2568 = vsel %vm480, %v2563, 0
  %2570 = vmatprep.subr.bf16.mxu0 0
  %2571 = vmatpush1.bf16.msra.mxu0 %v2568
  %2572 = vmatprep.subr.bf16.mxu0 0
  %2573 = vmatpush1.bf16.msra.mxu0 0
  %2574 = vmatprep.subr.bf16.mxu0 0
  %2575 = vmatpush1.bf16.msra.mxu0 0
  %2576 = vmatprep.subr.bf16.mxu0 0
  %2577 = vmatpush1.bf16.msra.mxu0 0
  %2578 = vmatprep.subr.bf16.mxu0 0
  %2579 = vmatpush1.bf16.msra.mxu0 0
  %2580 = vmatprep.subr.bf16.mxu0 0
  %2581 = vmatpush1.bf16.msra.mxu0 0
  %2582 = vmatprep.subr.bf16.mxu0 0
  %2583 = vmatpush1.bf16.msra.mxu0 0
  %2584 = vmatprep.subr.bf16.mxu0 0
  %2585 = vmatpush1.bf16.msra.mxu0 0
  %2586 = vmatprep.subr.bf16.mxu0 0
  %2587 = vmatpush1.bf16.msra.mxu0 0
  %2588 = vmatprep.subr.bf16.mxu0 0
  %2589 = vmatpush1.bf16.msra.mxu0 0
  %2590 = vmatprep.subr.bf16.mxu0 0
  %2591 = vmatpush1.bf16.msra.mxu0 0
  %2592 = vmatprep.subr.bf16.mxu0 0
  %2593 = vmatpush1.bf16.msra.mxu0 0
  %2594 = vmatprep.subr.bf16.mxu0 0
  %2595 = vmatpush1.bf16.msra.mxu0 0
  %2596 = vmatprep.subr.bf16.mxu0 0
  %2597 = vmatpush1.bf16.msra.mxu0 0
  %2598 = vmatprep.subr.bf16.mxu0 0
  %2599 = vmatpush1.bf16.msra.mxu0 0
  %2600 = vmatprep.subr.bf16.mxu0 0
  %2601 = vmatpush1.bf16.msra.mxu0 0
  %2602 = vmatprep.mubr.bf16.mxu0 0
  %2603 = vmatmul.mubr.bf16.gmra.mrb[0].mxu0 %v2565
  %v2604 = vpop.f32.mrb[0].mxu0
  %v2605 = vadd.f32 0.0, %v2604
  %v2606 = vpop.f32.mrb[0].mxu0
  %v2607 = vpop.f32.mrb[0].mxu0
  %v2608 = vadd.f32 0.0, %v2607
  %v2609 = vpop.f32.mrb[0].mxu0
  %2610 = vdwg.mxu0
  %2611 = vrot.lane.b32.xlu0 %v2487, 120
  %v2612 = vpop.permute.xlu0 %2611
  %2613 = vrot.lane.b32.xlu0 %v2487, 88
  %v2614 = vpop.permute.xlu0 %2613
  %v2616 = vsel %vm400, %v2612, 0
  %v2619 = vsel %vm400, %v2614, 0
  %2621 = vmatprep.subr.bf16.mxu0 0
  %2622 = vmatpush1.bf16.xpose.msra.mxu0 %v2619
  %2623 = vmatprep.subr.bf16.mxu0 0
  %2624 = vmatpush1.bf16.xpose.msra.mxu0 0
  %2625 = vmatprep.subr.bf16.mxu0 0
  %2626 = vmatpush1.bf16.xpose.msra.mxu0 0
  %2627 = vmatprep.subr.bf16.mxu0 0
  %2628 = vmatpush1.bf16.xpose.msra.mxu0 0
  %2629 = vmatprep.subr.bf16.mxu0 0
  %2630 = vmatpush1.bf16.xpose.msra.mxu0 0
  %2631 = vmatprep.subr.bf16.mxu0 0
  %2632 = vmatpush1.bf16.xpose.msra.mxu0 0
  %2633 = vmatprep.subr.bf16.mxu0 0
  %2634 = vmatpush1.bf16.xpose.msra.mxu0 0
  %2635 = vmatprep.subr.bf16.mxu0 0
  %2636 = vmatpush1.bf16.xpose.msra.mxu0 0
  %2637 = vmatprep.subr.bf16.mxu0 0
  %2638 = vmatpush1.bf16.xpose.msra.mxu0 0
  %2639 = vmatprep.subr.bf16.mxu0 0
  %2640 = vmatpush1.bf16.xpose.msra.mxu0 0
  %2641 = vmatprep.subr.bf16.mxu0 0
  %2642 = vmatpush1.bf16.xpose.msra.mxu0 0
  %2643 = vmatprep.subr.bf16.mxu0 0
  %2644 = vmatpush1.bf16.xpose.msra.mxu0 0
  %2645 = vmatprep.subr.bf16.mxu0 0
  %2646 = vmatpush1.bf16.xpose.msra.mxu0 0
  %2647 = vmatprep.subr.bf16.mxu0 0
  %2648 = vmatpush1.bf16.xpose.msra.mxu0 0
  %2649 = vmatprep.subr.bf16.mxu0 0
  %2650 = vmatpush1.bf16.xpose.msra.mxu0 0
  %2651 = vmatprep.subr.bf16.mxu0 0
  %2652 = vmatpush1.bf16.xpose.msra.mxu0 0
  %2653 = vmatprep.mubr.bf16.mxu0 0
  %2654 = vmatmul.mubr.bf16.gmra.mrb[0].mxu0 %v2616
  %v2655 = vpop.f32.mrb[0].mxu0
  %v2656 = vadd.f32 0.0, %v2655
  %v2657 = vpop.f32.mrb[0].mxu0
  %v2658 = vpop.f32.mrb[0].mxu0
  %v2659 = vadd.f32 0.0, %v2658
  %v2660 = vpop.f32.mrb[0].mxu0
  %2661 = vdwg.mxu0
  %v2662 = vmul.f32 %v2656, 0.35355338
  %v2663 = vmul.f32 %v2659, 0.35355338
  %v2664 = vsel %vm450, %v2662, -inf
  %2665 = vmax.xlane.f32.xlu0 %v2664
  %v2666 = vpop.xlane.xlu0 %2665
  %v2667 = vsel %vm454, %v2663, -inf
  %2668 = vmax.xlane.f32.xlu0 %v2667
  %v2669 = vpop.xlane.xlu0 %2668
  %v2670 = vsub.f32 %v2662, %v2666
  %v2671 = vsub.f32 %v2663, %v2669
  %v2672 = vmul.f32 %v2670, 1.442695
  %v2673 = vpow.pop %v2672
  %v2674 = vmul.f32 %v2671, 1.442695
  %v2675 = vpow.pop %v2674
  %v2676 = vsel %vm450, %v2673, 0.0
  %2677 = vadd.xlane.f32.xlu0 %v2676
  %v2678 = vpop.xlane.xlu0 %2677
  %v2679 = vsel %vm454, %v2675, 0.0
  %2680 = vadd.xlane.f32.xlu0 %v2679
  %v2681 = vpop.xlane.xlu0 %2680
  %v2682 = vrcp.pop %v2678
  %v2683 = vrcp.pop %v2681
  %v2684 = vmul.f32 %v2673, %v2682
  %v2685 = vmul.f32 %v2675, %v2683
  %v2686 = vpack.c.bf16 %v2685, %v2684
  %2687 = vrot.lane.b32.xlu0 %v2487, 56
  %v2688 = vpop.permute.xlu0 %2687
  %v2690 = vsel %vm450, %v2686, 0
  %v2693 = vsel %vm480, %v2688, 0
  %2695 = vmatprep.subr.bf16.mxu0 0
  %2696 = vmatpush1.bf16.msra.mxu0 %v2693
  %2697 = vmatprep.subr.bf16.mxu0 0
  %2698 = vmatpush1.bf16.msra.mxu0 0
  %2699 = vmatprep.subr.bf16.mxu0 0
  %2700 = vmatpush1.bf16.msra.mxu0 0
  %2701 = vmatprep.subr.bf16.mxu0 0
  %2702 = vmatpush1.bf16.msra.mxu0 0
  %2703 = vmatprep.subr.bf16.mxu0 0
  %2704 = vmatpush1.bf16.msra.mxu0 0
  %2705 = vmatprep.subr.bf16.mxu0 0
  %2706 = vmatpush1.bf16.msra.mxu0 0
  %2707 = vmatprep.subr.bf16.mxu0 0
  %2708 = vmatpush1.bf16.msra.mxu0 0
  %2709 = vmatprep.subr.bf16.mxu0 0
  %2710 = vmatpush1.bf16.msra.mxu0 0
  %2711 = vmatprep.subr.bf16.mxu0 0
  %2712 = vmatpush1.bf16.msra.mxu0 0
  %2713 = vmatprep.subr.bf16.mxu0 0
  %2714 = vmatpush1.bf16.msra.mxu0 0
  %2715 = vmatprep.subr.bf16.mxu0 0
  %2716 = vmatpush1.bf16.msra.mxu0 0
  %2717 = vmatprep.subr.bf16.mxu0 0
  %2718 = vmatpush1.bf16.msra.mxu0 0
  %2719 = vmatprep.subr.bf16.mxu0 0
  %2720 = vmatpush1.bf16.msra.mxu0 0
  %2721 = vmatprep.subr.bf16.mxu0 0
  %2722 = vmatpush1.bf16.msra.mxu0 0
  %2723 = vmatprep.subr.bf16.mxu0 0
  %2724 = vmatpush1.bf16.msra.mxu0 0
  %2725 = vmatprep.subr.bf16.mxu0 0
  %2726 = vmatpush1.bf16.msra.mxu0 0
  %2727 = vmatprep.mubr.bf16.mxu0 0
  %2728 = vmatmul.mubr.bf16.gmra.mrb[0].mxu0 %v2690
  %v2729 = vpop.f32.mrb[0].mxu0
  %v2730 = vadd.f32 0.0, %v2729
  %v2731 = vpop.f32.mrb[0].mxu0
  %v2732 = vpop.f32.mrb[0].mxu0
  %v2733 = vadd.f32 0.0, %v2732
  %v2734 = vpop.f32.mrb[0].mxu0
  %2735 = vdwg.mxu0
  %2736 = vrot.lane.b32.xlu0 %v2487, 112
  %v2737 = vpop.permute.xlu0 %2736
  %2738 = vrot.lane.b32.xlu0 %v2487, 80
  %v2739 = vpop.permute.xlu0 %2738
  %v2741 = vsel %vm400, %v2737, 0
  %v2744 = vsel %vm400, %v2739, 0
  %2746 = vmatprep.subr.bf16.mxu0 0
  %2747 = vmatpush1.bf16.xpose.msra.mxu0 %v2744
  %2748 = vmatprep.subr.bf16.mxu0 0
  %2749 = vmatpush1.bf16.xpose.msra.mxu0 0
  %2750 = vmatprep.subr.bf16.mxu0 0
  %2751 = vmatpush1.bf16.xpose.msra.mxu0 0
  %2752 = vmatprep.subr.bf16.mxu0 0
  %2753 = vmatpush1.bf16.xpose.msra.mxu0 0
  %2754 = vmatprep.subr.bf16.mxu0 0
  %2755 = vmatpush1.bf16.xpose.msra.mxu0 0
  %2756 = vmatprep.subr.bf16.mxu0 0
  %2757 = vmatpush1.bf16.xpose.msra.mxu0 0
  %2758 = vmatprep.subr.bf16.mxu0 0
  %2759 = vmatpush1.bf16.xpose.msra.mxu0 0
  %2760 = vmatprep.subr.bf16.mxu0 0
  %2761 = vmatpush1.bf16.xpose.msra.mxu0 0
  %2762 = vmatprep.subr.bf16.mxu0 0
  %2763 = vmatpush1.bf16.xpose.msra.mxu0 0
  %2764 = vmatprep.subr.bf16.mxu0 0
  %2765 = vmatpush1.bf16.xpose.msra.mxu0 0
  %2766 = vmatprep.subr.bf16.mxu0 0
  %2767 = vmatpush1.bf16.xpose.msra.mxu0 0
  %2768 = vmatprep.subr.bf16.mxu0 0
  %2769 = vmatpush1.bf16.xpose.msra.mxu0 0
  %2770 = vmatprep.subr.bf16.mxu0 0
  %2771 = vmatpush1.bf16.xpose.msra.mxu0 0
  %2772 = vmatprep.subr.bf16.mxu0 0
  %2773 = vmatpush1.bf16.xpose.msra.mxu0 0
  %2774 = vmatprep.subr.bf16.mxu0 0
  %2775 = vmatpush1.bf16.xpose.msra.mxu0 0
  %2776 = vmatprep.subr.bf16.mxu0 0
  %2777 = vmatpush1.bf16.xpose.msra.mxu0 0
  %2778 = vmatprep.mubr.bf16.mxu0 0
  %2779 = vmatmul.mubr.bf16.gmra.mrb[0].mxu0 %v2741
  %v2780 = vpop.f32.mrb[0].mxu0
  %v2781 = vadd.f32 0.0, %v2780
  %v2782 = vpop.f32.mrb[0].mxu0
  %v2783 = vpop.f32.mrb[0].mxu0
  %v2784 = vadd.f32 0.0, %v2783
  %v2785 = vpop.f32.mrb[0].mxu0
  %2786 = vdwg.mxu0
  %v2787 = vmul.f32 %v2781, 0.35355338
  %v2788 = vmul.f32 %v2784, 0.35355338
  %v2789 = vsel %vm450, %v2787, -inf
  %2790 = vmax.xlane.f32.xlu0 %v2789
  %v2791 = vpop.xlane.xlu0 %2790
  %v2792 = vsel %vm454, %v2788, -inf
  %2793 = vmax.xlane.f32.xlu0 %v2792
  %v2794 = vpop.xlane.xlu0 %2793
  %v2795 = vsub.f32 %v2787, %v2791
  %v2796 = vsub.f32 %v2788, %v2794
  %v2797 = vmul.f32 %v2795, 1.442695
  %v2798 = vpow.pop %v2797
  %v2799 = vmul.f32 %v2796, 1.442695
  %v2800 = vpow.pop %v2799
  %v2801 = vsel %vm450, %v2798, 0.0
  %2802 = vadd.xlane.f32.xlu0 %v2801
  %v2803 = vpop.xlane.xlu0 %2802
  %v2804 = vsel %vm454, %v2800, 0.0
  %2805 = vadd.xlane.f32.xlu0 %v2804
  %v2806 = vpop.xlane.xlu0 %2805
  %v2807 = vrcp.pop %v2803
  %v2808 = vrcp.pop %v2806
  %v2809 = vmul.f32 %v2798, %v2807
  %v2810 = vmul.f32 %v2800, %v2808
  %v2811 = vpack.c.bf16 %v2810, %v2809
  %2812 = vrot.lane.b32.xlu0 %v2487, 48
  %v2813 = vpop.permute.xlu0 %2812
  %v2815 = vsel %vm450, %v2811, 0
  %v2818 = vsel %vm480, %v2813, 0
  %2820 = vmatprep.subr.bf16.mxu0 0
  %2821 = vmatpush1.bf16.msra.mxu0 %v2818
  %2822 = vmatprep.subr.bf16.mxu0 0
  %2823 = vmatpush1.bf16.msra.mxu0 0
  %2824 = vmatprep.subr.bf16.mxu0 0
  %2825 = vmatpush1.bf16.msra.mxu0 0
  %2826 = vmatprep.subr.bf16.mxu0 0
  %2827 = vmatpush1.bf16.msra.mxu0 0
  %2828 = vmatprep.subr.bf16.mxu0 0
  %2829 = vmatpush1.bf16.msra.mxu0 0
  %2830 = vmatprep.subr.bf16.mxu0 0
  %2831 = vmatpush1.bf16.msra.mxu0 0
  %2832 = vmatprep.subr.bf16.mxu0 0
  %2833 = vmatpush1.bf16.msra.mxu0 0
  %2834 = vmatprep.subr.bf16.mxu0 0
  %2835 = vmatpush1.bf16.msra.mxu0 0
  %2836 = vmatprep.subr.bf16.mxu0 0
  %2837 = vmatpush1.bf16.msra.mxu0 0
  %2838 = vmatprep.subr.bf16.mxu0 0
  %2839 = vmatpush1.bf16.msra.mxu0 0
  %2840 = vmatprep.subr.bf16.mxu0 0
  %2841 = vmatpush1.bf16.msra.mxu0 0
  %2842 = vmatprep.subr.bf16.mxu0 0
  %2843 = vmatpush1.bf16.msra.mxu0 0
  %2844 = vmatprep.subr.bf16.mxu0 0
  %2845 = vmatpush1.bf16.msra.mxu0 0
  %2846 = vmatprep.subr.bf16.mxu0 0
  %2847 = vmatpush1.bf16.msra.mxu0 0
  %2848 = vmatprep.subr.bf16.mxu0 0
  %2849 = vmatpush1.bf16.msra.mxu0 0
  %2850 = vmatprep.subr.bf16.mxu0 0
  %2851 = vmatpush1.bf16.msra.mxu0 0
  %2852 = vmatprep.mubr.bf16.mxu0 0
  %2853 = vmatmul.mubr.bf16.gmra.mrb[0].mxu0 %v2815
  %v2854 = vpop.f32.mrb[0].mxu0
  %v2855 = vadd.f32 0.0, %v2854
  %v2856 = vpop.f32.mrb[0].mxu0
  %v2857 = vpop.f32.mrb[0].mxu0
  %v2858 = vadd.f32 0.0, %v2857
  %v2859 = vpop.f32.mrb[0].mxu0
  %2860 = vdwg.mxu0
  %2861 = vrot.lane.b32.xlu0 %v2487, 104
  %v2862 = vpop.permute.xlu0 %2861
  %2863 = vrot.lane.b32.xlu0 %v2487, 72
  %v2864 = vpop.permute.xlu0 %2863
  %v2866 = vsel %vm400, %v2862, 0
  %v2869 = vsel %vm400, %v2864, 0
  %2871 = vmatprep.subr.bf16.mxu0 0
  %2872 = vmatpush1.bf16.xpose.msra.mxu0 %v2869
  %2873 = vmatprep.subr.bf16.mxu0 0
  %2874 = vmatpush1.bf16.xpose.msra.mxu0 0
  %2875 = vmatprep.subr.bf16.mxu0 0
  %2876 = vmatpush1.bf16.xpose.msra.mxu0 0
  %2877 = vmatprep.subr.bf16.mxu0 0
  %2878 = vmatpush1.bf16.xpose.msra.mxu0 0
  %2879 = vmatprep.subr.bf16.mxu0 0
  %2880 = vmatpush1.bf16.xpose.msra.mxu0 0
  %2881 = vmatprep.subr.bf16.mxu0 0
  %2882 = vmatpush1.bf16.xpose.msra.mxu0 0
  %2883 = vmatprep.subr.bf16.mxu0 0
  %2884 = vmatpush1.bf16.xpose.msra.mxu0 0
  %2885 = vmatprep.subr.bf16.mxu0 0
  %2886 = vmatpush1.bf16.xpose.msra.mxu0 0
  %2887 = vmatprep.subr.bf16.mxu0 0
  %2888 = vmatpush1.bf16.xpose.msra.mxu0 0
  %2889 = vmatprep.subr.bf16.mxu0 0
  %2890 = vmatpush1.bf16.xpose.msra.mxu0 0
  %2891 = vmatprep.subr.bf16.mxu0 0
  %2892 = vmatpush1.bf16.xpose.msra.mxu0 0
  %2893 = vmatprep.subr.bf16.mxu0 0
  %2894 = vmatpush1.bf16.xpose.msra.mxu0 0
  %2895 = vmatprep.subr.bf16.mxu0 0
  %2896 = vmatpush1.bf16.xpose.msra.mxu0 0
  %2897 = vmatprep.subr.bf16.mxu0 0
  %2898 = vmatpush1.bf16.xpose.msra.mxu0 0
  %2899 = vmatprep.subr.bf16.mxu0 0
  %2900 = vmatpush1.bf16.xpose.msra.mxu0 0
  %2901 = vmatprep.subr.bf16.mxu0 0
  %2902 = vmatpush1.bf16.xpose.msra.mxu0 0
  %2903 = vmatprep.mubr.bf16.mxu0 0
  %2904 = vmatmul.mubr.bf16.gmra.mrb[0].mxu0 %v2866
  %v2905 = vpop.f32.mrb[0].mxu0
  %v2906 = vadd.f32 0.0, %v2905
  %v2907 = vpop.f32.mrb[0].mxu0
  %v2908 = vpop.f32.mrb[0].mxu0
  %v2909 = vadd.f32 0.0, %v2908
  %v2910 = vpop.f32.mrb[0].mxu0
  %2911 = vdwg.mxu0
  %v2912 = vmul.f32 %v2906, 0.35355338
  %v2913 = vmul.f32 %v2909, 0.35355338
  %v2914 = vsel %vm450, %v2912, -inf
  %2915 = vmax.xlane.f32.xlu0 %v2914
  %v2916 = vpop.xlane.xlu0 %2915
  %v2917 = vsel %vm454, %v2913, -inf
  %2918 = vmax.xlane.f32.xlu0 %v2917
  %v2919 = vpop.xlane.xlu0 %2918
  %v2920 = vsub.f32 %v2912, %v2916
  %v2921 = vsub.f32 %v2913, %v2919
  %v2922 = vmul.f32 %v2920, 1.442695
  %v2923 = vpow.pop %v2922
  %v2924 = vmul.f32 %v2921, 1.442695
  %v2925 = vpow.pop %v2924
  %v2926 = vsel %vm450, %v2923, 0.0
  %2927 = vadd.xlane.f32.xlu0 %v2926
  %v2928 = vpop.xlane.xlu0 %2927
  %v2929 = vsel %vm454, %v2925, 0.0
  %2930 = vadd.xlane.f32.xlu0 %v2929
  %v2931 = vpop.xlane.xlu0 %2930
  %v2932 = vrcp.pop %v2928
  %v2933 = vrcp.pop %v2931
  %v2934 = vmul.f32 %v2923, %v2932
  %v2935 = vmul.f32 %v2925, %v2933
  %v2936 = vpack.c.bf16 %v2935, %v2934
  %2937 = vrot.lane.b32.xlu0 %v2487, 40
  %v2938 = vpop.permute.xlu0 %2937
  %v2940 = vsel %vm450, %v2936, 0
  %v2943 = vsel %vm480, %v2938, 0
  %2945 = vmatprep.subr.bf16.mxu0 0
  %2946 = vmatpush1.bf16.msra.mxu0 %v2943
  %2947 = vmatprep.subr.bf16.mxu0 0
  %2948 = vmatpush1.bf16.msra.mxu0 0
  %2949 = vmatprep.subr.bf16.mxu0 0
  %2950 = vmatpush1.bf16.msra.mxu0 0
  %2951 = vmatprep.subr.bf16.mxu0 0
  %2952 = vmatpush1.bf16.msra.mxu0 0
  %2953 = vmatprep.subr.bf16.mxu0 0
  %2954 = vmatpush1.bf16.msra.mxu0 0
  %2955 = vmatprep.subr.bf16.mxu0 0
  %2956 = vmatpush1.bf16.msra.mxu0 0
  %2957 = vmatprep.subr.bf16.mxu0 0
  %2958 = vmatpush1.bf16.msra.mxu0 0
  %2959 = vmatprep.subr.bf16.mxu0 0
  %2960 = vmatpush1.bf16.msra.mxu0 0
  %2961 = vmatprep.subr.bf16.mxu0 0
  %2962 = vmatpush1.bf16.msra.mxu0 0
  %2963 = vmatprep.subr.bf16.mxu0 0
  %2964 = vmatpush1.bf16.msra.mxu0 0
  %2965 = vmatprep.subr.bf16.mxu0 0
  %2966 = vmatpush1.bf16.msra.mxu0 0
  %2967 = vmatprep.subr.bf16.mxu0 0
  %2968 = vmatpush1.bf16.msra.mxu0 0
  %2969 = vmatprep.subr.bf16.mxu0 0
  %2970 = vmatpush1.bf16.msra.mxu0 0
  %2971 = vmatprep.subr.bf16.mxu0 0
  %2972 = vmatpush1.bf16.msra.mxu0 0
  %2973 = vmatprep.subr.bf16.mxu0 0
  %2974 = vmatpush1.bf16.msra.mxu0 0
  %2975 = vmatprep.subr.bf16.mxu0 0
  %2976 = vmatpush1.bf16.msra.mxu0 0
  %2977 = vmatprep.mubr.bf16.mxu0 0
  %2978 = vmatmul.mubr.bf16.gmra.mrb[0].mxu0 %v2940
  %v2979 = vpop.f32.mrb[0].mxu0
  %v2980 = vadd.f32 0.0, %v2979
  %v2981 = vpop.f32.mrb[0].mxu0
  %v2982 = vpop.f32.mrb[0].mxu0
  %v2983 = vadd.f32 0.0, %v2982
  %v2984 = vpop.f32.mrb[0].mxu0
  %2985 = vdwg.mxu0
  %2988 = vrot.lane.b32.xlu0 %v2730, 8
  %v2989 = vpop.permute.xlu0 %2988
  %2990 = vrot.lane.b32.xlu0 %v2733, 8
  %v2991 = vpop.permute.xlu0 %2990
  %2996 = vrot.lane.b32.xlu0 %v2855, 16
  %v2997 = vpop.permute.xlu0 %2996
  %2998 = vrot.lane.b32.xlu0 %v2858, 16
  %v2999 = vpop.permute.xlu0 %2998
  %3004 = vrot.lane.b32.xlu0 %v2980, 24
  %v3005 = vpop.permute.xlu0 %3004
  %3006 = vrot.lane.b32.xlu0 %v2983, 24
  %v3007 = vpop.permute.xlu0 %3006
  %v3010 = vsel %vm400, %v2605, %v2989
  %v3011 = vsel %vm400, %v2608, %v2991
  %v3012 = vsel %vm926, %v3010, %v2997
  %v3013 = vsel %vm926, %v3011, %v2999
  %v3014 = vsel %vm929, %v3012, %v3005
  %v3015 = vsel %vm929, %v3013, %v3007
  %v3018 = vrot.slane %v3014, 4
  %v3019 = vrot.slane %v3015, 4
  %v3020 = vsel %vm246, %v3018, %v3019
  %v3023 = vsel %vm246, %v2484, %v3018
  %v3024 = vpack.c.bf16 %v3023, %v2483
  %v3025 = vpack.c.bf16 %v3020, %v3020
  %v3026 = vld [vmem:[%s41] sm:$0xf]
  %v3027 = vld [vmem:[%s41 + $0x4] sm:$0xf]
  %v3028 = vld [vmem:[%s41 + $0x8] sm:$0xf]
  %v3029 = vld [vmem:[%s41 + $0xc] sm:$0xf]
  %v3030 = vld [vmem:[%s43] sm:$0x1]
  %v3032 = vlaneseq
  %v3033 = vshrl.u32 %v3032, 7
  %v3034 = vsub.s32 0, %v3033
  %v3035 = vrot.slane %v3030, %v3034
  %v3041 = vunpack.c.l.b16 %v3026
  %v3042 = vunpack.c.l.b16 %v3027
  %v3043 = vunpack.c.l.b16 %v3028
  %v3044 = vunpack.c.l.b16 %v3029
  %v3045 = vpack.c.b16 %v3042, %v3041
  %v3046 = vpack.c.b16 %v3044, %v3043
  %v3050 = vsel %vm256, %v3024, 0
  %v3053 = vsel %vm256, %v3025, 0
  %3055 = vmatprep.subr.bf16.mxu0 0
  %3056 = vmatpush1.bf16.msra.mxu0 %v3045
  %3057 = vmatprep.subr.bf16.mxu0 0
  %3058 = vmatpush1.bf16.msra.mxu0 %v3046
  %3059 = vmatprep.subr.bf16.mxu0 0
  %3060 = vmatpush1.bf16.msra.mxu0 0
  %3061 = vmatprep.subr.bf16.mxu0 0
  %3062 = vmatpush1.bf16.msra.mxu0 0
  %3063 = vmatprep.subr.bf16.mxu0 0
  %3064 = vmatpush1.bf16.msra.mxu0 0
  %3065 = vmatprep.subr.bf16.mxu0 0
  %3066 = vmatpush1.bf16.msra.mxu0 0
  %3067 = vmatprep.subr.bf16.mxu0 0
  %3068 = vmatpush1.bf16.msra.mxu0 0
  %3069 = vmatprep.subr.bf16.mxu0 0
  %3070 = vmatpush1.bf16.msra.mxu0 0
  %3071 = vmatprep.subr.bf16.mxu0 0
  %3072 = vmatpush1.bf16.msra.mxu0 0
  %3073 = vmatprep.subr.bf16.mxu0 0
  %3074 = vmatpush1.bf16.msra.mxu0 0
  %3075 = vmatprep.subr.bf16.mxu0 0
  %3076 = vmatpush1.bf16.msra.mxu0 0
  %3077 = vmatprep.subr.bf16.mxu0 0
  %3078 = vmatpush1.bf16.msra.mxu0 0
  %3079 = vmatprep.subr.bf16.mxu0 0
  %3080 = vmatpush1.bf16.msra.mxu0 0
  %3081 = vmatprep.subr.bf16.mxu0 0
  %3082 = vmatpush1.bf16.msra.mxu0 0
  %3083 = vmatprep.subr.bf16.mxu0 0
  %3084 = vmatpush1.bf16.msra.mxu0 0
  %3085 = vmatprep.subr.bf16.mxu0 0
  %3086 = vmatpush1.bf16.msra.mxu0 0
  %3087 = vmatprep.mubr.bf16.mxu0 0
  %3088 = vmatmul.mubr.bf16.gmra.mrb[0].mxu0 %v3050
  %v3089 = vpop.f32.mrb[0].mxu0
  %v3090 = vadd.f32 %v3035, %v3089
  %v3091 = vpop.f32.mrb[0].mxu0
  %v3092 = vpop.f32.mrb[0].mxu0
  %v3093 = vadd.f32 %v3035, %v3092
  %v3094 = vpop.f32.mrb[0].mxu0
  %3095 = vmatprep.mubr.bf16.mxu0 0
  %3096 = vmatmul.mubr.bf16.gmra.mrb[0].mxu0 %v3053
  %v3097 = vpop.f32.mrb[0].mxu0
  %v3098 = vadd.f32 %v3035, %v3097
  %v3099 = vpop.f32.mrb[0].mxu0
  %v3100 = vpop.f32.mrb[0].mxu0
  %v3101 = vpop.f32.mrb[0].mxu0
  %3102 = vdwg.mxu0
  %v3103 = vadd.f32 %v1814, %v3090
  %v3104 = vadd.f32 %v1815, %v3093
  %v3105 = vadd.f32 %v1816, %v3098
  %v3106 = vsel %vm256, %v3103, 0.0
  %3107 = vadd.xlane.f32.xlu0 %v3106
  %v3108 = vpop.xlane.xlu0 %3107
  %v3109 = vsel %vm256, %v3104, 0.0
  %3110 = vadd.xlane.f32.xlu0 %v3109
  %v3111 = vpop.xlane.xlu0 %3110
  %v3112 = vsel %vm256, %v3105, 0.0
  %3113 = vadd.xlane.f32.xlu0 %v3112
  %v3114 = vpop.xlane.xlu0 %3113
  %v3115 = vmul.f32 %v3108, %v266
  %v3116 = vmul.f32 %v3111, %v266
  %v3117 = vmul.f32 %v3114, %v266
  %v3118 = vsub.f32 %v3103, %v3115
  %v3119 = vsub.f32 %v3104, %v3116
  %v3120 = vsub.f32 %v3105, %v3117
  %v3121 = vmul.f32 %v3118, %v3118
  %v3122 = vmul.f32 %v3119, %v3119
  %v3123 = vmul.f32 %v3120, %v3120
  %v3124 = vsel %vm256, %v3121, 0.0
  %3125 = vadd.xlane.f32.xlu0 %v3124
  %v3126 = vpop.xlane.xlu0 %3125
  %v3127 = vsel %vm256, %v3122, 0.0
  %3128 = vadd.xlane.f32.xlu0 %v3127
  %v3129 = vpop.xlane.xlu0 %3128
  %v3130 = vsel %vm256, %v3123, 0.0
  %3131 = vadd.xlane.f32.xlu0 %v3130
  %v3132 = vpop.xlane.xlu0 %3131
  %v3133 = vmul.f32 %v3126, %v266
  %v3134 = vmul.f32 %v3129, %v266
  %v3135 = vmul.f32 %v3132, %v266
  %v3136 = vadd.f32 %v3133, 1e-06
  %v3137 = vadd.f32 %v3134, 1e-06
  %v3138 = vadd.f32 %v3135, 1e-06
  %v3139 = vrsqrt.pop %v3136
  %v3140 = vrsqrt.pop %v3137
  %v3141 = vrsqrt.pop %v3138
  %v3142 = vmul.f32 %v3118, %v3139
  %v3143 = vmul.f32 %v3119, %v3140
  %v3144 = vmul.f32 %v3120, %v3141
  %v3145 = vld [vmem:[%s45] sm:$0x1]
  %v3147 = vlaneseq
  %v3148 = vshrl.u32 %v3147, 7
  %v3149 = vsub.s32 0, %v3148
  %v3150 = vrot.slane %v3145, %v3149
  %v3152 = vmul.f32 %v3142, %v3150
  %v3153 = vmul.f32 %v3143, %v3150
  %v3154 = vmul.f32 %v3144, %v3150
  %v3155 = vld [vmem:[%s47] sm:$0x1]
  %v3157 = vlaneseq
  %v3158 = vshrl.u32 %v3157, 7
  %v3159 = vsub.s32 0, %v3158
  %v3160 = vrot.slane %v3155, %v3159
  %v3162 = vadd.f32 %v3152, %v3160
  %v3163 = vadd.f32 %v3153, %v3160
  %v3164 = vadd.f32 %v3154, %v3160
  %v3165 = vpack.c.bf16 %v3163, %v3162
  %v3166 = vpack.c.bf16 %v3164, %v3164
  %v3167 = vld [vmem:[%s49] sm:$0xf]
  %v3168 = vld [vmem:[%s49 + $0x4] sm:$0xf]
  %v3169 = vld [vmem:[%s49 + $0x8] sm:$0xf]
  %v3170 = vld [vmem:[%s49 + $0xc] sm:$0xf]
  %v3171 = vld [vmem:[%s51] sm:$0x1]
  %v3173 = vlaneseq
  %v3174 = vshrl.u32 %v3173, 7
  %v3175 = vsub.s32 0, %v3174
  %v3176 = vrot.slane %v3171, %v3175
  %v3182 = vunpack.c.l.b16 %v3167
  %v3183 = vunpack.c.l.b16 %v3168
  %v3184 = vunpack.c.l.b16 %v3169
  %v3185 = vunpack.c.l.b16 %v3170
  %v3186 = vpack.c.b16 %v3183, %v3182
  %v3187 = vpack.c.b16 %v3185, %v3184
  %v3191 = vsel %vm256, %v3165, 0
  %v3194 = vsel %vm256, %v3166, 0
  %3196 = vmatprep.subr.bf16.mxu0 0
  %3197 = vmatpush1.bf16.msra.mxu0 %v3186
  %3198 = vmatprep.subr.bf16.mxu0 0
  %3199 = vmatpush1.bf16.msra.mxu0 %v3187
  %3200 = vmatprep.subr.bf16.mxu0 0
  %3201 = vmatpush1.bf16.msra.mxu0 0
  %3202 = vmatprep.subr.bf16.mxu0 0
  %3203 = vmatpush1.bf16.msra.mxu0 0
  %3204 = vmatprep.subr.bf16.mxu0 0
  %3205 = vmatpush1.bf16.msra.mxu0 0
  %3206 = vmatprep.subr.bf16.mxu0 0
  %3207 = vmatpush1.bf16.msra.mxu0 0
  %3208 = vmatprep.subr.bf16.mxu0 0
  %3209 = vmatpush1.bf16.msra.mxu0 0
  %3210 = vmatprep.subr.bf16.mxu0 0
  %3211 = vmatpush1.bf16.msra.mxu0 0
  %3212 = vmatprep.subr.bf16.mxu0 0
  %3213 = vmatpush1.bf16.msra.mxu0 0
  %3214 = vmatprep.subr.bf16.mxu0 0
  %3215 = vmatpush1.bf16.msra.mxu0 0
  %3216 = vmatprep.subr.bf16.mxu0 0
  %3217 = vmatpush1.bf16.msra.mxu0 0
  %3218 = vmatprep.subr.bf16.mxu0 0
  %3219 = vmatpush1.bf16.msra.mxu0 0
  %3220 = vmatprep.subr.bf16.mxu0 0
  %3221 = vmatpush1.bf16.msra.mxu0 0
  %3222 = vmatprep.subr.bf16.mxu0 0
  %3223 = vmatpush1.bf16.msra.mxu0 0
  %3224 = vmatprep.subr.bf16.mxu0 0
  %3225 = vmatpush1.bf16.msra.mxu0 0
  %3226 = vmatprep.subr.bf16.mxu0 0
  %3227 = vmatpush1.bf16.msra.mxu0 0
  %3228 = vmatprep.mubr.bf16.mxu0 0
  %3229 = vmatmul.mubr.bf16.gmra.mrb[0].mxu0 %v3191
  %v3230 = vpop.f32.mrb[0].mxu0
  %v3231 = vadd.f32 %v3176, %v3230
  %v3232 = vpop.f32.mrb[0].mxu0
  %v3233 = vpop.f32.mrb[0].mxu0
  %v3234 = vadd.f32 %v3176, %v3233
  %v3235 = vpop.f32.mrb[0].mxu0
  %3236 = vmatprep.mubr.bf16.mxu0 0
  %3237 = vmatmul.mubr.bf16.gmra.mrb[0].mxu0 %v3194
  %v3238 = vpop.f32.mrb[0].mxu0
  %v3239 = vadd.f32 %v3176, %v3238
  %v3240 = vpop.f32.mrb[0].mxu0
  %v3241 = vpop.f32.mrb[0].mxu0
  %v3242 = vpop.f32.mrb[0].mxu0
  %3243 = vdwg.mxu0
  %v3244 = vmul.f32 %v3231, %v3231
  %v3245 = vmul.f32 %v3234, %v3234
  %v3246 = vmul.f32 %v3239, %v3239
  %v3247 = vmul.f32 %v3231, %v3244
  %v3248 = vmul.f32 %v3234, %v3245
  %v3249 = vmul.f32 %v3239, %v3246
  %v3250 = vmul.f32 %v3247, 0.044715
  %v3251 = vmul.f32 %v3248, 0.044715
  %v3252 = vmul.f32 %v3249, 0.044715
  %v3253 = vadd.f32 %v3231, %v3250
  %v3254 = vadd.f32 %v3234, %v3251
  %v3255 = vadd.f32 %v3239, %v3252
  %v3256 = vmul.f32 %v3253, 0.7978846
  %v3257 = vmul.f32 %v3254, 0.7978846
  %v3258 = vmul.f32 %v3255, 0.7978846
  %v3259 = vtanh.pop %v3256
  %v3260 = vtanh.pop %v3257
  %v3261 = vtanh.pop %v3258
  %v3262 = vadd.f32 %v3259, 1.0
  %v3263 = vadd.f32 %v3260, 1.0
  %v3264 = vadd.f32 %v3261, 1.0
  %v3265 = vmul.f32 %v3262, 0.5
  %v3266 = vmul.f32 %v3263, 0.5
  %v3267 = vmul.f32 %v3264, 0.5
  %v3268 = vmul.f32 %v3231, %v3265
  %v3269 = vmul.f32 %v3234, %v3266
  %v3270 = vmul.f32 %v3239, %v3267
  %v3271 = vpack.c.bf16 %v3269, %v3268
  %v3272 = vpack.c.bf16 %v3270, %v3270
  %v3273 = vld [vmem:[%s53] sm:$0xf]
  %v3274 = vld [vmem:[%s53 + $0x4] sm:$0xf]
  %v3275 = vld [vmem:[%s53 + $0x8] sm:$0xf]
  %v3276 = vld [vmem:[%s53 + $0xc] sm:$0xf]
  %v3277 = vld [vmem:[%s53 + $0x10] sm:$0xf]
  %v3278 = vld [vmem:[%s53 + $0x14] sm:$0xf]
  %v3279 = vld [vmem:[%s53 + $0x18] sm:$0xf]
  %v3280 = vld [vmem:[%s53 + $0x1c] sm:$0xf]
  %v3281 = vld [vmem:[%s55] sm:$0x1]
  %v3283 = vlaneseq
  %v3284 = vshrl.u32 %v3283, 7
  %v3285 = vsub.s32 0, %v3284
  %v3286 = vrot.slane %v3281, %v3285
  %v3296 = vunpack.c.l.b16 %v3273
  %v3297 = vunpack.c.l.b16 %v3274
  %v3298 = vunpack.c.l.b16 %v3275
  %v3299 = vunpack.c.l.b16 %v3276
  %v3300 = vunpack.c.l.b16 %v3277
  %v3301 = vunpack.c.l.b16 %v3278
  %v3302 = vunpack.c.l.b16 %v3279
  %v3303 = vunpack.c.l.b16 %v3280
  %v3304 = vpack.c.b16 %v3297, %v3296
  %v3305 = vpack.c.b16 %v3299, %v3298
  %v3306 = vpack.c.b16 %v3301, %v3300
  %v3307 = vpack.c.b16 %v3303, %v3302
  %v3313 = vsel %vm1759, %v3271, 0
  %v3316 = vsel %vm1759, %v3272, 0
  %3318 = vmatprep.subr.bf16.mxu0 0
  %3319 = vmatpush1.bf16.msra.mxu0 %v3304
  %3320 = vmatprep.subr.bf16.mxu0 0
  %3321 = vmatpush1.bf16.msra.mxu0 %v3305
  %3322 = vmatprep.subr.bf16.mxu0 0
  %3323 = vmatpush1.bf16.msra.mxu0 %v3306
  %3324 = vmatprep.subr.bf16.mxu0 0
  %3325 = vmatpush1.bf16.msra.mxu0 %v3307
  %3326 = vmatprep.subr.bf16.mxu0 0
  %3327 = vmatpush1.bf16.msra.mxu0 0
  %3328 = vmatprep.subr.bf16.mxu0 0
  %3329 = vmatpush1.bf16.msra.mxu0 0
  %3330 = vmatprep.subr.bf16.mxu0 0
  %3331 = vmatpush1.bf16.msra.mxu0 0
  %3332 = vmatprep.subr.bf16.mxu0 0
  %3333 = vmatpush1.bf16.msra.mxu0 0
  %3334 = vmatprep.subr.bf16.mxu0 0
  %3335 = vmatpush1.bf16.msra.mxu0 0
  %3336 = vmatprep.subr.bf16.mxu0 0
  %3337 = vmatpush1.bf16.msra.mxu0 0
  %3338 = vmatprep.subr.bf16.mxu0 0
  %3339 = vmatpush1.bf16.msra.mxu0 0
  %3340 = vmatprep.subr.bf16.mxu0 0
  %3341 = vmatpush1.bf16.msra.mxu0 0
  %3342 = vmatprep.subr.bf16.mxu0 0
  %3343 = vmatpush1.bf16.msra.mxu0 0
  %3344 = vmatprep.subr.bf16.mxu0 0
  %3345 = vmatpush1.bf16.msra.mxu0 0
  %3346 = vmatprep.subr.bf16.mxu0 0
  %3347 = vmatpush1.bf16.msra.mxu0 0
  %3348 = vmatprep.subr.bf16.mxu0 0
  %3349 = vmatpush1.bf16.msra.mxu0 0
  %3350 = vmatprep.mubr.bf16.mxu0 0
  %3351 = vmatmul.mubr.bf16.gmra.mrb[0].mxu0 %v3313
  %v3352 = vpop.f32.mrb[0].mxu0
  %v3353 = vadd.f32 %v3286, %v3352
  %v3354 = vpop.f32.mrb[0].mxu0
  %v3355 = vpop.f32.mrb[0].mxu0
  %v3356 = vadd.f32 %v3286, %v3355
  %v3357 = vpop.f32.mrb[0].mxu0
  %3358 = vmatprep.mubr.bf16.mxu0 0
  %3359 = vmatmul.mubr.bf16.gmra.mrb[0].mxu0 %v3316
  %v3360 = vpop.f32.mrb[0].mxu0
  %v3361 = vadd.f32 %v3286, %v3360
  %v3362 = vpop.f32.mrb[0].mxu0
  %v3363 = vpop.f32.mrb[0].mxu0
  %v3364 = vpop.f32.mrb[0].mxu0
  %3365 = vdwg.mxu0
  %v3366 = vadd.f32 %v3103, %v3353
  %v3367 = vadd.f32 %v3104, %v3356
  %v3368 = vadd.f32 %v3105, %v3361
  %v3369 = vsel %vm256, %v3366, 0.0
  %3370 = vadd.xlane.f32.xlu0 %v3369
  %v3371 = vpop.xlane.xlu0 %3370
  %v3372 = vsel %vm256, %v3367, 0.0
  %3373 = vadd.xlane.f32.xlu0 %v3372
  %v3374 = vpop.xlane.xlu0 %3373
  %v3375 = vsel %vm256, %v3368, 0.0
  %3376 = vadd.xlane.f32.xlu0 %v3375
  %v3377 = vpop.xlane.xlu0 %3376
  %v3378 = vmul.f32 %v3371, %v266
  %v3379 = vmul.f32 %v3374, %v266
  %v3380 = vmul.f32 %v3377, %v266
  %v3381 = vsub.f32 %v3366, %v3378
  %v3382 = vsub.f32 %v3367, %v3379
  %v3383 = vsub.f32 %v3368, %v3380
  %v3384 = vmul.f32 %v3381, %v3381
  %v3385 = vmul.f32 %v3382, %v3382
  %v3386 = vmul.f32 %v3383, %v3383
  %v3387 = vsel %vm256, %v3384, 0.0
  %3388 = vadd.xlane.f32.xlu0 %v3387
  %v3389 = vpop.xlane.xlu0 %3388
  %v3390 = vsel %vm256, %v3385, 0.0
  %3391 = vadd.xlane.f32.xlu0 %v3390
  %v3392 = vpop.xlane.xlu0 %3391
  %v3393 = vsel %vm256, %v3386, 0.0
  %3394 = vadd.xlane.f32.xlu0 %v3393
  %v3395 = vpop.xlane.xlu0 %3394
  %v3396 = vmul.f32 %v3389, %v266
  %v3397 = vmul.f32 %v3392, %v266
  %v3398 = vmul.f32 %v3395, %v266
  %v3399 = vadd.f32 %v3396, 1e-06
  %v3400 = vadd.f32 %v3397, 1e-06
  %v3401 = vadd.f32 %v3398, 1e-06
  %v3402 = vrsqrt.pop %v3399
  %v3403 = vrsqrt.pop %v3400
  %v3404 = vrsqrt.pop %v3401
  %v3405 = vmul.f32 %v3381, %v3402
  %v3406 = vmul.f32 %v3382, %v3403
  %v3407 = vmul.f32 %v3383, %v3404
  %v3408 = vld [vmem:[%s57] sm:$0x1]
  %v3410 = vlaneseq
  %v3411 = vshrl.u32 %v3410, 7
  %v3412 = vsub.s32 0, %v3411
  %v3413 = vrot.slane %v3408, %v3412
  %v3415 = vmul.f32 %v3405, %v3413
  %v3416 = vmul.f32 %v3406, %v3413
  %v3417 = vmul.f32 %v3407, %v3413
  %v3418 = vld [vmem:[%s59] sm:$0x1]
  %v3420 = vlaneseq
  %v3421 = vshrl.u32 %v3420, 7
  %v3422 = vsub.s32 0, %v3421
  %v3423 = vrot.slane %v3418, %v3422
  %v3425 = vadd.f32 %v3415, %v3423
  %v3426 = vadd.f32 %v3416, %v3423
  %v3427 = vadd.f32 %v3417, %v3423
  %3428 = vst.msk [vmem:[%s61] sm:$0xff] %vm256, %v3425
  %3429 = vst.msk [vmem:[%s61 + $0x8] sm:$0xff] %vm256, %v3426
  %3430 = vst.msk [vmem:[%s61 + $0x10] sm:$0xff] %vm256, %v3427
  // Predicated region
  $region122: #{measure_vit_forward.2} parent=0 // pred_check
    _
  $region123: #{measure_vit_forward.2} parent=0 // pred_check_branch
    %3432 = sbr.rel (0) target = $region125
  $region124: #{measure_vit_forward.2} parent=0 // pred_region
    _
  $region125: #{measure_vit_forward.2} parent=0 // pred_fallthru
    _
  // Predicated region
  $region126: #{measure_vit_forward.2} parent=0 // pred_check
    _
  $region127: #{measure_vit_forward.2} parent=0 // pred_check_branch
    %3434 = sbr.rel (0) target = $region129
  $region128: #{measure_vit_forward.2} parent=0 // pred_region
    _
  $region129: #{measure_vit_forward.2} parent=0 // pred_fallthru
    _

</llo_original>
